<compile_context>
chip_gen: v7x
topology: tpu7x:2x2x1
jax: 0.10.0
libtpu: 0.0.40
codegen_flags: <defaults>
</compile_context>

<pallas_src>
import jax
import jax.numpy as jnp
from jax.experimental import pallas as pl
from jax.experimental.pallas import tpu as pltpu

IN_FEATS = 3 * 28 * 28   # 2352, matches torch x.view(-1, 3*28*28)
HID = 512
OUT = 1


def mlp_kernel(x_ref, w1_ref, b1_ref, w2_ref, b2_ref, w3_ref, b3_ref, o_ref):
    # fc1: bf16 MXU matmul, f32 accumulate; bias + ReLU in f32 on the VPU.
    h1 = jnp.dot(x_ref[...].astype(jnp.bfloat16), w1_ref[...],
                 preferred_element_type=jnp.float32)
    h1 = jnp.maximum(h1 + b1_ref[...], 0.0)
    # fc2
    h2 = jnp.dot(h1.astype(jnp.bfloat16), w2_ref[...],
                 preferred_element_type=jnp.float32)
    h2 = jnp.maximum(h2 + b2_ref[...], 0.0)
    # fc3 (N=1): VPU multiply + lane-axis reduction.  w3 is a (1, HID) f32 row;
    # the (TB, 1) column store is tiny (B*4 bytes total).
    o_ref[...] = jnp.sum(h2 * w3_ref[...], axis=-1, keepdims=True) + b3_ref[...]


def _round_up(x, m):
    return (x + m - 1) // m * m


def _choose_batch_tile(B):
    """Bound padding waste (<TB), amortize per-step overhead, and give >=2
    grid steps for mid/large B so v7x megacore can shard the parallel axis."""
    if B <= 256:
        return _round_up(max(B, 1), 8)   # single tile, latency regime
    if B < 2048:
        return 256
    return 512


def init_params(key):
    """Torch nn.Linear default init (uniform +/- 1/sqrt(fan_in)), f32.
    Weights stored (in, out) so the kernel computes x @ W."""
    ks = jax.random.split(key, 6)

    def linear(kw, kb, fan_in, fan_out):
        bound = 1.0 / jnp.sqrt(jnp.float32(fan_in))
        w = jax.random.uniform(kw, (fan_in, fan_out), jnp.float32, -bound, bound)
        b = jax.random.uniform(kb, (fan_out,), jnp.float32, -bound, bound)
        return w, b

    w1, b1 = linear(ks[0], ks[1], IN_FEATS, HID)
    w2, b2 = linear(ks[2], ks[3], HID, HID)
    w3, b3 = linear(ks[4], ks[5], HID, OUT)
    return (w1, b1, w2, b2, w3, b3)


def prepare_params(params):
    """One-time weight prep (hoisted out of the forward path):
    cast w1/w2 to bf16 (no K padding needed any more), keep biases f32,
    reshape w3 to a (1, HID) row and b3 to (1, 1)."""
    w1, b1, w2, b2, w3, b3 = params
    return (
        w1.astype(jnp.bfloat16),                    # (2352, 512)
        b1.reshape(1, HID).astype(jnp.float32),
        w2.astype(jnp.bfloat16),                    # (512, 512)
        b2.reshape(1, HID).astype(jnp.float32),
        w3.reshape(1, HID).astype(jnp.float32),
        b3.reshape(1, 1).astype(jnp.float32),
    )


def net_forward(x, prepped):
    """x: (B, 3, 28, 28) float32 -> logits (B,) float32."""
    w1, b1, w2, b2, w3, b3 = prepped
    B = x.shape[0]
    # Pure metadata reshape (row-major, same as torch .view); no HBM copy.
    x2d = x.reshape(B, IN_FEATS)

    TB = _choose_batch_tile(B)
    grid = pl.cdiv(B, TB)

    # Weights/biases: constant block index (resident across grid steps) and a
    # single VMEM buffer — double-buffering a never-changing block is pure
    # VMEM waste.
    def const(shape):
        return pl.BlockSpec(shape, lambda i: (0,) * len(shape),
                            pipeline_mode=pl.Buffered(1))

    out = pl.pallas_call(
        mlp_kernel,
        out_shape=jax.ShapeDtypeStruct((B, OUT), jnp.float32),
        grid_spec=pltpu.PrefetchScalarGridSpec(
            num_scalar_prefetch=0,
            grid=(grid,),
            in_specs=[
                # x streamed per batch tile; K stays the full 2352 (legal:
                # last block dim == full array dim), so no host-side pad copy.
                pl.BlockSpec((TB, IN_FEATS), lambda i: (i, 0)),
                const((IN_FEATS, HID)),   # w1 (bf16), resident
                const((1, HID)),          # b1 (f32)
                const((HID, HID)),        # w2 (bf16), resident
                const((1, HID)),          # b2 (f32)
                const((1, HID)),          # w3 row (f32)
                const((1, 1)),            # b3 (f32)
            ],
            out_specs=pl.BlockSpec((TB, OUT), lambda i: (i, 0)),
        ),
        compiler_params=pltpu.CompilerParams(
            dimension_semantics=("parallel",),      # megacore-shardable (v7x)
            vmem_limit_bytes=40 * 1024 * 1024,      # fits TB=512 f32 x tiles
        ),
    )(x2d, w1, b1, w2, b2, w3, b3)
    return out[:, 0]  # matches torch .flatten()


if __name__ == "__main__":
    key = jax.random.PRNGKey(0)
    k_params, k_x = jax.random.split(key)
    params = init_params(k_params)
    prepped = prepare_params(params)

    B = 8
    x = jax.random.normal(k_x, (B, 3, 28, 28), jnp.float32)

    logits = net_forward(x, prepped)
    jax.block_until_ready(logits)

    # Sanity check against plain-JAX f32 reference (bf16 weights => looser tol).
    w1, b1, w2, b2, w3, b3 = params
    xf = x.reshape(B, IN_FEATS)
    ref = jnp.maximum(xf @ w1 + b1, 0.0)
    ref = jnp.maximum(ref @ w2 + b2, 0.0)
    ref = (ref @ w3 + b3).reshape(B)

    assert logits.shape == (B,)
    assert jnp.allclose(logits, ref, atol=2e-2, rtol=2e-2), (
        float(jnp.max(jnp.abs(logits - ref))))

    print("KERNEL_OK")
</pallas_src>

<mosaic_0001>
module attributes {stable_mosaic.version = 11 : i64} {
  func.func @mlp_kernel(%arg0: i32, %arg1: memref<8x2352xf32, #tpu.memory_space<vmem>>, %arg2: memref<2352x512xbf16, #tpu.memory_space<vmem>>, %arg3: memref<1x512xf32, #tpu.memory_space<vmem>>, %arg4: memref<512x512xbf16, #tpu.memory_space<vmem>>, %arg5: memref<1x512xf32, #tpu.memory_space<vmem>>, %arg6: memref<1x512xf32, #tpu.memory_space<vmem>>, %arg7: memref<1x1xf32, #tpu.memory_space<vmem>>, %arg8: memref<8x1xf32, #tpu.memory_space<vmem>>) attributes {dimension_semantics = [#tpu.dimension_semantics<parallel>], iteration_bounds = array<i64: 1>, scalar_prefetch = 0 : i64, scratch_operands = 0 : i64, tpu.core_type = #tpu.core_type<tc>, window_params = [{transform_indices = @transform_0, window_bounds = array<i64: 8, 2352>}, {pipeline_mode = #tpu.pipeline_mode<synchronous>, transform_indices = @transform_1, window_bounds = array<i64: 2352, 512>}, {pipeline_mode = #tpu.pipeline_mode<synchronous>, transform_indices = @transform_2, window_bounds = array<i64: 1, 512>}, {pipeline_mode = #tpu.pipeline_mode<synchronous>, transform_indices = @transform_3, window_bounds = array<i64: 512, 512>}, {pipeline_mode = #tpu.pipeline_mode<synchronous>, transform_indices = @transform_4, window_bounds = array<i64: 1, 512>}, {pipeline_mode = #tpu.pipeline_mode<synchronous>, transform_indices = @transform_5, window_bounds = array<i64: 1, 512>}, {pipeline_mode = #tpu.pipeline_mode<synchronous>, transform_indices = @transform_6, window_bounds = array<i64: 1, 1>}, {transform_indices = @transform_7, window_bounds = array<i64: 8, 1>}]} {
    %c0 = arith.constant 0 : index
    %c0_0 = arith.constant 0 : index
    %0 = vector.load %arg1[%c0, %c0_0] : memref<8x2352xf32, #tpu.memory_space<vmem>>, vector<8x2352xf32>
    %1 = arith.truncf %0 : vector<8x2352xf32> to vector<8x2352xbf16>
    %c0_1 = arith.constant 0 : index
    %c0_2 = arith.constant 0 : index
    %2 = vector.load %arg2[%c0_1, %c0_2] : memref<2352x512xbf16, #tpu.memory_space<vmem>>, vector<2352x512xbf16>
    %cst = arith.constant dense<0.000000e+00> : vector<8x512xf32>
    %3 = tpu.matmul %1, %2, %cst {dimension_numbers = #tpu.dot_dimension_numbers<[1], [0], [0], [1], [0, 0, 1, 1], [], []>} : vector<8x2352xbf16>, vector<2352x512xbf16>, vector<8x512xf32> -> vector<8x512xf32>
    %c0_3 = arith.constant 0 : index
    %c0_4 = arith.constant 0 : index
    %4 = vector.load %arg3[%c0_3, %c0_4] : memref<1x512xf32, #tpu.memory_space<vmem>>, vector<1x512xf32>
    %5 = vector.broadcast %4 : vector<1x512xf32> to vector<8x512xf32>
    %6 = arith.addf %3, %5 : vector<8x512xf32>
    %cst_5 = arith.constant 0.000000e+00 : f32
    %7 = vector.broadcast %cst_5 : f32 to vector<8x512xf32>
    %8 = arith.maximumf %6, %7 : vector<8x512xf32>
    %9 = arith.truncf %8 : vector<8x512xf32> to vector<8x512xbf16>
    %c0_6 = arith.constant 0 : index
    %c0_7 = arith.constant 0 : index
    %10 = vector.load %arg4[%c0_6, %c0_7] : memref<512x512xbf16, #tpu.memory_space<vmem>>, vector<512x512xbf16>
    %cst_8 = arith.constant dense<0.000000e+00> : vector<8x512xf32>
    %11 = tpu.matmul %9, %10, %cst_8 {dimension_numbers = #tpu.dot_dimension_numbers<[1], [0], [0], [1], [0, 0, 1, 1], [], []>} : vector<8x512xbf16>, vector<512x512xbf16>, vector<8x512xf32> -> vector<8x512xf32>
    %c0_9 = arith.constant 0 : index
    %c0_10 = arith.constant 0 : index
    %12 = vector.load %arg5[%c0_9, %c0_10] : memref<1x512xf32, #tpu.memory_space<vmem>>, vector<1x512xf32>
    %13 = vector.broadcast %12 : vector<1x512xf32> to vector<8x512xf32>
    %14 = arith.addf %11, %13 : vector<8x512xf32>
    %cst_11 = arith.constant 0.000000e+00 : f32
    %15 = vector.broadcast %cst_11 : f32 to vector<8x512xf32>
    %16 = arith.maximumf %14, %15 : vector<8x512xf32>
    %c0_12 = arith.constant 0 : index
    %c0_13 = arith.constant 0 : index
    %17 = vector.load %arg6[%c0_12, %c0_13] : memref<1x512xf32, #tpu.memory_space<vmem>>, vector<1x512xf32>
    %18 = vector.broadcast %17 : vector<1x512xf32> to vector<8x512xf32>
    %19 = arith.mulf %16, %18 : vector<8x512xf32>
    %cst_14 = arith.constant dense<0.000000e+00> : vector<8xf32>
    %20 = vector.multi_reduction <add>, %19, %cst_14 [1] : vector<8x512xf32> to vector<8xf32>
    %21 = vector.shape_cast %20 : vector<8xf32> to vector<8x1xf32>
    %c0_15 = arith.constant 0 : index
    %c0_16 = arith.constant 0 : index
    %22 = vector.load %arg7[%c0_15, %c0_16] : memref<1x1xf32, #tpu.memory_space<vmem>>, vector<1x1xf32>
    %23 = vector.broadcast %22 : vector<1x1xf32> to vector<8x1xf32>
    %24 = arith.addf %21, %23 : vector<8x1xf32>
    %c0_17 = arith.constant 0 : index
    %c0_18 = arith.constant 0 : index
    %25 = vector.load %arg8[%c0_17, %c0_18] : memref<8x1xf32, #tpu.memory_space<vmem>>, vector<8x1xf32>
    tpu.vector_store %arg8[%c0_17, %c0_18], %24 {strides = array<i32>} : memref<8x1xf32, #tpu.memory_space<vmem>>, vector<8x1xf32>,
    return
  }
  func.func @transform_0(%arg0: i32) -> (i32, i32) {
    %c0_i32 = arith.constant 0 : i32
    %c0_i32_0 = arith.constant 0 : i32
    return %arg0, %c0_i32 : i32, i32
  }
  func.func @transform_1(%arg0: i32) -> (i32, i32) {
    %c0_i32 = arith.constant 0 : i32
    %c0_i32_0 = arith.constant 0 : i32
    %c0_i32_1 = arith.constant 0 : i32
    return %c0_i32, %c0_i32_0 : i32, i32
  }
  func.func @transform_2(%arg0: i32) -> (i32, i32) {
    %c0_i32 = arith.constant 0 : i32
    %c0_i32_0 = arith.constant 0 : i32
    %c0_i32_1 = arith.constant 0 : i32
    return %c0_i32, %c0_i32_0 : i32, i32
  }
  func.func @transform_3(%arg0: i32) -> (i32, i32) {
    %c0_i32 = arith.constant 0 : i32
    %c0_i32_0 = arith.constant 0 : i32
    %c0_i32_1 = arith.constant 0 : i32
    return %c0_i32, %c0_i32_0 : i32, i32
  }
  func.func @transform_4(%arg0: i32) -> (i32, i32) {
    %c0_i32 = arith.constant 0 : i32
    %c0_i32_0 = arith.constant 0 : i32
    %c0_i32_1 = arith.constant 0 : i32
    return %c0_i32, %c0_i32_0 : i32, i32
  }
  func.func @transform_5(%arg0: i32) -> (i32, i32) {
    %c0_i32 = arith.constant 0 : i32
    %c0_i32_0 = arith.constant 0 : i32
    %c0_i32_1 = arith.constant 0 : i32
    return %c0_i32, %c0_i32_0 : i32, i32
  }
  func.func @transform_6(%arg0: i32) -> (i32, i32) {
    %c0_i32 = arith.constant 0 : i32
    %c0_i32_0 = arith.constant 0 : i32
    %c0_i32_1 = arith.constant 0 : i32
    return %c0_i32, %c0_i32_0 : i32, i32
  }
  func.func @transform_7(%arg0: i32) -> (i32, i32) {
    %c0_i32 = arith.constant 0 : i32
    %c0_i32_0 = arith.constant 0 : i32
    return %arg0, %c0_i32 : i32, i32
  }
}

</mosaic_0001>

<llo_original>
// kernel: tpu_custom_call.1
$region0: #{tpu_custom_call.1}
  #allocation0 [shape = 'u32[]', space=smem, size = 0x4, offset = 0x4, fixed_abs, tag = 'smem constant byte address 0x4 - core index']
  #allocation1 [shape = 'u32[144,128]{1,0:T(1,128)}', space=vmem, size = 0x12000, scoped, tag = 'internal scratch']
  #allocation2 [shape = 'f32[1,1]{1,0:T(1,128)S(1)}', space=vmem, size = 0x200, scoped, tag = 'scoped memory for tpu_custom_call.1']
  %s0 = inlined_call_operand.hbm [shape: f32[8,2352], index: 0, kind: input, shape index: {}]
  %s1 = inlined_call_operand.hbm [shape: bf16[2352,512], index: 1, kind: input, shape index: {}]
  %s2 = inlined_call_operand.hbm [shape: f32[1,512], index: 2, kind: input, shape index: {}]
  %s3 = inlined_call_operand.hbm [shape: bf16[512,512], index: 3, kind: input, shape index: {}]
  %s4 = inlined_call_operand.hbm [shape: f32[1,512], index: 4, kind: input, shape index: {}]
  %s5 = inlined_call_operand.hbm [shape: f32[1,512], index: 5, kind: input, shape index: {}]
  %s6 = inlined_call_operand.<no memory space> [shape: f32[1,1], index: 6, kind: input, shape index: {}]
  %s7 = inlined_call_operand.vmem [shape: f32[8,1], index: 7, kind: output, shape index: {}]
  %s8 = sld [smem:[#allocation0]]
  $region62: #{tpu_custom_call.1} parent=0
    _
  %s10 = ssub.s32 1, %s8
  %s11 = scalar_select 0, %s10, %s8
  %v12 = vstv %s6
  %13 = vst [vmem:[#allocation2] sm:$0x1] %v12
  $region1: #{tpu_custom_call.1} parent=0
    #allocation3 [shape = 'u8[77824]{0}', space=vmem, size = 0x13000, scoped, tag = 'input window, operand 0, single buffered']
    #allocation4 [shape = 's32[1]{0}', space=sflag, size = 0x4, scoped, tag = 'scoped memory for tpu_custom_call.1']
    #allocation5 [shape = 'u8[2408448]{0}', space=vmem, size = 0x24c000, scoped, tag = 'input window, operand 1, single buffered']
    #allocation6 [shape = 's32[1]{0}', space=sflag, size = 0x4, scoped, tag = 'scoped memory for tpu_custom_call.1']
    #allocation7 [shape = 'u8[2048]{0}', space=vmem, size = 0x800, scoped, tag = 'input window, operand 2, single buffered']
    #allocation8 [shape = 'u8[524288]{0}', space=vmem, size = 0x80000, scoped, tag = 'input window, operand 3, single buffered']
    #allocation9 [shape = 's32[1]{0}', space=sflag, size = 0x4, scoped, tag = 'scoped memory for tpu_custom_call.1']
    #allocation10 [shape = 'u8[2048]{0}', space=vmem, size = 0x800, scoped, tag = 'input window, operand 4, single buffered']
    #allocation11 [shape = 'u8[2048]{0}', space=vmem, size = 0x800, scoped, tag = 'input window, operand 5, single buffered']
    #allocation12 [shape = 's32[1]{0}', space=sflag, size = 0x4, scoped, tag = 'scoped memory for tpu_custom_call.1']
    %14 = vsyncpa [#allocation4], 0
    %15 = vsyncpa [#allocation6], 0
    %16 = vsyncpa [#allocation9], 0
    %17 = vsyncpa [#allocation12], 0
    // Predicated region
    $region2: #{tpu_custom_call.1} parent=1 // pred_check
      _
    $region3: #{tpu_custom_call.1} parent=1 // pred_check_branch
      %19 = sbr.rel (0) target = $region5
    $region4: #{tpu_custom_call.1} parent=1 // pred_region
      %s21 = ssub.s32 2432, 2432
      %22 = vsyncadd [#allocation4], %s21
      %s24 = sshll.u32 [#allocation3], 4
      %s25 = int_to_ptr.vmem [resolvable:$true] %s24
      %27 = dma.hbm_to_vmem [thread:$0]  %s0, 2432, %s25, [#allocation4]
    $region5: #{tpu_custom_call.1} parent=1 // pred_fallthru
      _
    // Predicated region
    $region6: #{tpu_custom_call.1} parent=1 // pred_check
      _
    $region7: #{tpu_custom_call.1} parent=1 // pred_check_branch
      %29 = sbr.rel (0) target = $region9
    $region8: #{tpu_custom_call.1} parent=1 // pred_region
      %s31 = ssub.s32 75264, 75264
      %32 = vsyncadd [#allocation6], %s31
      %s33 = sshll.u32 [#allocation5], 4
      %s34 = int_to_ptr.vmem [resolvable:$true] %s33
      %39 = dma.hbm_to_vmem [thread:$0]  %s1, 75264, %s34, [#allocation6], 256, 256, 16
    $region9: #{tpu_custom_call.1} parent=1 // pred_fallthru
      _
    // Predicated region
    $region10: #{tpu_custom_call.1} parent=1 // pred_check
      _
    $region11: #{tpu_custom_call.1} parent=1 // pred_check_branch
      %41 = sbr.rel (0) target = $region13
    $region12: #{tpu_custom_call.1} parent=1 // pred_region
      %s43 = ssub.s32 64, 64
      %44 = vsyncadd [#allocation6], %s43
      %s46 = sshll.u32 [#allocation7], 4
      %s47 = int_to_ptr.vmem [resolvable:$true] %s46
      %49 = dma.hbm_to_vmem [thread:$0]  %s2, 64, %s47, [#allocation6]
    $region13: #{tpu_custom_call.1} parent=1 // pred_fallthru
      _
    // Predicated region
    $region14: #{tpu_custom_call.1} parent=1 // pred_check
      _
    $region15: #{tpu_custom_call.1} parent=1 // pred_check_branch
      %51 = sbr.rel (0) target = $region17
    $region16: #{tpu_custom_call.1} parent=1 // pred_region
      %s53 = ssub.s32 16384, 16384
      %54 = vsyncadd [#allocation9], %s53
      %s55 = sshll.u32 [#allocation8], 4
      %s56 = int_to_ptr.vmem [resolvable:$true] %s55
      %61 = dma.hbm_to_vmem [thread:$0]  %s3, 16384, %s56, [#allocation9], 256, 256, 16
    $region17: #{tpu_custom_call.1} parent=1 // pred_fallthru
      _
    // Predicated region
    $region18: #{tpu_custom_call.1} parent=1 // pred_check
      _
    $region19: #{tpu_custom_call.1} parent=1 // pred_check_branch
      %63 = sbr.rel (0) target = $region21
    $region20: #{tpu_custom_call.1} parent=1 // pred_region
      %s65 = ssub.s32 64, 64
      %66 = vsyncadd [#allocation9], %s65
      %s68 = sshll.u32 [#allocation10], 4
      %s69 = int_to_ptr.vmem [resolvable:$true] %s68
      %71 = dma.hbm_to_vmem [thread:$0]  %s4, 64, %s69, [#allocation9]
    $region21: #{tpu_custom_call.1} parent=1 // pred_fallthru
      _
    // Predicated region
    $region22: #{tpu_custom_call.1} parent=1 // pred_check
      _
    $region23: #{tpu_custom_call.1} parent=1 // pred_check_branch
      %73 = sbr.rel (0) target = $region25
    $region24: #{tpu_custom_call.1} parent=1 // pred_region
      %s75 = ssub.s32 64, 64
      %76 = vsyncadd [#allocation12], %s75
      %s78 = sshll.u32 [#allocation11], 4
      %s79 = int_to_ptr.vmem [resolvable:$true] %s78
      %81 = dma.hbm_to_vmem [thread:$0]  %s5, 64, %s79, [#allocation12]
    $region25: #{tpu_custom_call.1} parent=1 // pred_fallthru
      _
    // Predicated region
    $region26: #{tpu_custom_call.1} parent=1 // pred_check
      _
    $region27: #{tpu_custom_call.1} parent=1 // pred_check_branch
      %83 = sbr.rel (0) target = $region29
    $region28: #{tpu_custom_call.1} parent=1 // pred_region
      _
    $region29: #{tpu_custom_call.1} parent=1 // pred_fallthru
      _
    // Predicated region
    $region30: #{tpu_custom_call.1} parent=1 // pred_check
      _
    $region31: #{tpu_custom_call.1} parent=1 // pred_check_branch
      %85 = sbr.rel (0) target = $region33
    $region32: #{tpu_custom_call.1} parent=1 // pred_region
      %86 = dma.done [#allocation4], 2432
    $region33: #{tpu_custom_call.1} parent=1 // pred_fallthru
      _
    // Predicated region
    $region34: #{tpu_custom_call.1} parent=1 // pred_check
      _
    $region35: #{tpu_custom_call.1} parent=1 // pred_check_branch
      %88 = sbr.rel (0) target = $region37
    $region36: #{tpu_custom_call.1} parent=1 // pred_region
      %89 = dma.done [#allocation6], 75264
    $region37: #{tpu_custom_call.1} parent=1 // pred_fallthru
      _
    // Predicated region
    $region38: #{tpu_custom_call.1} parent=1 // pred_check
      _
    $region39: #{tpu_custom_call.1} parent=1 // pred_check_branch
      %91 = sbr.rel (0) target = $region41
    $region40: #{tpu_custom_call.1} parent=1 // pred_region
      %92 = dma.done [#allocation6], 64
    $region41: #{tpu_custom_call.1} parent=1 // pred_fallthru
      _
    // Predicated region
    $region42: #{tpu_custom_call.1} parent=1 // pred_check
      _
    $region43: #{tpu_custom_call.1} parent=1 // pred_check_branch
      %94 = sbr.rel (0) target = $region45
    $region44: #{tpu_custom_call.1} parent=1 // pred_region
      %95 = dma.done [#allocation9], 16384
    $region45: #{tpu_custom_call.1} parent=1 // pred_fallthru
      _
    // Predicated region
    $region46: #{tpu_custom_call.1} parent=1 // pred_check
      _
    $region47: #{tpu_custom_call.1} parent=1 // pred_check_branch
      %97 = sbr.rel (0) target = $region49
    $region48: #{tpu_custom_call.1} parent=1 // pred_region
      %98 = dma.done [#allocation9], 64
    $region49: #{tpu_custom_call.1} parent=1 // pred_fallthru
      _
    // Predicated region
    $region50: #{tpu_custom_call.1} parent=1 // pred_check
      _
    $region51: #{tpu_custom_call.1} parent=1 // pred_check_branch
      %100 = sbr.rel (0) target = $region53
    $region52: #{tpu_custom_call.1} parent=1 // pred_region
      %101 = dma.done [#allocation12], 64
    $region53: #{tpu_custom_call.1} parent=1 // pred_fallthru
      _
    %v103 = vld [vmem:[#allocation3] sm:$0xff]
    %v104 = vld [vmem:[#allocation3 + $0x8] sm:$0xff]
    %v105 = vld [vmem:[#allocation3 + $0x10] sm:$0xff]
    %v106 = vld [vmem:[#allocation3 + $0x18] sm:$0xff]
    %v107 = vld [vmem:[#allocation3 + $0x20] sm:$0xff]
    %v108 = vld [vmem:[#allocation3 + $0x28] sm:$0xff]
    %v109 = vld [vmem:[#allocation3 + $0x30] sm:$0xff]
    %v110 = vld [vmem:[#allocation3 + $0x38] sm:$0xff]
    %v111 = vld [vmem:[#allocation3 + $0x40] sm:$0xff]
    %v112 = vld [vmem:[#allocation3 + $0x48] sm:$0xff]
    %v113 = vld [vmem:[#allocation3 + $0x50] sm:$0xff]
    %v114 = vld [vmem:[#allocation3 + $0x58] sm:$0xff]
    %v115 = vld [vmem:[#allocation3 + $0x60] sm:$0xff]
    %v116 = vld [vmem:[#allocation3 + $0x68] sm:$0xff]
    %v117 = vld [vmem:[#allocation3 + $0x70] sm:$0xff]
    %v118 = vld [vmem:[#allocation3 + $0x78] sm:$0xff]
    %v119 = vld [vmem:[#allocation3 + $0x80] sm:$0xff]
    %v120 = vld [vmem:[#allocation3 + $0x88] sm:$0xff]
    %v121 = vld [vmem:[#allocation3 + $0x90] sm:$0xff]
    %v122 = vpack.c.bf16 %v103, %v103
    %v123 = vpack.c.bf16 %v104, %v104
    %v124 = vpack.c.bf16 %v105, %v105
    %v125 = vpack.c.bf16 %v106, %v106
    %v126 = vpack.c.bf16 %v107, %v107
    %v127 = vpack.c.bf16 %v108, %v108
    %v128 = vpack.c.bf16 %v109, %v109
    %v129 = vpack.c.bf16 %v110, %v110
    %v130 = vpack.c.bf16 %v111, %v111
    %v131 = vpack.c.bf16 %v112, %v112
    %v132 = vpack.c.bf16 %v113, %v113
    %v133 = vpack.c.bf16 %v114, %v114
    %v134 = vpack.c.bf16 %v115, %v115
    %v135 = vpack.c.bf16 %v116, %v116
    %v136 = vpack.c.bf16 %v117, %v117
    %v137 = vpack.c.bf16 %v118, %v118
    %v138 = vpack.c.bf16 %v119, %v119
    %v139 = vpack.c.bf16 %v120, %v120
    %v140 = vpack.c.bf16 %v121, %v121
    %v141 = vld [vmem:[#allocation5] sm:$0xff]
    %v142 = vld [vmem:[#allocation5 + $0x8] sm:$0xff]
    %v143 = vld [vmem:[#allocation5 + $0x10] sm:$0xff]
    %v144 = vld [vmem:[#allocation5 + $0x18] sm:$0xff]
    %v145 = vld [vmem:[#allocation5 + $0x20] sm:$0xff]
    %v146 = vld [vmem:[#allocation5 + $0x28] sm:$0xff]
    %v147 = vld [vmem:[#allocation5 + $0x30] sm:$0xff]
    %v148 = vld [vmem:[#allocation5 + $0x38] sm:$0xff]
    %v149 = vld [vmem:[#allocation5 + $0x40] sm:$0xff]
    %v150 = vld [vmem:[#allocation5 + $0x48] sm:$0xff]
    %v151 = vld [vmem:[#allocation5 + $0x50] sm:$0xff]
    %v152 = vld [vmem:[#allocation5 + $0x58] sm:$0xff]
    %v153 = vld [vmem:[#allocation5 + $0x60] sm:$0xff]
    %v154 = vld [vmem:[#allocation5 + $0x68] sm:$0xff]
    %v155 = vld [vmem:[#allocation5 + $0x70] sm:$0xff]
    %v156 = vld [vmem:[#allocation5 + $0x78] sm:$0xff]
    %v157 = vld [vmem:[#allocation5 + $0x80] sm:$0xff]
    %v158 = vld [vmem:[#allocation5 + $0x88] sm:$0xff]
    %v159 = vld [vmem:[#allocation5 + $0x90] sm:$0xff]
    %v160 = vld [vmem:[#allocation5 + $0x98] sm:$0xff]
    %v161 = vld [vmem:[#allocation5 + $0xa0] sm:$0xff]
    %v162 = vld [vmem:[#allocation5 + $0xa8] sm:$0xff]
    %v163 = vld [vmem:[#allocation5 + $0xb0] sm:$0xff]
    %v164 = vld [vmem:[#allocation5 + $0xb8] sm:$0xff]
    %v165 = vld [vmem:[#allocation5 + $0xc0] sm:$0xff]
    %v166 = vld [vmem:[#allocation5 + $0xc8] sm:$0xff]
    %v167 = vld [vmem:[#allocation5 + $0xd0] sm:$0xff]
    %v168 = vld [vmem:[#allocation5 + $0xd8] sm:$0xff]
    %v169 = vld [vmem:[#allocation5 + $0xe0] sm:$0xff]
    %v170 = vld [vmem:[#allocation5 + $0xe8] sm:$0xff]
    %v171 = vld [vmem:[#allocation5 + $0xf0] sm:$0xff]
    %v172 = vld [vmem:[#allocation5 + $0xf8] sm:$0xff]
    %v173 = vld [vmem:[#allocation5 + $0x100] sm:$0xff]
    %v174 = vld [vmem:[#allocation5 + $0x108] sm:$0xff]
    %v175 = vld [vmem:[#allocation5 + $0x110] sm:$0xff]
    %v176 = vld [vmem:[#allocation5 + $0x118] sm:$0xff]
    %v177 = vld [vmem:[#allocation5 + $0x120] sm:$0xff]
    %v178 = vld [vmem:[#allocation5 + $0x128] sm:$0xff]
    %v179 = vld [vmem:[#allocation5 + $0x130] sm:$0xff]
    %v180 = vld [vmem:[#allocation5 + $0x138] sm:$0xff]
    %v181 = vld [vmem:[#allocation5 + $0x140] sm:$0xff]
    %v182 = vld [vmem:[#allocation5 + $0x148] sm:$0xff]
    %v183 = vld [vmem:[#allocation5 + $0x150] sm:$0xff]
    %v184 = vld [vmem:[#allocation5 + $0x158] sm:$0xff]
    %v185 = vld [vmem:[#allocation5 + $0x160] sm:$0xff]
    %v186 = vld [vmem:[#allocation5 + $0x168] sm:$0xff]
    %v187 = vld [vmem:[#allocation5 + $0x170] sm:$0xff]
    %v188 = vld [vmem:[#allocation5 + $0x178] sm:$0xff]
    %v189 = vld [vmem:[#allocation5 + $0x180] sm:$0xff]
    %v190 = vld [vmem:[#allocation5 + $0x188] sm:$0xff]
    %v191 = vld [vmem:[#allocation5 + $0x190] sm:$0xff]
    %v192 = vld [vmem:[#allocation5 + $0x198] sm:$0xff]
    %v193 = vld [vmem:[#allocation5 + $0x1a0] sm:$0xff]
    %v194 = vld [vmem:[#allocation5 + $0x1a8] sm:$0xff]
    %v195 = vld [vmem:[#allocation5 + $0x1b0] sm:$0xff]
    %v196 = vld [vmem:[#allocation5 + $0x1b8] sm:$0xff]
    %v197 = vld [vmem:[#allocation5 + $0x1c0] sm:$0xff]
    %v198 = vld [vmem:[#allocation5 + $0x1c8] sm:$0xff]
    %v199 = vld [vmem:[#allocation5 + $0x1d0] sm:$0xff]
    %v200 = vld [vmem:[#allocation5 + $0x1d8] sm:$0xff]
    %v201 = vld [vmem:[#allocation5 + $0x1e0] sm:$0xff]
    %v202 = vld [vmem:[#allocation5 + $0x1e8] sm:$0xff]
    %v203 = vld [vmem:[#allocation5 + $0x1f0] sm:$0xff]
    %v204 = vld [vmem:[#allocation5 + $0x1f8] sm:$0xff]
    %v205 = vld [vmem:[#allocation5 + $0x200] sm:$0xff]
    %v206 = vld [vmem:[#allocation5 + $0x208] sm:$0xff]
    %v207 = vld [vmem:[#allocation5 + $0x210] sm:$0xff]
    %v208 = vld [vmem:[#allocation5 + $0x218] sm:$0xff]
    %v209 = vld [vmem:[#allocation5 + $0x220] sm:$0xff]
    %v210 = vld [vmem:[#allocation5 + $0x228] sm:$0xff]
    %v211 = vld [vmem:[#allocation5 + $0x230] sm:$0xff]
    %v212 = vld [vmem:[#allocation5 + $0x238] sm:$0xff]
    %v213 = vld [vmem:[#allocation5 + $0x240] sm:$0xff]
    %v214 = vld [vmem:[#allocation5 + $0x248] sm:$0xff]
    %v215 = vld [vmem:[#allocation5 + $0x250] sm:$0xff]
    %v216 = vld [vmem:[#allocation5 + $0x258] sm:$0xff]
    %v217 = vld [vmem:[#allocation5 + $0x260] sm:$0xff]
    %v218 = vld [vmem:[#allocation5 + $0x268] sm:$0xff]
    %v219 = vld [vmem:[#allocation5 + $0x270] sm:$0xff]
    %v220 = vld [vmem:[#allocation5 + $0x278] sm:$0xff]
    %v221 = vld [vmem:[#allocation5 + $0x280] sm:$0xff]
    %v222 = vld [vmem:[#allocation5 + $0x288] sm:$0xff]
    %v223 = vld [vmem:[#allocation5 + $0x290] sm:$0xff]
    %v224 = vld [vmem:[#allocation5 + $0x298] sm:$0xff]
    %v225 = vld [vmem:[#allocation5 + $0x2a0] sm:$0xff]
    %v226 = vld [vmem:[#allocation5 + $0x2a8] sm:$0xff]
    %v227 = vld [vmem:[#allocation5 + $0x2b0] sm:$0xff]
    %v228 = vld [vmem:[#allocation5 + $0x2b8] sm:$0xff]
    %v229 = vld [vmem:[#allocation5 + $0x2c0] sm:$0xff]
    %v230 = vld [vmem:[#allocation5 + $0x2c8] sm:$0xff]
    %v231 = vld [vmem:[#allocation5 + $0x2d0] sm:$0xff]
    %v232 = vld [vmem:[#allocation5 + $0x2d8] sm:$0xff]
    %v233 = vld [vmem:[#allocation5 + $0x2e0] sm:$0xff]
    %v234 = vld [vmem:[#allocation5 + $0x2e8] sm:$0xff]
    %v235 = vld [vmem:[#allocation5 + $0x2f0] sm:$0xff]
    %v236 = vld [vmem:[#allocation5 + $0x2f8] sm:$0xff]
    %v237 = vld [vmem:[#allocation5 + $0x300] sm:$0xff]
    %v238 = vld [vmem:[#allocation5 + $0x308] sm:$0xff]
    %v239 = vld [vmem:[#allocation5 + $0x310] sm:$0xff]
    %v240 = vld [vmem:[#allocation5 + $0x318] sm:$0xff]
    %v241 = vld [vmem:[#allocation5 + $0x320] sm:$0xff]
    %v242 = vld [vmem:[#allocation5 + $0x328] sm:$0xff]
    %v243 = vld [vmem:[#allocation5 + $0x330] sm:$0xff]
    %v244 = vld [vmem:[#allocation5 + $0x338] sm:$0xff]
    %v245 = vld [vmem:[#allocation5 + $0x340] sm:$0xff]
    %v246 = vld [vmem:[#allocation5 + $0x348] sm:$0xff]
    %v247 = vld [vmem:[#allocation5 + $0x350] sm:$0xff]
    %v248 = vld [vmem:[#allocation5 + $0x358] sm:$0xff]
    %v249 = vld [vmem:[#allocation5 + $0x360] sm:$0xff]
    %v250 = vld [vmem:[#allocation5 + $0x368] sm:$0xff]
    %v251 = vld [vmem:[#allocation5 + $0x370] sm:$0xff]
    %v252 = vld [vmem:[#allocation5 + $0x378] sm:$0xff]
    %v253 = vld [vmem:[#allocation5 + $0x380] sm:$0xff]
    %v254 = vld [vmem:[#allocation5 + $0x388] sm:$0xff]
    %v255 = vld [vmem:[#allocation5 + $0x390] sm:$0xff]
    %v256 = vld [vmem:[#allocation5 + $0x398] sm:$0xff]
    %v257 = vld [vmem:[#allocation5 + $0x3a0] sm:$0xff]
    %v258 = vld [vmem:[#allocation5 + $0x3a8] sm:$0xff]
    %v259 = vld [vmem:[#allocation5 + $0x3b0] sm:$0xff]
    %v260 = vld [vmem:[#allocation5 + $0x3b8] sm:$0xff]
    %v261 = vld [vmem:[#allocation5 + $0x3c0] sm:$0xff]
    %v262 = vld [vmem:[#allocation5 + $0x3c8] sm:$0xff]
    %v263 = vld [vmem:[#allocation5 + $0x3d0] sm:$0xff]
    %v264 = vld [vmem:[#allocation5 + $0x3d8] sm:$0xff]
    %v265 = vld [vmem:[#allocation5 + $0x3e0] sm:$0xff]
    %v266 = vld [vmem:[#allocation5 + $0x3e8] sm:$0xff]
    %v267 = vld [vmem:[#allocation5 + $0x3f0] sm:$0xff]
    %v268 = vld [vmem:[#allocation5 + $0x3f8] sm:$0xff]
    %v269 = vld [vmem:[#allocation5 + $0x400] sm:$0xff]
    %v270 = vld [vmem:[#allocation5 + $0x408] sm:$0xff]
    %v271 = vld [vmem:[#allocation5 + $0x410] sm:$0xff]
    %v272 = vld [vmem:[#allocation5 + $0x418] sm:$0xff]
    %v273 = vld [vmem:[#allocation5 + $0x420] sm:$0xff]
    %v274 = vld [vmem:[#allocation5 + $0x428] sm:$0xff]
    %v275 = vld [vmem:[#allocation5 + $0x430] sm:$0xff]
    %v276 = vld [vmem:[#allocation5 + $0x438] sm:$0xff]
    %v277 = vld [vmem:[#allocation5 + $0x440] sm:$0xff]
    %v278 = vld [vmem:[#allocation5 + $0x448] sm:$0xff]
    %v279 = vld [vmem:[#allocation5 + $0x450] sm:$0xff]
    %v280 = vld [vmem:[#allocation5 + $0x458] sm:$0xff]
    %v281 = vld [vmem:[#allocation5 + $0x460] sm:$0xff]
    %v282 = vld [vmem:[#allocation5 + $0x468] sm:$0xff]
    %v283 = vld [vmem:[#allocation5 + $0x470] sm:$0xff]
    %v284 = vld [vmem:[#allocation5 + $0x478] sm:$0xff]
    %v285 = vld [vmem:[#allocation5 + $0x480] sm:$0xff]
    %v286 = vld [vmem:[#allocation5 + $0x488] sm:$0xff]
    %v287 = vld [vmem:[#allocation5 + $0x490] sm:$0xff]
    %v288 = vld [vmem:[#allocation5 + $0x498] sm:$0xff]
    %v289 = vld [vmem:[#allocation5 + $0x4a0] sm:$0xff]
    %v290 = vld [vmem:[#allocation5 + $0x4a8] sm:$0xff]
    %v291 = vld [vmem:[#allocation5 + $0x4b0] sm:$0xff]
    %v292 = vld [vmem:[#allocation5 + $0x4b8] sm:$0xff]
    %v293 = vld [vmem:[#allocation5 + $0x4c0] sm:$0xff]
    %v294 = vld [vmem:[#allocation5 + $0x4c8] sm:$0xff]
    %v295 = vld [vmem:[#allocation5 + $0x4d0] sm:$0xff]
    %v296 = vld [vmem:[#allocation5 + $0x4d8] sm:$0xff]
    %v297 = vld [vmem:[#allocation5 + $0x4e0] sm:$0xff]
    %v298 = vld [vmem:[#allocation5 + $0x4e8] sm:$0xff]
    %v299 = vld [vmem:[#allocation5 + $0x4f0] sm:$0xff]
    %v300 = vld [vmem:[#allocation5 + $0x4f8] sm:$0xff]
    %v301 = vld [vmem:[#allocation5 + $0x500] sm:$0xff]
    %v302 = vld [vmem:[#allocation5 + $0x508] sm:$0xff]
    %v303 = vld [vmem:[#allocation5 + $0x510] sm:$0xff]
    %v304 = vld [vmem:[#allocation5 + $0x518] sm:$0xff]
    %v305 = vld [vmem:[#allocation5 + $0x520] sm:$0xff]
    %v306 = vld [vmem:[#allocation5 + $0x528] sm:$0xff]
    %v307 = vld [vmem:[#allocation5 + $0x530] sm:$0xff]
    %v308 = vld [vmem:[#allocation5 + $0x538] sm:$0xff]
    %v309 = vld [vmem:[#allocation5 + $0x540] sm:$0xff]
    %v310 = vld [vmem:[#allocation5 + $0x548] sm:$0xff]
    %v311 = vld [vmem:[#allocation5 + $0x550] sm:$0xff]
    %v312 = vld [vmem:[#allocation5 + $0x558] sm:$0xff]
    %v313 = vld [vmem:[#allocation5 + $0x560] sm:$0xff]
    %v314 = vld [vmem:[#allocation5 + $0x568] sm:$0xff]
    %v315 = vld [vmem:[#allocation5 + $0x570] sm:$0xff]
    %v316 = vld [vmem:[#allocation5 + $0x578] sm:$0xff]
    %v317 = vld [vmem:[#allocation5 + $0x580] sm:$0xff]
    %v318 = vld [vmem:[#allocation5 + $0x588] sm:$0xff]
    %v319 = vld [vmem:[#allocation5 + $0x590] sm:$0xff]
    %v320 = vld [vmem:[#allocation5 + $0x598] sm:$0xff]
    %v321 = vld [vmem:[#allocation5 + $0x5a0] sm:$0xff]
    %v322 = vld [vmem:[#allocation5 + $0x5a8] sm:$0xff]
    %v323 = vld [vmem:[#allocation5 + $0x5b0] sm:$0xff]
    %v324 = vld [vmem:[#allocation5 + $0x5b8] sm:$0xff]
    %v325 = vld [vmem:[#allocation5 + $0x5c0] sm:$0xff]
    %v326 = vld [vmem:[#allocation5 + $0x5c8] sm:$0xff]
    %v327 = vld [vmem:[#allocation5 + $0x5d0] sm:$0xff]
    %v328 = vld [vmem:[#allocation5 + $0x5d8] sm:$0xff]
    %v329 = vld [vmem:[#allocation5 + $0x5e0] sm:$0xff]
    %v330 = vld [vmem:[#allocation5 + $0x5e8] sm:$0xff]
    %v331 = vld [vmem:[#allocation5 + $0x5f0] sm:$0xff]
    %v332 = vld [vmem:[#allocation5 + $0x5f8] sm:$0xff]
    %v333 = vld [vmem:[#allocation5 + $0x600] sm:$0xff]
    %v334 = vld [vmem:[#allocation5 + $0x608] sm:$0xff]
    %v335 = vld [vmem:[#allocation5 + $0x610] sm:$0xff]
    %v336 = vld [vmem:[#allocation5 + $0x618] sm:$0xff]
    %v337 = vld [vmem:[#allocation5 + $0x620] sm:$0xff]
    %v338 = vld [vmem:[#allocation5 + $0x628] sm:$0xff]
    %v339 = vld [vmem:[#allocation5 + $0x630] sm:$0xff]
    %v340 = vld [vmem:[#allocation5 + $0x638] sm:$0xff]
    %v341 = vld [vmem:[#allocation5 + $0x640] sm:$0xff]
    %v342 = vld [vmem:[#allocation5 + $0x648] sm:$0xff]
    %v343 = vld [vmem:[#allocation5 + $0x650] sm:$0xff]
    %v344 = vld [vmem:[#allocation5 + $0x658] sm:$0xff]
    %v345 = vld [vmem:[#allocation5 + $0x660] sm:$0xff]
    %v346 = vld [vmem:[#allocation5 + $0x668] sm:$0xff]
    %v347 = vld [vmem:[#allocation5 + $0x670] sm:$0xff]
    %v348 = vld [vmem:[#allocation5 + $0x678] sm:$0xff]
    %v349 = vld [vmem:[#allocation5 + $0x680] sm:$0xff]
    %v350 = vld [vmem:[#allocation5 + $0x688] sm:$0xff]
    %v351 = vld [vmem:[#allocation5 + $0x690] sm:$0xff]
    %v352 = vld [vmem:[#allocation5 + $0x698] sm:$0xff]
    %v353 = vld [vmem:[#allocation5 + $0x6a0] sm:$0xff]
    %v354 = vld [vmem:[#allocation5 + $0x6a8] sm:$0xff]
    %v355 = vld [vmem:[#allocation5 + $0x6b0] sm:$0xff]
    %v356 = vld [vmem:[#allocation5 + $0x6b8] sm:$0xff]
    %v357 = vld [vmem:[#allocation5 + $0x6c0] sm:$0xff]
    %v358 = vld [vmem:[#allocation5 + $0x6c8] sm:$0xff]
    %v359 = vld [vmem:[#allocation5 + $0x6d0] sm:$0xff]
    %v360 = vld [vmem:[#allocation5 + $0x6d8] sm:$0xff]
    %v361 = vld [vmem:[#allocation5 + $0x6e0] sm:$0xff]
    %v362 = vld [vmem:[#allocation5 + $0x6e8] sm:$0xff]
    %v363 = vld [vmem:[#allocation5 + $0x6f0] sm:$0xff]
    %v364 = vld [vmem:[#allocation5 + $0x6f8] sm:$0xff]
    %v365 = vld [vmem:[#allocation5 + $0x700] sm:$0xff]
    %v366 = vld [vmem:[#allocation5 + $0x708] sm:$0xff]
    %v367 = vld [vmem:[#allocation5 + $0x710] sm:$0xff]
    %v368 = vld [vmem:[#allocation5 + $0x718] sm:$0xff]
    %v369 = vld [vmem:[#allocation5 + $0x720] sm:$0xff]
    %v370 = vld [vmem:[#allocation5 + $0x728] sm:$0xff]
    %v371 = vld [vmem:[#allocation5 + $0x730] sm:$0xff]
    %v372 = vld [vmem:[#allocation5 + $0x738] sm:$0xff]
    %v373 = vld [vmem:[#allocation5 + $0x740] sm:$0xff]
    %v374 = vld [vmem:[#allocation5 + $0x748] sm:$0xff]
    %v375 = vld [vmem:[#allocation5 + $0x750] sm:$0xff]
    %v376 = vld [vmem:[#allocation5 + $0x758] sm:$0xff]
    %v377 = vld [vmem:[#allocation5 + $0x760] sm:$0xff]
    %v378 = vld [vmem:[#allocation5 + $0x768] sm:$0xff]
    %v379 = vld [vmem:[#allocation5 + $0x770] sm:$0xff]
    %v380 = vld [vmem:[#allocation5 + $0x778] sm:$0xff]
    %v381 = vld [vmem:[#allocation5 + $0x780] sm:$0xff]
    %v382 = vld [vmem:[#allocation5 + $0x788] sm:$0xff]
    %v383 = vld [vmem:[#allocation5 + $0x790] sm:$0xff]
    %v384 = vld [vmem:[#allocation5 + $0x798] sm:$0xff]
    %v385 = vld [vmem:[#allocation5 + $0x7a0] sm:$0xff]
    %v386 = vld [vmem:[#allocation5 + $0x7a8] sm:$0xff]
    %v387 = vld [vmem:[#allocation5 + $0x7b0] sm:$0xff]
    %v388 = vld [vmem:[#allocation5 + $0x7b8] sm:$0xff]
    %v389 = vld [vmem:[#allocation5 + $0x7c0] sm:$0xff]
    %v390 = vld [vmem:[#allocation5 + $0x7c8] sm:$0xff]
    %v391 = vld [vmem:[#allocation5 + $0x7d0] sm:$0xff]
    %v392 = vld [vmem:[#allocation5 + $0x7d8] sm:$0xff]
    %v393 = vld [vmem:[#allocation5 + $0x7e0] sm:$0xff]
    %v394 = vld [vmem:[#allocation5 + $0x7e8] sm:$0xff]
    %v395 = vld [vmem:[#allocation5 + $0x7f0] sm:$0xff]
    %v396 = vld [vmem:[#allocation5 + $0x7f8] sm:$0xff]
    %v397 = vld [vmem:[#allocation5 + $0x800] sm:$0xff]
    %v398 = vld [vmem:[#allocation5 + $0x808] sm:$0xff]
    %v399 = vld [vmem:[#allocation5 + $0x810] sm:$0xff]
    %v400 = vld [vmem:[#allocation5 + $0x818] sm:$0xff]
    %v401 = vld [vmem:[#allocation5 + $0x820] sm:$0xff]
    %v402 = vld [vmem:[#allocation5 + $0x828] sm:$0xff]
    %v403 = vld [vmem:[#allocation5 + $0x830] sm:$0xff]
    %v404 = vld [vmem:[#allocation5 + $0x838] sm:$0xff]
    %v405 = vld [vmem:[#allocation5 + $0x840] sm:$0xff]
    %v406 = vld [vmem:[#allocation5 + $0x848] sm:$0xff]
    %v407 = vld [vmem:[#allocation5 + $0x850] sm:$0xff]
    %v408 = vld [vmem:[#allocation5 + $0x858] sm:$0xff]
    %v409 = vld [vmem:[#allocation5 + $0x860] sm:$0xff]
    %v410 = vld [vmem:[#allocation5 + $0x868] sm:$0xff]
    %v411 = vld [vmem:[#allocation5 + $0x870] sm:$0xff]
    %v412 = vld [vmem:[#allocation5 + $0x878] sm:$0xff]
    %v413 = vld [vmem:[#allocation5 + $0x880] sm:$0xff]
    %v414 = vld [vmem:[#allocation5 + $0x888] sm:$0xff]
    %v415 = vld [vmem:[#allocation5 + $0x890] sm:$0xff]
    %v416 = vld [vmem:[#allocation5 + $0x898] sm:$0xff]
    %v417 = vld [vmem:[#allocation5 + $0x8a0] sm:$0xff]
    %v418 = vld [vmem:[#allocation5 + $0x8a8] sm:$0xff]
    %v419 = vld [vmem:[#allocation5 + $0x8b0] sm:$0xff]
    %v420 = vld [vmem:[#allocation5 + $0x8b8] sm:$0xff]
    %v421 = vld [vmem:[#allocation5 + $0x8c0] sm:$0xff]
    %v422 = vld [vmem:[#allocation5 + $0x8c8] sm:$0xff]
    %v423 = vld [vmem:[#allocation5 + $0x8d0] sm:$0xff]
    %v424 = vld [vmem:[#allocation5 + $0x8d8] sm:$0xff]
    %v425 = vld [vmem:[#allocation5 + $0x8e0] sm:$0xff]
    %v426 = vld [vmem:[#allocation5 + $0x8e8] sm:$0xff]
    %v427 = vld [vmem:[#allocation5 + $0x8f0] sm:$0xff]
    %v428 = vld [vmem:[#allocation5 + $0x8f8] sm:$0xff]
    %v429 = vld [vmem:[#allocation5 + $0x900] sm:$0xff]
    %v430 = vld [vmem:[#allocation5 + $0x908] sm:$0xff]
    %v431 = vld [vmem:[#allocation5 + $0x910] sm:$0xff]
    %v432 = vld [vmem:[#allocation5 + $0x918] sm:$0xff]
    %v433 = vld [vmem:[#allocation5 + $0x920] sm:$0xff]
    %v434 = vld [vmem:[#allocation5 + $0x928] sm:$0xff]
    %v435 = vld [vmem:[#allocation5 + $0x930] sm:$0xff]
    %v436 = vld [vmem:[#allocation5 + $0x938] sm:$0xff]
    %v437 = vld [vmem:[#allocation5 + $0x940] sm:$0xff]
    %v438 = vld [vmem:[#allocation5 + $0x948] sm:$0xff]
    %v439 = vld [vmem:[#allocation5 + $0x950] sm:$0xff]
    %v440 = vld [vmem:[#allocation5 + $0x958] sm:$0xff]
    %v441 = vld [vmem:[#allocation5 + $0x960] sm:$0xff]
    %v442 = vld [vmem:[#allocation5 + $0x968] sm:$0xff]
    %v443 = vld [vmem:[#allocation5 + $0x970] sm:$0xff]
    %v444 = vld [vmem:[#allocation5 + $0x978] sm:$0xff]
    %v445 = vld [vmem:[#allocation5 + $0x980] sm:$0xff]
    %v446 = vld [vmem:[#allocation5 + $0x988] sm:$0xff]
    %v447 = vld [vmem:[#allocation5 + $0x990] sm:$0xff]
    %v448 = vld [vmem:[#allocation5 + $0x998] sm:$0xff]
    %v449 = vld [vmem:[#allocation5 + $0x9a0] sm:$0xff]
    %v450 = vld [vmem:[#allocation5 + $0x9a8] sm:$0xff]
    %v451 = vld [vmem:[#allocation5 + $0x9b0] sm:$0xff]
    %v452 = vld [vmem:[#allocation5 + $0x9b8] sm:$0xff]
    %v453 = vld [vmem:[#allocation5 + $0x9c0] sm:$0xff]
    %v454 = vld [vmem:[#allocation5 + $0x9c8] sm:$0xff]
    %v455 = vld [vmem:[#allocation5 + $0x9d0] sm:$0xff]
    %v456 = vld [vmem:[#allocation5 + $0x9d8] sm:$0xff]
    %v457 = vld [vmem:[#allocation5 + $0x9e0] sm:$0xff]
    %v458 = vld [vmem:[#allocation5 + $0x9e8] sm:$0xff]
    %v459 = vld [vmem:[#allocation5 + $0x9f0] sm:$0xff]
    %v460 = vld [vmem:[#allocation5 + $0x9f8] sm:$0xff]
    %v461 = vld [vmem:[#allocation5 + $0xa00] sm:$0xff]
    %v462 = vld [vmem:[#allocation5 + $0xa08] sm:$0xff]
    %v463 = vld [vmem:[#allocation5 + $0xa10] sm:$0xff]
    %v464 = vld [vmem:[#allocation5 + $0xa18] sm:$0xff]
    %v465 = vld [vmem:[#allocation5 + $0xa20] sm:$0xff]
    %v466 = vld [vmem:[#allocation5 + $0xa28] sm:$0xff]
    %v467 = vld [vmem:[#allocation5 + $0xa30] sm:$0xff]
    %v468 = vld [vmem:[#allocation5 + $0xa38] sm:$0xff]
    %v469 = vld [vmem:[#allocation5 + $0xa40] sm:$0xff]
    %v470 = vld [vmem:[#allocation5 + $0xa48] sm:$0xff]
    %v471 = vld [vmem:[#allocation5 + $0xa50] sm:$0xff]
    %v472 = vld [vmem:[#allocation5 + $0xa58] sm:$0xff]
    %v473 = vld [vmem:[#allocation5 + $0xa60] sm:$0xff]
    %v474 = vld [vmem:[#allocation5 + $0xa68] sm:$0xff]
    %v475 = vld [vmem:[#allocation5 + $0xa70] sm:$0xff]
    %v476 = vld [vmem:[#allocation5 + $0xa78] sm:$0xff]
    %v477 = vld [vmem:[#allocation5 + $0xa80] sm:$0xff]
    %v478 = vld [vmem:[#allocation5 + $0xa88] sm:$0xff]
    %v479 = vld [vmem:[#allocation5 + $0xa90] sm:$0xff]
    %v480 = vld [vmem:[#allocation5 + $0xa98] sm:$0xff]
    %v481 = vld [vmem:[#allocation5 + $0xaa0] sm:$0xff]
    %v482 = vld [vmem:[#allocation5 + $0xaa8] sm:$0xff]
    %v483 = vld [vmem:[#allocation5 + $0xab0] sm:$0xff]
    %v484 = vld [vmem:[#allocation5 + $0xab8] sm:$0xff]
    %v485 = vld [vmem:[#allocation5 + $0xac0] sm:$0xff]
    %v486 = vld [vmem:[#allocation5 + $0xac8] sm:$0xff]
    %v487 = vld [vmem:[#allocation5 + $0xad0] sm:$0xff]
    %v488 = vld [vmem:[#allocation5 + $0xad8] sm:$0xff]
    %v489 = vld [vmem:[#allocation5 + $0xae0] sm:$0xff]
    %v490 = vld [vmem:[#allocation5 + $0xae8] sm:$0xff]
    %v491 = vld [vmem:[#allocation5 + $0xaf0] sm:$0xff]
    %v492 = vld [vmem:[#allocation5 + $0xaf8] sm:$0xff]
    %v493 = vld [vmem:[#allocation5 + $0xb00] sm:$0xff]
    %v494 = vld [vmem:[#allocation5 + $0xb08] sm:$0xff]
    %v495 = vld [vmem:[#allocation5 + $0xb10] sm:$0xff]
    %v496 = vld [vmem:[#allocation5 + $0xb18] sm:$0xff]
    %v497 = vld [vmem:[#allocation5 + $0xb20] sm:$0xff]
    %v498 = vld [vmem:[#allocation5 + $0xb28] sm:$0xff]
    %v499 = vld [vmem:[#allocation5 + $0xb30] sm:$0xff]
    %v500 = vld [vmem:[#allocation5 + $0xb38] sm:$0xff]
    %v501 = vld [vmem:[#allocation5 + $0xb40] sm:$0xff]
    %v502 = vld [vmem:[#allocation5 + $0xb48] sm:$0xff]
    %v503 = vld [vmem:[#allocation5 + $0xb50] sm:$0xff]
    %v504 = vld [vmem:[#allocation5 + $0xb58] sm:$0xff]
    %v505 = vld [vmem:[#allocation5 + $0xb60] sm:$0xff]
    %v506 = vld [vmem:[#allocation5 + $0xb68] sm:$0xff]
    %v507 = vld [vmem:[#allocation5 + $0xb70] sm:$0xff]
    %v508 = vld [vmem:[#allocation5 + $0xb78] sm:$0xff]
    %v509 = vld [vmem:[#allocation5 + $0xb80] sm:$0xff]
    %v510 = vld [vmem:[#allocation5 + $0xb88] sm:$0xff]
    %v511 = vld [vmem:[#allocation5 + $0xb90] sm:$0xff]
    %v512 = vld [vmem:[#allocation5 + $0xb98] sm:$0xff]
    %v513 = vld [vmem:[#allocation5 + $0xba0] sm:$0xff]
    %v514 = vld [vmem:[#allocation5 + $0xba8] sm:$0xff]
    %v515 = vld [vmem:[#allocation5 + $0xbb0] sm:$0xff]
    %v516 = vld [vmem:[#allocation5 + $0xbb8] sm:$0xff]
    %v517 = vld [vmem:[#allocation5 + $0xbc0] sm:$0xff]
    %v518 = vld [vmem:[#allocation5 + $0xbc8] sm:$0xff]
    %v519 = vld [vmem:[#allocation5 + $0xbd0] sm:$0xff]
    %v520 = vld [vmem:[#allocation5 + $0xbd8] sm:$0xff]
    %v521 = vld [vmem:[#allocation5 + $0xbe0] sm:$0xff]
    %v522 = vld [vmem:[#allocation5 + $0xbe8] sm:$0xff]
    %v523 = vld [vmem:[#allocation5 + $0xbf0] sm:$0xff]
    %v524 = vld [vmem:[#allocation5 + $0xbf8] sm:$0xff]
    %v525 = vld [vmem:[#allocation5 + $0xc00] sm:$0xff]
    %v526 = vld [vmem:[#allocation5 + $0xc08] sm:$0xff]
    %v527 = vld [vmem:[#allocation5 + $0xc10] sm:$0xff]
    %v528 = vld [vmem:[#allocation5 + $0xc18] sm:$0xff]
    %v529 = vld [vmem:[#allocation5 + $0xc20] sm:$0xff]
    %v530 = vld [vmem:[#allocation5 + $0xc28] sm:$0xff]
    %v531 = vld [vmem:[#allocation5 + $0xc30] sm:$0xff]
    %v532 = vld [vmem:[#allocation5 + $0xc38] sm:$0xff]
    %v533 = vld [vmem:[#allocation5 + $0xc40] sm:$0xff]
    %v534 = vld [vmem:[#allocation5 + $0xc48] sm:$0xff]
    %v535 = vld [vmem:[#allocation5 + $0xc50] sm:$0xff]
    %v536 = vld [vmem:[#allocation5 + $0xc58] sm:$0xff]
    %v537 = vld [vmem:[#allocation5 + $0xc60] sm:$0xff]
    %v538 = vld [vmem:[#allocation5 + $0xc68] sm:$0xff]
    %v539 = vld [vmem:[#allocation5 + $0xc70] sm:$0xff]
    %v540 = vld [vmem:[#allocation5 + $0xc78] sm:$0xff]
    %v541 = vld [vmem:[#allocation5 + $0xc80] sm:$0xff]
    %v542 = vld [vmem:[#allocation5 + $0xc88] sm:$0xff]
    %v543 = vld [vmem:[#allocation5 + $0xc90] sm:$0xff]
    %v544 = vld [vmem:[#allocation5 + $0xc98] sm:$0xff]
    %v545 = vld [vmem:[#allocation5 + $0xca0] sm:$0xff]
    %v546 = vld [vmem:[#allocation5 + $0xca8] sm:$0xff]
    %v547 = vld [vmem:[#allocation5 + $0xcb0] sm:$0xff]
    %v548 = vld [vmem:[#allocation5 + $0xcb8] sm:$0xff]
    %v549 = vld [vmem:[#allocation5 + $0xcc0] sm:$0xff]
    %v550 = vld [vmem:[#allocation5 + $0xcc8] sm:$0xff]
    %v551 = vld [vmem:[#allocation5 + $0xcd0] sm:$0xff]
    %v552 = vld [vmem:[#allocation5 + $0xcd8] sm:$0xff]
    %v553 = vld [vmem:[#allocation5 + $0xce0] sm:$0xff]
    %v554 = vld [vmem:[#allocation5 + $0xce8] sm:$0xff]
    %v555 = vld [vmem:[#allocation5 + $0xcf0] sm:$0xff]
    %v556 = vld [vmem:[#allocation5 + $0xcf8] sm:$0xff]
    %v557 = vld [vmem:[#allocation5 + $0xd00] sm:$0xff]
    %v558 = vld [vmem:[#allocation5 + $0xd08] sm:$0xff]
    %v559 = vld [vmem:[#allocation5 + $0xd10] sm:$0xff]
    %v560 = vld [vmem:[#allocation5 + $0xd18] sm:$0xff]
    %v561 = vld [vmem:[#allocation5 + $0xd20] sm:$0xff]
    %v562 = vld [vmem:[#allocation5 + $0xd28] sm:$0xff]
    %v563 = vld [vmem:[#allocation5 + $0xd30] sm:$0xff]
    %v564 = vld [vmem:[#allocation5 + $0xd38] sm:$0xff]
    %v565 = vld [vmem:[#allocation5 + $0xd40] sm:$0xff]
    %v566 = vld [vmem:[#allocation5 + $0xd48] sm:$0xff]
    %v567 = vld [vmem:[#allocation5 + $0xd50] sm:$0xff]
    %v568 = vld [vmem:[#allocation5 + $0xd58] sm:$0xff]
    %v569 = vld [vmem:[#allocation5 + $0xd60] sm:$0xff]
    %v570 = vld [vmem:[#allocation5 + $0xd68] sm:$0xff]
    %v571 = vld [vmem:[#allocation5 + $0xd70] sm:$0xff]
    %v572 = vld [vmem:[#allocation5 + $0xd78] sm:$0xff]
    %v573 = vld [vmem:[#allocation5 + $0xd80] sm:$0xff]
    %v574 = vld [vmem:[#allocation5 + $0xd88] sm:$0xff]
    %v575 = vld [vmem:[#allocation5 + $0xd90] sm:$0xff]
    %v576 = vld [vmem:[#allocation5 + $0xd98] sm:$0xff]
    %v577 = vld [vmem:[#allocation5 + $0xda0] sm:$0xff]
    %v578 = vld [vmem:[#allocation5 + $0xda8] sm:$0xff]
    %v579 = vld [vmem:[#allocation5 + $0xdb0] sm:$0xff]
    %v580 = vld [vmem:[#allocation5 + $0xdb8] sm:$0xff]
    %v581 = vld [vmem:[#allocation5 + $0xdc0] sm:$0xff]
    %v582 = vld [vmem:[#allocation5 + $0xdc8] sm:$0xff]
    %v583 = vld [vmem:[#allocation5 + $0xdd0] sm:$0xff]
    %v584 = vld [vmem:[#allocation5 + $0xdd8] sm:$0xff]
    %v585 = vld [vmem:[#allocation5 + $0xde0] sm:$0xff]
    %v586 = vld [vmem:[#allocation5 + $0xde8] sm:$0xff]
    %v587 = vld [vmem:[#allocation5 + $0xdf0] sm:$0xff]
    %v588 = vld [vmem:[#allocation5 + $0xdf8] sm:$0xff]
    %v589 = vld [vmem:[#allocation5 + $0xe00] sm:$0xff]
    %v590 = vld [vmem:[#allocation5 + $0xe08] sm:$0xff]
    %v591 = vld [vmem:[#allocation5 + $0xe10] sm:$0xff]
    %v592 = vld [vmem:[#allocation5 + $0xe18] sm:$0xff]
    %v593 = vld [vmem:[#allocation5 + $0xe20] sm:$0xff]
    %v594 = vld [vmem:[#allocation5 + $0xe28] sm:$0xff]
    %v595 = vld [vmem:[#allocation5 + $0xe30] sm:$0xff]
    %v596 = vld [vmem:[#allocation5 + $0xe38] sm:$0xff]
    %v597 = vld [vmem:[#allocation5 + $0xe40] sm:$0xff]
    %v598 = vld [vmem:[#allocation5 + $0xe48] sm:$0xff]
    %v599 = vld [vmem:[#allocation5 + $0xe50] sm:$0xff]
    %v600 = vld [vmem:[#allocation5 + $0xe58] sm:$0xff]
    %v601 = vld [vmem:[#allocation5 + $0xe60] sm:$0xff]
    %v602 = vld [vmem:[#allocation5 + $0xe68] sm:$0xff]
    %v603 = vld [vmem:[#allocation5 + $0xe70] sm:$0xff]
    %v604 = vld [vmem:[#allocation5 + $0xe78] sm:$0xff]
    %v605 = vld [vmem:[#allocation5 + $0xe80] sm:$0xff]
    %v606 = vld [vmem:[#allocation5 + $0xe88] sm:$0xff]
    %v607 = vld [vmem:[#allocation5 + $0xe90] sm:$0xff]
    %v608 = vld [vmem:[#allocation5 + $0xe98] sm:$0xff]
    %v609 = vld [vmem:[#allocation5 + $0xea0] sm:$0xff]
    %v610 = vld [vmem:[#allocation5 + $0xea8] sm:$0xff]
    %v611 = vld [vmem:[#allocation5 + $0xeb0] sm:$0xff]
    %v612 = vld [vmem:[#allocation5 + $0xeb8] sm:$0xff]
    %v613 = vld [vmem:[#allocation5 + $0xec0] sm:$0xff]
    %v614 = vld [vmem:[#allocation5 + $0xec8] sm:$0xff]
    %v615 = vld [vmem:[#allocation5 + $0xed0] sm:$0xff]
    %v616 = vld [vmem:[#allocation5 + $0xed8] sm:$0xff]
    %v617 = vld [vmem:[#allocation5 + $0xee0] sm:$0xff]
    %v618 = vld [vmem:[#allocation5 + $0xee8] sm:$0xff]
    %v619 = vld [vmem:[#allocation5 + $0xef0] sm:$0xff]
    %v620 = vld [vmem:[#allocation5 + $0xef8] sm:$0xff]
    %v621 = vld [vmem:[#allocation5 + $0xf00] sm:$0xff]
    %v622 = vld [vmem:[#allocation5 + $0xf08] sm:$0xff]
    %v623 = vld [vmem:[#allocation5 + $0xf10] sm:$0xff]
    %v624 = vld [vmem:[#allocation5 + $0xf18] sm:$0xff]
    %v625 = vld [vmem:[#allocation5 + $0xf20] sm:$0xff]
    %v626 = vld [vmem:[#allocation5 + $0xf28] sm:$0xff]
    %v627 = vld [vmem:[#allocation5 + $0xf30] sm:$0xff]
    %v628 = vld [vmem:[#allocation5 + $0xf38] sm:$0xff]
    %v629 = vld [vmem:[#allocation5 + $0xf40] sm:$0xff]
    %v630 = vld [vmem:[#allocation5 + $0xf48] sm:$0xff]
    %v631 = vld [vmem:[#allocation5 + $0xf50] sm:$0xff]
    %v632 = vld [vmem:[#allocation5 + $0xf58] sm:$0xff]
    %v633 = vld [vmem:[#allocation5 + $0xf60] sm:$0xff]
    %v634 = vld [vmem:[#allocation5 + $0xf68] sm:$0xff]
    %v635 = vld [vmem:[#allocation5 + $0xf70] sm:$0xff]
    %v636 = vld [vmem:[#allocation5 + $0xf78] sm:$0xff]
    %v637 = vld [vmem:[#allocation5 + $0xf80] sm:$0xff]
    %v638 = vld [vmem:[#allocation5 + $0xf88] sm:$0xff]
    %v639 = vld [vmem:[#allocation5 + $0xf90] sm:$0xff]
    %v640 = vld [vmem:[#allocation5 + $0xf98] sm:$0xff]
    %v641 = vld [vmem:[#allocation5 + $0xfa0] sm:$0xff]
    %v642 = vld [vmem:[#allocation5 + $0xfa8] sm:$0xff]
    %v643 = vld [vmem:[#allocation5 + $0xfb0] sm:$0xff]
    %v644 = vld [vmem:[#allocation5 + $0xfb8] sm:$0xff]
    %v645 = vld [vmem:[#allocation5 + $0xfc0] sm:$0xff]
    %v646 = vld [vmem:[#allocation5 + $0xfc8] sm:$0xff]
    %v647 = vld [vmem:[#allocation5 + $0xfd0] sm:$0xff]
    %v648 = vld [vmem:[#allocation5 + $0xfd8] sm:$0xff]
    %v649 = vld [vmem:[#allocation5 + $0xfe0] sm:$0xff]
    %v650 = vld [vmem:[#allocation5 + $0xfe8] sm:$0xff]
    %v651 = vld [vmem:[#allocation5 + $0xff0] sm:$0xff]
    %v652 = vld [vmem:[#allocation5 + $0xff8] sm:$0xff]
    %v653 = vld [vmem:[#allocation5 + $0x1000] sm:$0xff]
    %v654 = vld [vmem:[#allocation5 + $0x1008] sm:$0xff]
    %v655 = vld [vmem:[#allocation5 + $0x1010] sm:$0xff]
    %v656 = vld [vmem:[#allocation5 + $0x1018] sm:$0xff]
    %v657 = vld [vmem:[#allocation5 + $0x1020] sm:$0xff]
    %v658 = vld [vmem:[#allocation5 + $0x1028] sm:$0xff]
    %v659 = vld [vmem:[#allocation5 + $0x1030] sm:$0xff]
    %v660 = vld [vmem:[#allocation5 + $0x1038] sm:$0xff]
    %v661 = vld [vmem:[#allocation5 + $0x1040] sm:$0xff]
    %v662 = vld [vmem:[#allocation5 + $0x1048] sm:$0xff]
    %v663 = vld [vmem:[#allocation5 + $0x1050] sm:$0xff]
    %v664 = vld [vmem:[#allocation5 + $0x1058] sm:$0xff]
    %v665 = vld [vmem:[#allocation5 + $0x1060] sm:$0xff]
    %v666 = vld [vmem:[#allocation5 + $0x1068] sm:$0xff]
    %v667 = vld [vmem:[#allocation5 + $0x1070] sm:$0xff]
    %v668 = vld [vmem:[#allocation5 + $0x1078] sm:$0xff]
    %v669 = vld [vmem:[#allocation5 + $0x1080] sm:$0xff]
    %v670 = vld [vmem:[#allocation5 + $0x1088] sm:$0xff]
    %v671 = vld [vmem:[#allocation5 + $0x1090] sm:$0xff]
    %v672 = vld [vmem:[#allocation5 + $0x1098] sm:$0xff]
    %v673 = vld [vmem:[#allocation5 + $0x10a0] sm:$0xff]
    %v674 = vld [vmem:[#allocation5 + $0x10a8] sm:$0xff]
    %v675 = vld [vmem:[#allocation5 + $0x10b0] sm:$0xff]
    %v676 = vld [vmem:[#allocation5 + $0x10b8] sm:$0xff]
    %v677 = vld [vmem:[#allocation5 + $0x10c0] sm:$0xff]
    %v678 = vld [vmem:[#allocation5 + $0x10c8] sm:$0xff]
    %v679 = vld [vmem:[#allocation5 + $0x10d0] sm:$0xff]
    %v680 = vld [vmem:[#allocation5 + $0x10d8] sm:$0xff]
    %v681 = vld [vmem:[#allocation5 + $0x10e0] sm:$0xff]
    %v682 = vld [vmem:[#allocation5 + $0x10e8] sm:$0xff]
    %v683 = vld [vmem:[#allocation5 + $0x10f0] sm:$0xff]
    %v684 = vld [vmem:[#allocation5 + $0x10f8] sm:$0xff]
    %v685 = vld [vmem:[#allocation5 + $0x1100] sm:$0xff]
    %v686 = vld [vmem:[#allocation5 + $0x1108] sm:$0xff]
    %v687 = vld [vmem:[#allocation5 + $0x1110] sm:$0xff]
    %v688 = vld [vmem:[#allocation5 + $0x1118] sm:$0xff]
    %v689 = vld [vmem:[#allocation5 + $0x1120] sm:$0xff]
    %v690 = vld [vmem:[#allocation5 + $0x1128] sm:$0xff]
    %v691 = vld [vmem:[#allocation5 + $0x1130] sm:$0xff]
    %v692 = vld [vmem:[#allocation5 + $0x1138] sm:$0xff]
    %v693 = vld [vmem:[#allocation5 + $0x1140] sm:$0xff]
    %v694 = vld [vmem:[#allocation5 + $0x1148] sm:$0xff]
    %v695 = vld [vmem:[#allocation5 + $0x1150] sm:$0xff]
    %v696 = vld [vmem:[#allocation5 + $0x1158] sm:$0xff]
    %v697 = vld [vmem:[#allocation5 + $0x1160] sm:$0xff]
    %v698 = vld [vmem:[#allocation5 + $0x1168] sm:$0xff]
    %v699 = vld [vmem:[#allocation5 + $0x1170] sm:$0xff]
    %v700 = vld [vmem:[#allocation5 + $0x1178] sm:$0xff]
    %v701 = vld [vmem:[#allocation5 + $0x1180] sm:$0xff]
    %v702 = vld [vmem:[#allocation5 + $0x1188] sm:$0xff]
    %v703 = vld [vmem:[#allocation5 + $0x1190] sm:$0xff]
    %v704 = vld [vmem:[#allocation5 + $0x1198] sm:$0xff]
    %v705 = vld [vmem:[#allocation5 + $0x11a0] sm:$0xff]
    %v706 = vld [vmem:[#allocation5 + $0x11a8] sm:$0xff]
    %v707 = vld [vmem:[#allocation5 + $0x11b0] sm:$0xff]
    %v708 = vld [vmem:[#allocation5 + $0x11b8] sm:$0xff]
    %v709 = vld [vmem:[#allocation5 + $0x11c0] sm:$0xff]
    %v710 = vld [vmem:[#allocation5 + $0x11c8] sm:$0xff]
    %v711 = vld [vmem:[#allocation5 + $0x11d0] sm:$0xff]
    %v712 = vld [vmem:[#allocation5 + $0x11d8] sm:$0xff]
    %v713 = vld [vmem:[#allocation5 + $0x11e0] sm:$0xff]
    %v714 = vld [vmem:[#allocation5 + $0x11e8] sm:$0xff]
    %v715 = vld [vmem:[#allocation5 + $0x11f0] sm:$0xff]
    %v716 = vld [vmem:[#allocation5 + $0x11f8] sm:$0xff]
    %v717 = vld [vmem:[#allocation5 + $0x1200] sm:$0xff]
    %v718 = vld [vmem:[#allocation5 + $0x1208] sm:$0xff]
    %v719 = vld [vmem:[#allocation5 + $0x1210] sm:$0xff]
    %v720 = vld [vmem:[#allocation5 + $0x1218] sm:$0xff]
    %v721 = vld [vmem:[#allocation5 + $0x1220] sm:$0xff]
    %v722 = vld [vmem:[#allocation5 + $0x1228] sm:$0xff]
    %v723 = vld [vmem:[#allocation5 + $0x1230] sm:$0xff]
    %v724 = vld [vmem:[#allocation5 + $0x1238] sm:$0xff]
    %v725 = vld [vmem:[#allocation5 + $0x1240] sm:$0xff]
    %v726 = vld [vmem:[#allocation5 + $0x1248] sm:$0xff]
    %v727 = vld [vmem:[#allocation5 + $0x1250] sm:$0xff]
    %v728 = vld [vmem:[#allocation5 + $0x1258] sm:$0xff]
    %v729 = vld [vmem:[#allocation7] sm:$0xf]
    %v731 = vlaneseq
    %v732 = vshrl.u32 %v731, 7
    %v733 = vsub.s32 0, %v732
    %v734 = vrot.slane %v729, %v733
    %v735 = vlaneseq
    %v736 = vshrl.u32 %v735, 7
    %v737 = vsub.s32 1, %v736
    %v738 = vrot.slane %v729, %v737
    %v739 = vlaneseq
    %v740 = vshrl.u32 %v739, 7
    %v741 = vsub.s32 2, %v740
    %v742 = vrot.slane %v729, %v741
    %v743 = vlaneseq
    %v744 = vshrl.u32 %v743, 7
    %v745 = vsub.s32 3, %v744
    %v746 = vrot.slane %v729, %v745
    %v1339 = vunpack.c.l.b16 %v141
    %v1340 = vunpack.c.h.b16 %v141
    %v1341 = vunpack.c.l.b16 %v142
    %v1342 = vunpack.c.h.b16 %v142
    %v1343 = vunpack.c.l.b16 %v143
    %v1344 = vunpack.c.h.b16 %v143
    %v1345 = vunpack.c.l.b16 %v144
    %v1346 = vunpack.c.h.b16 %v144
    %v1347 = vunpack.c.l.b16 %v145
    %v1348 = vunpack.c.h.b16 %v145
    %v1349 = vunpack.c.l.b16 %v146
    %v1350 = vunpack.c.h.b16 %v146
    %v1351 = vunpack.c.l.b16 %v147
    %v1352 = vunpack.c.h.b16 %v147
    %v1353 = vunpack.c.l.b16 %v148
    %v1354 = vunpack.c.h.b16 %v148
    %v1355 = vunpack.c.l.b16 %v149
    %v1356 = vunpack.c.h.b16 %v149
    %v1357 = vunpack.c.l.b16 %v150
    %v1358 = vunpack.c.h.b16 %v150
    %v1359 = vunpack.c.l.b16 %v151
    %v1360 = vunpack.c.h.b16 %v151
    %v1361 = vunpack.c.l.b16 %v152
    %v1362 = vunpack.c.h.b16 %v152
    %v1363 = vunpack.c.l.b16 %v153
    %v1364 = vunpack.c.h.b16 %v153
    %v1365 = vunpack.c.l.b16 %v154
    %v1366 = vunpack.c.h.b16 %v154
    %v1367 = vunpack.c.l.b16 %v155
    %v1368 = vunpack.c.h.b16 %v155
    %v1369 = vunpack.c.l.b16 %v156
    %v1370 = vunpack.c.h.b16 %v156
    %v1371 = vunpack.c.l.b16 %v157
    %v1372 = vunpack.c.h.b16 %v157
    %v1373 = vunpack.c.l.b16 %v158
    %v1374 = vunpack.c.h.b16 %v158
    %v1375 = vunpack.c.l.b16 %v159
    %v1376 = vunpack.c.h.b16 %v159
    %v1377 = vunpack.c.l.b16 %v160
    %v1378 = vunpack.c.h.b16 %v160
    %v1379 = vunpack.c.l.b16 %v161
    %v1380 = vunpack.c.h.b16 %v161
    %v1381 = vunpack.c.l.b16 %v162
    %v1382 = vunpack.c.h.b16 %v162
    %v1383 = vunpack.c.l.b16 %v163
    %v1384 = vunpack.c.h.b16 %v163
    %v1385 = vunpack.c.l.b16 %v164
    %v1386 = vunpack.c.h.b16 %v164
    %v1387 = vunpack.c.l.b16 %v165
    %v1388 = vunpack.c.h.b16 %v165
    %v1389 = vunpack.c.l.b16 %v166
    %v1390 = vunpack.c.h.b16 %v166
    %v1391 = vunpack.c.l.b16 %v167
    %v1392 = vunpack.c.h.b16 %v167
    %v1393 = vunpack.c.l.b16 %v168
    %v1394 = vunpack.c.h.b16 %v168
    %v1395 = vunpack.c.l.b16 %v169
    %v1396 = vunpack.c.h.b16 %v169
    %v1397 = vunpack.c.l.b16 %v170
    %v1398 = vunpack.c.h.b16 %v170
    %v1399 = vunpack.c.l.b16 %v171
    %v1400 = vunpack.c.h.b16 %v171
    %v1401 = vunpack.c.l.b16 %v172
    %v1402 = vunpack.c.h.b16 %v172
    %v1403 = vunpack.c.l.b16 %v173
    %v1404 = vunpack.c.h.b16 %v173
    %v1405 = vunpack.c.l.b16 %v174
    %v1406 = vunpack.c.h.b16 %v174
    %v1407 = vunpack.c.l.b16 %v175
    %v1408 = vunpack.c.h.b16 %v175
    %v1409 = vunpack.c.l.b16 %v176
    %v1410 = vunpack.c.h.b16 %v176
    %v1411 = vunpack.c.l.b16 %v177
    %v1412 = vunpack.c.h.b16 %v177
    %v1413 = vunpack.c.l.b16 %v178
    %v1414 = vunpack.c.h.b16 %v178
    %v1415 = vunpack.c.l.b16 %v179
    %v1416 = vunpack.c.h.b16 %v179
    %v1417 = vunpack.c.l.b16 %v180
    %v1418 = vunpack.c.h.b16 %v180
    %v1419 = vunpack.c.l.b16 %v181
    %v1420 = vunpack.c.h.b16 %v181
    %v1421 = vunpack.c.l.b16 %v182
    %v1422 = vunpack.c.h.b16 %v182
    %v1423 = vunpack.c.l.b16 %v183
    %v1424 = vunpack.c.h.b16 %v183
    %v1425 = vunpack.c.l.b16 %v184
    %v1426 = vunpack.c.h.b16 %v184
    %v1427 = vunpack.c.l.b16 %v185
    %v1428 = vunpack.c.h.b16 %v185
    %v1429 = vunpack.c.l.b16 %v186
    %v1430 = vunpack.c.h.b16 %v186
    %v1431 = vunpack.c.l.b16 %v187
    %v1432 = vunpack.c.h.b16 %v187
    %v1433 = vunpack.c.l.b16 %v188
    %v1434 = vunpack.c.h.b16 %v188
    %v1435 = vunpack.c.l.b16 %v189
    %v1436 = vunpack.c.h.b16 %v189
    %v1437 = vunpack.c.l.b16 %v190
    %v1438 = vunpack.c.h.b16 %v190
    %v1439 = vunpack.c.l.b16 %v191
    %v1440 = vunpack.c.h.b16 %v191
    %v1441 = vunpack.c.l.b16 %v192
    %v1442 = vunpack.c.h.b16 %v192
    %v1443 = vunpack.c.l.b16 %v193
    %v1444 = vunpack.c.h.b16 %v193
    %v1445 = vunpack.c.l.b16 %v194
    %v1446 = vunpack.c.h.b16 %v194
    %v1447 = vunpack.c.l.b16 %v195
    %v1448 = vunpack.c.h.b16 %v195
    %v1449 = vunpack.c.l.b16 %v196
    %v1450 = vunpack.c.h.b16 %v196
    %v1451 = vunpack.c.l.b16 %v197
    %v1452 = vunpack.c.h.b16 %v197
    %v1453 = vunpack.c.l.b16 %v198
    %v1454 = vunpack.c.h.b16 %v198
    %v1455 = vunpack.c.l.b16 %v199
    %v1456 = vunpack.c.h.b16 %v199
    %v1457 = vunpack.c.l.b16 %v200
    %v1458 = vunpack.c.h.b16 %v200
    %v1459 = vunpack.c.l.b16 %v201
    %v1460 = vunpack.c.h.b16 %v201
    %v1461 = vunpack.c.l.b16 %v202
    %v1462 = vunpack.c.h.b16 %v202
    %v1463 = vunpack.c.l.b16 %v203
    %v1464 = vunpack.c.h.b16 %v203
    %v1465 = vunpack.c.l.b16 %v204
    %v1466 = vunpack.c.h.b16 %v204
    %v1467 = vunpack.c.l.b16 %v205
    %v1468 = vunpack.c.h.b16 %v205
    %v1469 = vunpack.c.l.b16 %v206
    %v1470 = vunpack.c.h.b16 %v206
    %v1471 = vunpack.c.l.b16 %v207
    %v1472 = vunpack.c.h.b16 %v207
    %v1473 = vunpack.c.l.b16 %v208
    %v1474 = vunpack.c.h.b16 %v208
    %v1475 = vunpack.c.l.b16 %v209
    %v1476 = vunpack.c.h.b16 %v209
    %v1477 = vunpack.c.l.b16 %v210
    %v1478 = vunpack.c.h.b16 %v210
    %v1479 = vunpack.c.l.b16 %v211
    %v1480 = vunpack.c.h.b16 %v211
    %v1481 = vunpack.c.l.b16 %v212
    %v1482 = vunpack.c.h.b16 %v212
    %v1483 = vunpack.c.l.b16 %v213
    %v1484 = vunpack.c.h.b16 %v213
    %v1485 = vunpack.c.l.b16 %v214
    %v1486 = vunpack.c.h.b16 %v214
    %v1487 = vunpack.c.l.b16 %v215
    %v1488 = vunpack.c.h.b16 %v215
    %v1489 = vunpack.c.l.b16 %v216
    %v1490 = vunpack.c.h.b16 %v216
    %v1491 = vunpack.c.l.b16 %v217
    %v1492 = vunpack.c.h.b16 %v217
    %v1493 = vunpack.c.l.b16 %v218
    %v1494 = vunpack.c.h.b16 %v218
    %v1495 = vunpack.c.l.b16 %v219
    %v1496 = vunpack.c.h.b16 %v219
    %v1497 = vunpack.c.l.b16 %v220
    %v1498 = vunpack.c.h.b16 %v220
    %v1499 = vunpack.c.l.b16 %v221
    %v1500 = vunpack.c.h.b16 %v221
    %v1501 = vunpack.c.l.b16 %v222
    %v1502 = vunpack.c.h.b16 %v222
    %v1503 = vunpack.c.l.b16 %v223
    %v1504 = vunpack.c.h.b16 %v223
    %v1505 = vunpack.c.l.b16 %v224
    %v1506 = vunpack.c.h.b16 %v224
    %v1507 = vunpack.c.l.b16 %v225
    %v1508 = vunpack.c.h.b16 %v225
    %v1509 = vunpack.c.l.b16 %v226
    %v1510 = vunpack.c.h.b16 %v226
    %v1511 = vunpack.c.l.b16 %v227
    %v1512 = vunpack.c.h.b16 %v227
    %v1513 = vunpack.c.l.b16 %v228
    %v1514 = vunpack.c.h.b16 %v228
    %v1515 = vunpack.c.l.b16 %v229
    %v1516 = vunpack.c.h.b16 %v229
    %v1517 = vunpack.c.l.b16 %v230
    %v1518 = vunpack.c.h.b16 %v230
    %v1519 = vunpack.c.l.b16 %v231
    %v1520 = vunpack.c.h.b16 %v231
    %v1521 = vunpack.c.l.b16 %v232
    %v1522 = vunpack.c.h.b16 %v232
    %v1523 = vunpack.c.l.b16 %v233
    %v1524 = vunpack.c.h.b16 %v233
    %v1525 = vunpack.c.l.b16 %v234
    %v1526 = vunpack.c.h.b16 %v234
    %v1527 = vunpack.c.l.b16 %v235
    %v1528 = vunpack.c.h.b16 %v235
    %v1529 = vunpack.c.l.b16 %v236
    %v1530 = vunpack.c.h.b16 %v236
    %v1531 = vunpack.c.l.b16 %v237
    %v1532 = vunpack.c.h.b16 %v237
    %v1533 = vunpack.c.l.b16 %v238
    %v1534 = vunpack.c.h.b16 %v238
    %v1535 = vunpack.c.l.b16 %v239
    %v1536 = vunpack.c.h.b16 %v239
    %v1537 = vunpack.c.l.b16 %v240
    %v1538 = vunpack.c.h.b16 %v240
    %v1539 = vunpack.c.l.b16 %v241
    %v1540 = vunpack.c.h.b16 %v241
    %v1541 = vunpack.c.l.b16 %v242
    %v1542 = vunpack.c.h.b16 %v242
    %v1543 = vunpack.c.l.b16 %v243
    %v1544 = vunpack.c.h.b16 %v243
    %v1545 = vunpack.c.l.b16 %v244
    %v1546 = vunpack.c.h.b16 %v244
    %v1547 = vunpack.c.l.b16 %v245
    %v1548 = vunpack.c.h.b16 %v245
    %v1549 = vunpack.c.l.b16 %v246
    %v1550 = vunpack.c.h.b16 %v246
    %v1551 = vunpack.c.l.b16 %v247
    %v1552 = vunpack.c.h.b16 %v247
    %v1553 = vunpack.c.l.b16 %v248
    %v1554 = vunpack.c.h.b16 %v248
    %v1555 = vunpack.c.l.b16 %v249
    %v1556 = vunpack.c.h.b16 %v249
    %v1557 = vunpack.c.l.b16 %v250
    %v1558 = vunpack.c.h.b16 %v250
    %v1559 = vunpack.c.l.b16 %v251
    %v1560 = vunpack.c.h.b16 %v251
    %v1561 = vunpack.c.l.b16 %v252
    %v1562 = vunpack.c.h.b16 %v252
    %v1563 = vunpack.c.l.b16 %v253
    %v1564 = vunpack.c.h.b16 %v253
    %v1565 = vunpack.c.l.b16 %v254
    %v1566 = vunpack.c.h.b16 %v254
    %v1567 = vunpack.c.l.b16 %v255
    %v1568 = vunpack.c.h.b16 %v255
    %v1569 = vunpack.c.l.b16 %v256
    %v1570 = vunpack.c.h.b16 %v256
    %v1571 = vunpack.c.l.b16 %v257
    %v1572 = vunpack.c.h.b16 %v257
    %v1573 = vunpack.c.l.b16 %v258
    %v1574 = vunpack.c.h.b16 %v258
    %v1575 = vunpack.c.l.b16 %v259
    %v1576 = vunpack.c.h.b16 %v259
    %v1577 = vunpack.c.l.b16 %v260
    %v1578 = vunpack.c.h.b16 %v260
    %v1579 = vunpack.c.l.b16 %v261
    %v1580 = vunpack.c.h.b16 %v261
    %v1581 = vunpack.c.l.b16 %v262
    %v1582 = vunpack.c.h.b16 %v262
    %v1583 = vunpack.c.l.b16 %v263
    %v1584 = vunpack.c.h.b16 %v263
    %v1585 = vunpack.c.l.b16 %v264
    %v1586 = vunpack.c.h.b16 %v264
    %v1587 = vunpack.c.l.b16 %v265
    %v1588 = vunpack.c.h.b16 %v265
    %v1589 = vunpack.c.l.b16 %v266
    %v1590 = vunpack.c.h.b16 %v266
    %v1591 = vunpack.c.l.b16 %v267
    %v1592 = vunpack.c.h.b16 %v267
    %v1593 = vunpack.c.l.b16 %v268
    %v1594 = vunpack.c.h.b16 %v268
    %v1595 = vunpack.c.l.b16 %v269
    %v1596 = vunpack.c.h.b16 %v269
    %v1597 = vunpack.c.l.b16 %v270
    %v1598 = vunpack.c.h.b16 %v270
    %v1599 = vunpack.c.l.b16 %v271
    %v1600 = vunpack.c.h.b16 %v271
    %v1601 = vunpack.c.l.b16 %v272
    %v1602 = vunpack.c.h.b16 %v272
    %v1603 = vunpack.c.l.b16 %v273
    %v1604 = vunpack.c.h.b16 %v273
    %v1605 = vunpack.c.l.b16 %v274
    %v1606 = vunpack.c.h.b16 %v274
    %v1607 = vunpack.c.l.b16 %v275
    %v1608 = vunpack.c.h.b16 %v275
    %v1609 = vunpack.c.l.b16 %v276
    %v1610 = vunpack.c.h.b16 %v276
    %v1611 = vunpack.c.l.b16 %v277
    %v1612 = vunpack.c.h.b16 %v277
    %v1613 = vunpack.c.l.b16 %v278
    %v1614 = vunpack.c.h.b16 %v278
    %v1615 = vunpack.c.l.b16 %v279
    %v1616 = vunpack.c.h.b16 %v279
    %v1617 = vunpack.c.l.b16 %v280
    %v1618 = vunpack.c.h.b16 %v280
    %v1619 = vunpack.c.l.b16 %v281
    %v1620 = vunpack.c.h.b16 %v281
    %v1621 = vunpack.c.l.b16 %v282
    %v1622 = vunpack.c.h.b16 %v282
    %v1623 = vunpack.c.l.b16 %v283
    %v1624 = vunpack.c.h.b16 %v283
    %v1625 = vunpack.c.l.b16 %v284
    %v1626 = vunpack.c.h.b16 %v284
    %v1627 = vunpack.c.l.b16 %v285
    %v1628 = vunpack.c.h.b16 %v285
    %v1629 = vunpack.c.l.b16 %v286
    %v1630 = vunpack.c.h.b16 %v286
    %v1631 = vunpack.c.l.b16 %v287
    %v1632 = vunpack.c.h.b16 %v287
    %v1633 = vunpack.c.l.b16 %v288
    %v1634 = vunpack.c.h.b16 %v288
    %v1635 = vunpack.c.l.b16 %v289
    %v1636 = vunpack.c.h.b16 %v289
    %v1637 = vunpack.c.l.b16 %v290
    %v1638 = vunpack.c.h.b16 %v290
    %v1639 = vunpack.c.l.b16 %v291
    %v1640 = vunpack.c.h.b16 %v291
    %v1641 = vunpack.c.l.b16 %v292
    %v1642 = vunpack.c.h.b16 %v292
    %v1643 = vunpack.c.l.b16 %v293
    %v1644 = vunpack.c.h.b16 %v293
    %v1645 = vunpack.c.l.b16 %v294
    %v1646 = vunpack.c.h.b16 %v294
    %v1647 = vunpack.c.l.b16 %v295
    %v1648 = vunpack.c.h.b16 %v295
    %v1649 = vunpack.c.l.b16 %v296
    %v1650 = vunpack.c.h.b16 %v296
    %v1651 = vunpack.c.l.b16 %v297
    %v1652 = vunpack.c.h.b16 %v297
    %v1653 = vunpack.c.l.b16 %v298
    %v1654 = vunpack.c.h.b16 %v298
    %v1655 = vunpack.c.l.b16 %v299
    %v1656 = vunpack.c.h.b16 %v299
    %v1657 = vunpack.c.l.b16 %v300
    %v1658 = vunpack.c.h.b16 %v300
    %v1659 = vunpack.c.l.b16 %v301
    %v1660 = vunpack.c.h.b16 %v301
    %v1661 = vunpack.c.l.b16 %v302
    %v1662 = vunpack.c.h.b16 %v302
    %v1663 = vunpack.c.l.b16 %v303
    %v1664 = vunpack.c.h.b16 %v303
    %v1665 = vunpack.c.l.b16 %v304
    %v1666 = vunpack.c.h.b16 %v304
    %v1667 = vunpack.c.l.b16 %v305
    %v1668 = vunpack.c.h.b16 %v305
    %v1669 = vunpack.c.l.b16 %v306
    %v1670 = vunpack.c.h.b16 %v306
    %v1671 = vunpack.c.l.b16 %v307
    %v1672 = vunpack.c.h.b16 %v307
    %v1673 = vunpack.c.l.b16 %v308
    %v1674 = vunpack.c.h.b16 %v308
    %v1675 = vunpack.c.l.b16 %v309
    %v1676 = vunpack.c.h.b16 %v309
    %v1677 = vunpack.c.l.b16 %v310
    %v1678 = vunpack.c.h.b16 %v310
    %v1679 = vunpack.c.l.b16 %v311
    %v1680 = vunpack.c.h.b16 %v311
    %v1681 = vunpack.c.l.b16 %v312
    %v1682 = vunpack.c.h.b16 %v312
    %v1683 = vunpack.c.l.b16 %v313
    %v1684 = vunpack.c.h.b16 %v313
    %v1685 = vunpack.c.l.b16 %v314
    %v1686 = vunpack.c.h.b16 %v314
    %v1687 = vunpack.c.l.b16 %v315
    %v1688 = vunpack.c.h.b16 %v315
    %v1689 = vunpack.c.l.b16 %v316
    %v1690 = vunpack.c.h.b16 %v316
    %v1691 = vunpack.c.l.b16 %v317
    %v1692 = vunpack.c.h.b16 %v317
    %v1693 = vunpack.c.l.b16 %v318
    %v1694 = vunpack.c.h.b16 %v318
    %v1695 = vunpack.c.l.b16 %v319
    %v1696 = vunpack.c.h.b16 %v319
    %v1697 = vunpack.c.l.b16 %v320
    %v1698 = vunpack.c.h.b16 %v320
    %v1699 = vunpack.c.l.b16 %v321
    %v1700 = vunpack.c.h.b16 %v321
    %v1701 = vunpack.c.l.b16 %v322
    %v1702 = vunpack.c.h.b16 %v322
    %v1703 = vunpack.c.l.b16 %v323
    %v1704 = vunpack.c.h.b16 %v323
    %v1705 = vunpack.c.l.b16 %v324
    %v1706 = vunpack.c.h.b16 %v324
    %v1707 = vunpack.c.l.b16 %v325
    %v1708 = vunpack.c.h.b16 %v325
    %v1709 = vunpack.c.l.b16 %v326
    %v1710 = vunpack.c.h.b16 %v326
    %v1711 = vunpack.c.l.b16 %v327
    %v1712 = vunpack.c.h.b16 %v327
    %v1713 = vunpack.c.l.b16 %v328
    %v1714 = vunpack.c.h.b16 %v328
    %v1715 = vunpack.c.l.b16 %v329
    %v1716 = vunpack.c.h.b16 %v329
    %v1717 = vunpack.c.l.b16 %v330
    %v1718 = vunpack.c.h.b16 %v330
    %v1719 = vunpack.c.l.b16 %v331
    %v1720 = vunpack.c.h.b16 %v331
    %v1721 = vunpack.c.l.b16 %v332
    %v1722 = vunpack.c.h.b16 %v332
    %v1723 = vunpack.c.l.b16 %v333
    %v1724 = vunpack.c.h.b16 %v333
    %v1725 = vunpack.c.l.b16 %v334
    %v1726 = vunpack.c.h.b16 %v334
    %v1727 = vunpack.c.l.b16 %v335
    %v1728 = vunpack.c.h.b16 %v335
    %v1729 = vunpack.c.l.b16 %v336
    %v1730 = vunpack.c.h.b16 %v336
    %v1731 = vunpack.c.l.b16 %v337
    %v1732 = vunpack.c.h.b16 %v337
    %v1733 = vunpack.c.l.b16 %v338
    %v1734 = vunpack.c.h.b16 %v338
    %v1735 = vunpack.c.l.b16 %v339
    %v1736 = vunpack.c.h.b16 %v339
    %v1737 = vunpack.c.l.b16 %v340
    %v1738 = vunpack.c.h.b16 %v340
    %v1739 = vunpack.c.l.b16 %v341
    %v1740 = vunpack.c.h.b16 %v341
    %v1741 = vunpack.c.l.b16 %v342
    %v1742 = vunpack.c.h.b16 %v342
    %v1743 = vunpack.c.l.b16 %v343
    %v1744 = vunpack.c.h.b16 %v343
    %v1745 = vunpack.c.l.b16 %v344
    %v1746 = vunpack.c.h.b16 %v344
    %v1747 = vunpack.c.l.b16 %v345
    %v1748 = vunpack.c.h.b16 %v345
    %v1749 = vunpack.c.l.b16 %v346
    %v1750 = vunpack.c.h.b16 %v346
    %v1751 = vunpack.c.l.b16 %v347
    %v1752 = vunpack.c.h.b16 %v347
    %v1753 = vunpack.c.l.b16 %v348
    %v1754 = vunpack.c.h.b16 %v348
    %v1755 = vunpack.c.l.b16 %v349
    %v1756 = vunpack.c.h.b16 %v349
    %v1757 = vunpack.c.l.b16 %v350
    %v1758 = vunpack.c.h.b16 %v350
    %v1759 = vunpack.c.l.b16 %v351
    %v1760 = vunpack.c.h.b16 %v351
    %v1761 = vunpack.c.l.b16 %v352
    %v1762 = vunpack.c.h.b16 %v352
    %v1763 = vunpack.c.l.b16 %v353
    %v1764 = vunpack.c.h.b16 %v353
    %v1765 = vunpack.c.l.b16 %v354
    %v1766 = vunpack.c.h.b16 %v354
    %v1767 = vunpack.c.l.b16 %v355
    %v1768 = vunpack.c.h.b16 %v355
    %v1769 = vunpack.c.l.b16 %v356
    %v1770 = vunpack.c.h.b16 %v356
    %v1771 = vunpack.c.l.b16 %v357
    %v1772 = vunpack.c.h.b16 %v357
    %v1773 = vunpack.c.l.b16 %v358
    %v1774 = vunpack.c.h.b16 %v358
    %v1775 = vunpack.c.l.b16 %v359
    %v1776 = vunpack.c.h.b16 %v359
    %v1777 = vunpack.c.l.b16 %v360
    %v1778 = vunpack.c.h.b16 %v360
    %v1779 = vunpack.c.l.b16 %v361
    %v1780 = vunpack.c.h.b16 %v361
    %v1781 = vunpack.c.l.b16 %v362
    %v1782 = vunpack.c.h.b16 %v362
    %v1783 = vunpack.c.l.b16 %v363
    %v1784 = vunpack.c.h.b16 %v363
    %v1785 = vunpack.c.l.b16 %v364
    %v1786 = vunpack.c.h.b16 %v364
    %v1787 = vunpack.c.l.b16 %v365
    %v1788 = vunpack.c.h.b16 %v365
    %v1789 = vunpack.c.l.b16 %v366
    %v1790 = vunpack.c.h.b16 %v366
    %v1791 = vunpack.c.l.b16 %v367
    %v1792 = vunpack.c.h.b16 %v367
    %v1793 = vunpack.c.l.b16 %v368
    %v1794 = vunpack.c.h.b16 %v368
    %v1795 = vunpack.c.l.b16 %v369
    %v1796 = vunpack.c.h.b16 %v369
    %v1797 = vunpack.c.l.b16 %v370
    %v1798 = vunpack.c.h.b16 %v370
    %v1799 = vunpack.c.l.b16 %v371
    %v1800 = vunpack.c.h.b16 %v371
    %v1801 = vunpack.c.l.b16 %v372
    %v1802 = vunpack.c.h.b16 %v372
    %v1803 = vunpack.c.l.b16 %v373
    %v1804 = vunpack.c.h.b16 %v373
    %v1805 = vunpack.c.l.b16 %v374
    %v1806 = vunpack.c.h.b16 %v374
    %v1807 = vunpack.c.l.b16 %v375
    %v1808 = vunpack.c.h.b16 %v375
    %v1809 = vunpack.c.l.b16 %v376
    %v1810 = vunpack.c.h.b16 %v376
    %v1811 = vunpack.c.l.b16 %v377
    %v1812 = vunpack.c.h.b16 %v377
    %v1813 = vunpack.c.l.b16 %v378
    %v1814 = vunpack.c.h.b16 %v378
    %v1815 = vunpack.c.l.b16 %v379
    %v1816 = vunpack.c.h.b16 %v379
    %v1817 = vunpack.c.l.b16 %v380
    %v1818 = vunpack.c.h.b16 %v380
    %v1819 = vunpack.c.l.b16 %v381
    %v1820 = vunpack.c.h.b16 %v381
    %v1821 = vunpack.c.l.b16 %v382
    %v1822 = vunpack.c.h.b16 %v382
    %v1823 = vunpack.c.l.b16 %v383
    %v1824 = vunpack.c.h.b16 %v383
    %v1825 = vunpack.c.l.b16 %v384
    %v1826 = vunpack.c.h.b16 %v384
    %v1827 = vunpack.c.l.b16 %v385
    %v1828 = vunpack.c.h.b16 %v385
    %v1829 = vunpack.c.l.b16 %v386
    %v1830 = vunpack.c.h.b16 %v386
    %v1831 = vunpack.c.l.b16 %v387
    %v1832 = vunpack.c.h.b16 %v387
    %v1833 = vunpack.c.l.b16 %v388
    %v1834 = vunpack.c.h.b16 %v388
    %v1835 = vunpack.c.l.b16 %v389
    %v1836 = vunpack.c.h.b16 %v389
    %v1837 = vunpack.c.l.b16 %v390
    %v1838 = vunpack.c.h.b16 %v390
    %v1839 = vunpack.c.l.b16 %v391
    %v1840 = vunpack.c.h.b16 %v391
    %v1841 = vunpack.c.l.b16 %v392
    %v1842 = vunpack.c.h.b16 %v392
    %v1843 = vunpack.c.l.b16 %v393
    %v1844 = vunpack.c.h.b16 %v393
    %v1845 = vunpack.c.l.b16 %v394
    %v1846 = vunpack.c.h.b16 %v394
    %v1847 = vunpack.c.l.b16 %v395
    %v1848 = vunpack.c.h.b16 %v395
    %v1849 = vunpack.c.l.b16 %v396
    %v1850 = vunpack.c.h.b16 %v396
    %v1851 = vunpack.c.l.b16 %v397
    %v1852 = vunpack.c.h.b16 %v397
    %v1853 = vunpack.c.l.b16 %v398
    %v1854 = vunpack.c.h.b16 %v398
    %v1855 = vunpack.c.l.b16 %v399
    %v1856 = vunpack.c.h.b16 %v399
    %v1857 = vunpack.c.l.b16 %v400
    %v1858 = vunpack.c.h.b16 %v400
    %v1859 = vunpack.c.l.b16 %v401
    %v1860 = vunpack.c.h.b16 %v401
    %v1861 = vunpack.c.l.b16 %v402
    %v1862 = vunpack.c.h.b16 %v402
    %v1863 = vunpack.c.l.b16 %v403
    %v1864 = vunpack.c.h.b16 %v403
    %v1865 = vunpack.c.l.b16 %v404
    %v1866 = vunpack.c.h.b16 %v404
    %v1867 = vunpack.c.l.b16 %v405
    %v1868 = vunpack.c.h.b16 %v405
    %v1869 = vunpack.c.l.b16 %v406
    %v1870 = vunpack.c.h.b16 %v406
    %v1871 = vunpack.c.l.b16 %v407
    %v1872 = vunpack.c.h.b16 %v407
    %v1873 = vunpack.c.l.b16 %v408
    %v1874 = vunpack.c.h.b16 %v408
    %v1875 = vunpack.c.l.b16 %v409
    %v1876 = vunpack.c.h.b16 %v409
    %v1877 = vunpack.c.l.b16 %v410
    %v1878 = vunpack.c.h.b16 %v410
    %v1879 = vunpack.c.l.b16 %v411
    %v1880 = vunpack.c.h.b16 %v411
    %v1881 = vunpack.c.l.b16 %v412
    %v1882 = vunpack.c.h.b16 %v412
    %v1883 = vunpack.c.l.b16 %v413
    %v1884 = vunpack.c.h.b16 %v413
    %v1885 = vunpack.c.l.b16 %v414
    %v1886 = vunpack.c.h.b16 %v414
    %v1887 = vunpack.c.l.b16 %v415
    %v1888 = vunpack.c.h.b16 %v415
    %v1889 = vunpack.c.l.b16 %v416
    %v1890 = vunpack.c.h.b16 %v416
    %v1891 = vunpack.c.l.b16 %v417
    %v1892 = vunpack.c.h.b16 %v417
    %v1893 = vunpack.c.l.b16 %v418
    %v1894 = vunpack.c.h.b16 %v418
    %v1895 = vunpack.c.l.b16 %v419
    %v1896 = vunpack.c.h.b16 %v419
    %v1897 = vunpack.c.l.b16 %v420
    %v1898 = vunpack.c.h.b16 %v420
    %v1899 = vunpack.c.l.b16 %v421
    %v1900 = vunpack.c.h.b16 %v421
    %v1901 = vunpack.c.l.b16 %v422
    %v1902 = vunpack.c.h.b16 %v422
    %v1903 = vunpack.c.l.b16 %v423
    %v1904 = vunpack.c.h.b16 %v423
    %v1905 = vunpack.c.l.b16 %v424
    %v1906 = vunpack.c.h.b16 %v424
    %v1907 = vunpack.c.l.b16 %v425
    %v1908 = vunpack.c.h.b16 %v425
    %v1909 = vunpack.c.l.b16 %v426
    %v1910 = vunpack.c.h.b16 %v426
    %v1911 = vunpack.c.l.b16 %v427
    %v1912 = vunpack.c.h.b16 %v427
    %v1913 = vunpack.c.l.b16 %v428
    %v1914 = vunpack.c.h.b16 %v428
    %v1915 = vunpack.c.l.b16 %v429
    %v1916 = vunpack.c.h.b16 %v429
    %v1917 = vunpack.c.l.b16 %v430
    %v1918 = vunpack.c.h.b16 %v430
    %v1919 = vunpack.c.l.b16 %v431
    %v1920 = vunpack.c.h.b16 %v431
    %v1921 = vunpack.c.l.b16 %v432
    %v1922 = vunpack.c.h.b16 %v432
    %v1923 = vunpack.c.l.b16 %v433
    %v1924 = vunpack.c.h.b16 %v433
    %v1925 = vunpack.c.l.b16 %v434
    %v1926 = vunpack.c.h.b16 %v434
    %v1927 = vunpack.c.l.b16 %v435
    %v1928 = vunpack.c.h.b16 %v435
    %v1929 = vunpack.c.l.b16 %v436
    %v1930 = vunpack.c.h.b16 %v436
    %v1931 = vunpack.c.l.b16 %v437
    %v1932 = vunpack.c.h.b16 %v437
    %v1933 = vunpack.c.l.b16 %v438
    %v1934 = vunpack.c.h.b16 %v438
    %v1935 = vunpack.c.l.b16 %v439
    %v1936 = vunpack.c.h.b16 %v439
    %v1937 = vunpack.c.l.b16 %v440
    %v1938 = vunpack.c.h.b16 %v440
    %v1939 = vunpack.c.l.b16 %v441
    %v1940 = vunpack.c.h.b16 %v441
    %v1941 = vunpack.c.l.b16 %v442
    %v1942 = vunpack.c.h.b16 %v442
    %v1943 = vunpack.c.l.b16 %v443
    %v1944 = vunpack.c.h.b16 %v443
    %v1945 = vunpack.c.l.b16 %v444
    %v1946 = vunpack.c.h.b16 %v444
    %v1947 = vunpack.c.l.b16 %v445
    %v1948 = vunpack.c.h.b16 %v445
    %v1949 = vunpack.c.l.b16 %v446
    %v1950 = vunpack.c.h.b16 %v446
    %v1951 = vunpack.c.l.b16 %v447
    %v1952 = vunpack.c.h.b16 %v447
    %v1953 = vunpack.c.l.b16 %v448
    %v1954 = vunpack.c.h.b16 %v448
    %v1955 = vunpack.c.l.b16 %v449
    %v1956 = vunpack.c.h.b16 %v449
    %v1957 = vunpack.c.l.b16 %v450
    %v1958 = vunpack.c.h.b16 %v450
    %v1959 = vunpack.c.l.b16 %v451
    %v1960 = vunpack.c.h.b16 %v451
    %v1961 = vunpack.c.l.b16 %v452
    %v1962 = vunpack.c.h.b16 %v452
    %v1963 = vunpack.c.l.b16 %v453
    %v1964 = vunpack.c.h.b16 %v453
    %v1965 = vunpack.c.l.b16 %v454
    %v1966 = vunpack.c.h.b16 %v454
    %v1967 = vunpack.c.l.b16 %v455
    %v1968 = vunpack.c.h.b16 %v455
    %v1969 = vunpack.c.l.b16 %v456
    %v1970 = vunpack.c.h.b16 %v456
    %v1971 = vunpack.c.l.b16 %v457
    %v1972 = vunpack.c.h.b16 %v457
    %v1973 = vunpack.c.l.b16 %v458
    %v1974 = vunpack.c.h.b16 %v458
    %v1975 = vunpack.c.l.b16 %v459
    %v1976 = vunpack.c.h.b16 %v459
    %v1977 = vunpack.c.l.b16 %v460
    %v1978 = vunpack.c.h.b16 %v460
    %v1979 = vunpack.c.l.b16 %v461
    %v1980 = vunpack.c.h.b16 %v461
    %v1981 = vunpack.c.l.b16 %v462
    %v1982 = vunpack.c.h.b16 %v462
    %v1983 = vunpack.c.l.b16 %v463
    %v1984 = vunpack.c.h.b16 %v463
    %v1985 = vunpack.c.l.b16 %v464
    %v1986 = vunpack.c.h.b16 %v464
    %v1987 = vunpack.c.l.b16 %v465
    %v1988 = vunpack.c.h.b16 %v465
    %v1989 = vunpack.c.l.b16 %v466
    %v1990 = vunpack.c.h.b16 %v466
    %v1991 = vunpack.c.l.b16 %v467
    %v1992 = vunpack.c.h.b16 %v467
    %v1993 = vunpack.c.l.b16 %v468
    %v1994 = vunpack.c.h.b16 %v468
    %v1995 = vunpack.c.l.b16 %v469
    %v1996 = vunpack.c.h.b16 %v469
    %v1997 = vunpack.c.l.b16 %v470
    %v1998 = vunpack.c.h.b16 %v470
    %v1999 = vunpack.c.l.b16 %v471
    %v2000 = vunpack.c.h.b16 %v471
    %v2001 = vunpack.c.l.b16 %v472
    %v2002 = vunpack.c.h.b16 %v472
    %v2003 = vunpack.c.l.b16 %v473
    %v2004 = vunpack.c.h.b16 %v473
    %v2005 = vunpack.c.l.b16 %v474
    %v2006 = vunpack.c.h.b16 %v474
    %v2007 = vunpack.c.l.b16 %v475
    %v2008 = vunpack.c.h.b16 %v475
    %v2009 = vunpack.c.l.b16 %v476
    %v2010 = vunpack.c.h.b16 %v476
    %v2011 = vunpack.c.l.b16 %v477
    %v2012 = vunpack.c.h.b16 %v477
    %v2013 = vunpack.c.l.b16 %v478
    %v2014 = vunpack.c.h.b16 %v478
    %v2015 = vunpack.c.l.b16 %v479
    %v2016 = vunpack.c.h.b16 %v479
    %v2017 = vunpack.c.l.b16 %v480
    %v2018 = vunpack.c.h.b16 %v480
    %v2019 = vunpack.c.l.b16 %v481
    %v2020 = vunpack.c.h.b16 %v481
    %v2021 = vunpack.c.l.b16 %v482
    %v2022 = vunpack.c.h.b16 %v482
    %v2023 = vunpack.c.l.b16 %v483
    %v2024 = vunpack.c.h.b16 %v483
    %v2025 = vunpack.c.l.b16 %v484
    %v2026 = vunpack.c.h.b16 %v484
    %v2027 = vunpack.c.l.b16 %v485
    %v2028 = vunpack.c.h.b16 %v485
    %v2029 = vunpack.c.l.b16 %v486
    %v2030 = vunpack.c.h.b16 %v486
    %v2031 = vunpack.c.l.b16 %v487
    %v2032 = vunpack.c.h.b16 %v487
    %v2033 = vunpack.c.l.b16 %v488
    %v2034 = vunpack.c.h.b16 %v488
    %v2035 = vunpack.c.l.b16 %v489
    %v2036 = vunpack.c.h.b16 %v489
    %v2037 = vunpack.c.l.b16 %v490
    %v2038 = vunpack.c.h.b16 %v490
    %v2039 = vunpack.c.l.b16 %v491
    %v2040 = vunpack.c.h.b16 %v491
    %v2041 = vunpack.c.l.b16 %v492
    %v2042 = vunpack.c.h.b16 %v492
    %v2043 = vunpack.c.l.b16 %v493
    %v2044 = vunpack.c.h.b16 %v493
    %v2045 = vunpack.c.l.b16 %v494
    %v2046 = vunpack.c.h.b16 %v494
    %v2047 = vunpack.c.l.b16 %v495
    %v2048 = vunpack.c.h.b16 %v495
    %v2049 = vunpack.c.l.b16 %v496
    %v2050 = vunpack.c.h.b16 %v496
    %v2051 = vunpack.c.l.b16 %v497
    %v2052 = vunpack.c.h.b16 %v497
    %v2053 = vunpack.c.l.b16 %v498
    %v2054 = vunpack.c.h.b16 %v498
    %v2055 = vunpack.c.l.b16 %v499
    %v2056 = vunpack.c.h.b16 %v499
    %v2057 = vunpack.c.l.b16 %v500
    %v2058 = vunpack.c.h.b16 %v500
    %v2059 = vunpack.c.l.b16 %v501
    %v2060 = vunpack.c.h.b16 %v501
    %v2061 = vunpack.c.l.b16 %v502
    %v2062 = vunpack.c.h.b16 %v502
    %v2063 = vunpack.c.l.b16 %v503
    %v2064 = vunpack.c.h.b16 %v503
    %v2065 = vunpack.c.l.b16 %v504
    %v2066 = vunpack.c.h.b16 %v504
    %v2067 = vunpack.c.l.b16 %v505
    %v2068 = vunpack.c.h.b16 %v505
    %v2069 = vunpack.c.l.b16 %v506
    %v2070 = vunpack.c.h.b16 %v506
    %v2071 = vunpack.c.l.b16 %v507
    %v2072 = vunpack.c.h.b16 %v507
    %v2073 = vunpack.c.l.b16 %v508
    %v2074 = vunpack.c.h.b16 %v508
    %v2075 = vunpack.c.l.b16 %v509
    %v2076 = vunpack.c.h.b16 %v509
    %v2077 = vunpack.c.l.b16 %v510
    %v2078 = vunpack.c.h.b16 %v510
    %v2079 = vunpack.c.l.b16 %v511
    %v2080 = vunpack.c.h.b16 %v511
    %v2081 = vunpack.c.l.b16 %v512
    %v2082 = vunpack.c.h.b16 %v512
    %v2083 = vunpack.c.l.b16 %v513
    %v2084 = vunpack.c.h.b16 %v513
    %v2085 = vunpack.c.l.b16 %v514
    %v2086 = vunpack.c.h.b16 %v514
    %v2087 = vunpack.c.l.b16 %v515
    %v2088 = vunpack.c.h.b16 %v515
    %v2089 = vunpack.c.l.b16 %v516
    %v2090 = vunpack.c.h.b16 %v516
    %v2091 = vunpack.c.l.b16 %v517
    %v2092 = vunpack.c.h.b16 %v517
    %v2093 = vunpack.c.l.b16 %v518
    %v2094 = vunpack.c.h.b16 %v518
    %v2095 = vunpack.c.l.b16 %v519
    %v2096 = vunpack.c.h.b16 %v519
    %v2097 = vunpack.c.l.b16 %v520
    %v2098 = vunpack.c.h.b16 %v520
    %v2099 = vunpack.c.l.b16 %v521
    %v2100 = vunpack.c.h.b16 %v521
    %v2101 = vunpack.c.l.b16 %v522
    %v2102 = vunpack.c.h.b16 %v522
    %v2103 = vunpack.c.l.b16 %v523
    %v2104 = vunpack.c.h.b16 %v523
    %v2105 = vunpack.c.l.b16 %v524
    %v2106 = vunpack.c.h.b16 %v524
    %v2107 = vunpack.c.l.b16 %v525
    %v2108 = vunpack.c.h.b16 %v525
    %v2109 = vunpack.c.l.b16 %v526
    %v2110 = vunpack.c.h.b16 %v526
    %v2111 = vunpack.c.l.b16 %v527
    %v2112 = vunpack.c.h.b16 %v527
    %v2113 = vunpack.c.l.b16 %v528
    %v2114 = vunpack.c.h.b16 %v528
    %v2115 = vunpack.c.l.b16 %v529
    %v2116 = vunpack.c.h.b16 %v529
    %v2117 = vunpack.c.l.b16 %v530
    %v2118 = vunpack.c.h.b16 %v530
    %v2119 = vunpack.c.l.b16 %v531
    %v2120 = vunpack.c.h.b16 %v531
    %v2121 = vunpack.c.l.b16 %v532
    %v2122 = vunpack.c.h.b16 %v532
    %v2123 = vunpack.c.l.b16 %v533
    %v2124 = vunpack.c.h.b16 %v533
    %v2125 = vunpack.c.l.b16 %v534
    %v2126 = vunpack.c.h.b16 %v534
    %v2127 = vunpack.c.l.b16 %v535
    %v2128 = vunpack.c.h.b16 %v535
    %v2129 = vunpack.c.l.b16 %v536
    %v2130 = vunpack.c.h.b16 %v536
    %v2131 = vunpack.c.l.b16 %v537
    %v2132 = vunpack.c.h.b16 %v537
    %v2133 = vunpack.c.l.b16 %v538
    %v2134 = vunpack.c.h.b16 %v538
    %v2135 = vunpack.c.l.b16 %v539
    %v2136 = vunpack.c.h.b16 %v539
    %v2137 = vunpack.c.l.b16 %v540
    %v2138 = vunpack.c.h.b16 %v540
    %v2139 = vunpack.c.l.b16 %v541
    %v2140 = vunpack.c.h.b16 %v541
    %v2141 = vunpack.c.l.b16 %v542
    %v2142 = vunpack.c.h.b16 %v542
    %v2143 = vunpack.c.l.b16 %v543
    %v2144 = vunpack.c.h.b16 %v543
    %v2145 = vunpack.c.l.b16 %v544
    %v2146 = vunpack.c.h.b16 %v544
    %v2147 = vunpack.c.l.b16 %v545
    %v2148 = vunpack.c.h.b16 %v545
    %v2149 = vunpack.c.l.b16 %v546
    %v2150 = vunpack.c.h.b16 %v546
    %v2151 = vunpack.c.l.b16 %v547
    %v2152 = vunpack.c.h.b16 %v547
    %v2153 = vunpack.c.l.b16 %v548
    %v2154 = vunpack.c.h.b16 %v548
    %v2155 = vunpack.c.l.b16 %v549
    %v2156 = vunpack.c.h.b16 %v549
    %v2157 = vunpack.c.l.b16 %v550
    %v2158 = vunpack.c.h.b16 %v550
    %v2159 = vunpack.c.l.b16 %v551
    %v2160 = vunpack.c.h.b16 %v551
    %v2161 = vunpack.c.l.b16 %v552
    %v2162 = vunpack.c.h.b16 %v552
    %v2163 = vunpack.c.l.b16 %v553
    %v2164 = vunpack.c.h.b16 %v553
    %v2165 = vunpack.c.l.b16 %v554
    %v2166 = vunpack.c.h.b16 %v554
    %v2167 = vunpack.c.l.b16 %v555
    %v2168 = vunpack.c.h.b16 %v555
    %v2169 = vunpack.c.l.b16 %v556
    %v2170 = vunpack.c.h.b16 %v556
    %v2171 = vunpack.c.l.b16 %v557
    %v2172 = vunpack.c.h.b16 %v557
    %v2173 = vunpack.c.l.b16 %v558
    %v2174 = vunpack.c.h.b16 %v558
    %v2175 = vunpack.c.l.b16 %v559
    %v2176 = vunpack.c.h.b16 %v559
    %v2177 = vunpack.c.l.b16 %v560
    %v2178 = vunpack.c.h.b16 %v560
    %v2179 = vunpack.c.l.b16 %v561
    %v2180 = vunpack.c.h.b16 %v561
    %v2181 = vunpack.c.l.b16 %v562
    %v2182 = vunpack.c.h.b16 %v562
    %v2183 = vunpack.c.l.b16 %v563
    %v2184 = vunpack.c.h.b16 %v563
    %v2185 = vunpack.c.l.b16 %v564
    %v2186 = vunpack.c.h.b16 %v564
    %v2187 = vunpack.c.l.b16 %v565
    %v2188 = vunpack.c.h.b16 %v565
    %v2189 = vunpack.c.l.b16 %v566
    %v2190 = vunpack.c.h.b16 %v566
    %v2191 = vunpack.c.l.b16 %v567
    %v2192 = vunpack.c.h.b16 %v567
    %v2193 = vunpack.c.l.b16 %v568
    %v2194 = vunpack.c.h.b16 %v568
    %v2195 = vunpack.c.l.b16 %v569
    %v2196 = vunpack.c.h.b16 %v569
    %v2197 = vunpack.c.l.b16 %v570
    %v2198 = vunpack.c.h.b16 %v570
    %v2199 = vunpack.c.l.b16 %v571
    %v2200 = vunpack.c.h.b16 %v571
    %v2201 = vunpack.c.l.b16 %v572
    %v2202 = vunpack.c.h.b16 %v572
    %v2203 = vunpack.c.l.b16 %v573
    %v2204 = vunpack.c.h.b16 %v573
    %v2205 = vunpack.c.l.b16 %v574
    %v2206 = vunpack.c.h.b16 %v574
    %v2207 = vunpack.c.l.b16 %v575
    %v2208 = vunpack.c.h.b16 %v575
    %v2209 = vunpack.c.l.b16 %v576
    %v2210 = vunpack.c.h.b16 %v576
    %v2211 = vunpack.c.l.b16 %v577
    %v2212 = vunpack.c.h.b16 %v577
    %v2213 = vunpack.c.l.b16 %v578
    %v2214 = vunpack.c.h.b16 %v578
    %v2215 = vunpack.c.l.b16 %v579
    %v2216 = vunpack.c.h.b16 %v579
    %v2217 = vunpack.c.l.b16 %v580
    %v2218 = vunpack.c.h.b16 %v580
    %v2219 = vunpack.c.l.b16 %v581
    %v2220 = vunpack.c.h.b16 %v581
    %v2221 = vunpack.c.l.b16 %v582
    %v2222 = vunpack.c.h.b16 %v582
    %v2223 = vunpack.c.l.b16 %v583
    %v2224 = vunpack.c.h.b16 %v583
    %v2225 = vunpack.c.l.b16 %v584
    %v2226 = vunpack.c.h.b16 %v584
    %v2227 = vunpack.c.l.b16 %v585
    %v2228 = vunpack.c.h.b16 %v585
    %v2229 = vunpack.c.l.b16 %v586
    %v2230 = vunpack.c.h.b16 %v586
    %v2231 = vunpack.c.l.b16 %v587
    %v2232 = vunpack.c.h.b16 %v587
    %v2233 = vunpack.c.l.b16 %v588
    %v2234 = vunpack.c.h.b16 %v588
    %v2235 = vunpack.c.l.b16 %v589
    %v2236 = vunpack.c.h.b16 %v589
    %v2237 = vunpack.c.l.b16 %v590
    %v2238 = vunpack.c.h.b16 %v590
    %v2239 = vunpack.c.l.b16 %v591
    %v2240 = vunpack.c.h.b16 %v591
    %v2241 = vunpack.c.l.b16 %v592
    %v2242 = vunpack.c.h.b16 %v592
    %v2243 = vunpack.c.l.b16 %v593
    %v2244 = vunpack.c.h.b16 %v593
    %v2245 = vunpack.c.l.b16 %v594
    %v2246 = vunpack.c.h.b16 %v594
    %v2247 = vunpack.c.l.b16 %v595
    %v2248 = vunpack.c.h.b16 %v595
    %v2249 = vunpack.c.l.b16 %v596
    %v2250 = vunpack.c.h.b16 %v596
    %v2251 = vunpack.c.l.b16 %v597
    %v2252 = vunpack.c.h.b16 %v597
    %v2253 = vunpack.c.l.b16 %v598
    %v2254 = vunpack.c.h.b16 %v598
    %v2255 = vunpack.c.l.b16 %v599
    %v2256 = vunpack.c.h.b16 %v599
    %v2257 = vunpack.c.l.b16 %v600
    %v2258 = vunpack.c.h.b16 %v600
    %v2259 = vunpack.c.l.b16 %v601
    %v2260 = vunpack.c.h.b16 %v601
    %v2261 = vunpack.c.l.b16 %v602
    %v2262 = vunpack.c.h.b16 %v602
    %v2263 = vunpack.c.l.b16 %v603
    %v2264 = vunpack.c.h.b16 %v603
    %v2265 = vunpack.c.l.b16 %v604
    %v2266 = vunpack.c.h.b16 %v604
    %v2267 = vunpack.c.l.b16 %v605
    %v2268 = vunpack.c.h.b16 %v605
    %v2269 = vunpack.c.l.b16 %v606
    %v2270 = vunpack.c.h.b16 %v606
    %v2271 = vunpack.c.l.b16 %v607
    %v2272 = vunpack.c.h.b16 %v607
    %v2273 = vunpack.c.l.b16 %v608
    %v2274 = vunpack.c.h.b16 %v608
    %v2275 = vunpack.c.l.b16 %v609
    %v2276 = vunpack.c.h.b16 %v609
    %v2277 = vunpack.c.l.b16 %v610
    %v2278 = vunpack.c.h.b16 %v610
    %v2279 = vunpack.c.l.b16 %v611
    %v2280 = vunpack.c.h.b16 %v611
    %v2281 = vunpack.c.l.b16 %v612
    %v2282 = vunpack.c.h.b16 %v612
    %v2283 = vunpack.c.l.b16 %v613
    %v2284 = vunpack.c.h.b16 %v613
    %v2285 = vunpack.c.l.b16 %v614
    %v2286 = vunpack.c.h.b16 %v614
    %v2287 = vunpack.c.l.b16 %v615
    %v2288 = vunpack.c.h.b16 %v615
    %v2289 = vunpack.c.l.b16 %v616
    %v2290 = vunpack.c.h.b16 %v616
    %v2291 = vunpack.c.l.b16 %v617
    %v2292 = vunpack.c.h.b16 %v617
    %v2293 = vunpack.c.l.b16 %v618
    %v2294 = vunpack.c.h.b16 %v618
    %v2295 = vunpack.c.l.b16 %v619
    %v2296 = vunpack.c.h.b16 %v619
    %v2297 = vunpack.c.l.b16 %v620
    %v2298 = vunpack.c.h.b16 %v620
    %v2299 = vunpack.c.l.b16 %v621
    %v2300 = vunpack.c.h.b16 %v621
    %v2301 = vunpack.c.l.b16 %v622
    %v2302 = vunpack.c.h.b16 %v622
    %v2303 = vunpack.c.l.b16 %v623
    %v2304 = vunpack.c.h.b16 %v623
    %v2305 = vunpack.c.l.b16 %v624
    %v2306 = vunpack.c.h.b16 %v624
    %v2307 = vunpack.c.l.b16 %v625
    %v2308 = vunpack.c.h.b16 %v625
    %v2309 = vunpack.c.l.b16 %v626
    %v2310 = vunpack.c.h.b16 %v626
    %v2311 = vunpack.c.l.b16 %v627
    %v2312 = vunpack.c.h.b16 %v627
    %v2313 = vunpack.c.l.b16 %v628
    %v2314 = vunpack.c.h.b16 %v628
    %v2315 = vunpack.c.l.b16 %v629
    %v2316 = vunpack.c.h.b16 %v629
    %v2317 = vunpack.c.l.b16 %v630
    %v2318 = vunpack.c.h.b16 %v630
    %v2319 = vunpack.c.l.b16 %v631
    %v2320 = vunpack.c.h.b16 %v631
    %v2321 = vunpack.c.l.b16 %v632
    %v2322 = vunpack.c.h.b16 %v632
    %v2323 = vunpack.c.l.b16 %v633
    %v2324 = vunpack.c.h.b16 %v633
    %v2325 = vunpack.c.l.b16 %v634
    %v2326 = vunpack.c.h.b16 %v634
    %v2327 = vunpack.c.l.b16 %v635
    %v2328 = vunpack.c.h.b16 %v635
    %v2329 = vunpack.c.l.b16 %v636
    %v2330 = vunpack.c.h.b16 %v636
    %v2331 = vunpack.c.l.b16 %v637
    %v2332 = vunpack.c.h.b16 %v637
    %v2333 = vunpack.c.l.b16 %v638
    %v2334 = vunpack.c.h.b16 %v638
    %v2335 = vunpack.c.l.b16 %v639
    %v2336 = vunpack.c.h.b16 %v639
    %v2337 = vunpack.c.l.b16 %v640
    %v2338 = vunpack.c.h.b16 %v640
    %v2339 = vunpack.c.l.b16 %v641
    %v2340 = vunpack.c.h.b16 %v641
    %v2341 = vunpack.c.l.b16 %v642
    %v2342 = vunpack.c.h.b16 %v642
    %v2343 = vunpack.c.l.b16 %v643
    %v2344 = vunpack.c.h.b16 %v643
    %v2345 = vunpack.c.l.b16 %v644
    %v2346 = vunpack.c.h.b16 %v644
    %v2347 = vunpack.c.l.b16 %v645
    %v2348 = vunpack.c.h.b16 %v645
    %v2349 = vunpack.c.l.b16 %v646
    %v2350 = vunpack.c.h.b16 %v646
    %v2351 = vunpack.c.l.b16 %v647
    %v2352 = vunpack.c.h.b16 %v647
    %v2353 = vunpack.c.l.b16 %v648
    %v2354 = vunpack.c.h.b16 %v648
    %v2355 = vunpack.c.l.b16 %v649
    %v2356 = vunpack.c.h.b16 %v649
    %v2357 = vunpack.c.l.b16 %v650
    %v2358 = vunpack.c.h.b16 %v650
    %v2359 = vunpack.c.l.b16 %v651
    %v2360 = vunpack.c.h.b16 %v651
    %v2361 = vunpack.c.l.b16 %v652
    %v2362 = vunpack.c.h.b16 %v652
    %v2363 = vunpack.c.l.b16 %v653
    %v2364 = vunpack.c.h.b16 %v653
    %v2365 = vunpack.c.l.b16 %v654
    %v2366 = vunpack.c.h.b16 %v654
    %v2367 = vunpack.c.l.b16 %v655
    %v2368 = vunpack.c.h.b16 %v655
    %v2369 = vunpack.c.l.b16 %v656
    %v2370 = vunpack.c.h.b16 %v656
    %v2371 = vunpack.c.l.b16 %v657
    %v2372 = vunpack.c.h.b16 %v657
    %v2373 = vunpack.c.l.b16 %v658
    %v2374 = vunpack.c.h.b16 %v658
    %v2375 = vunpack.c.l.b16 %v659
    %v2376 = vunpack.c.h.b16 %v659
    %v2377 = vunpack.c.l.b16 %v660
    %v2378 = vunpack.c.h.b16 %v660
    %v2379 = vunpack.c.l.b16 %v661
    %v2380 = vunpack.c.h.b16 %v661
    %v2381 = vunpack.c.l.b16 %v662
    %v2382 = vunpack.c.h.b16 %v662
    %v2383 = vunpack.c.l.b16 %v663
    %v2384 = vunpack.c.h.b16 %v663
    %v2385 = vunpack.c.l.b16 %v664
    %v2386 = vunpack.c.h.b16 %v664
    %v2387 = vunpack.c.l.b16 %v665
    %v2388 = vunpack.c.h.b16 %v665
    %v2389 = vunpack.c.l.b16 %v666
    %v2390 = vunpack.c.h.b16 %v666
    %v2391 = vunpack.c.l.b16 %v667
    %v2392 = vunpack.c.h.b16 %v667
    %v2393 = vunpack.c.l.b16 %v668
    %v2394 = vunpack.c.h.b16 %v668
    %v2395 = vunpack.c.l.b16 %v669
    %v2396 = vunpack.c.h.b16 %v669
    %v2397 = vunpack.c.l.b16 %v670
    %v2398 = vunpack.c.h.b16 %v670
    %v2399 = vunpack.c.l.b16 %v671
    %v2400 = vunpack.c.h.b16 %v671
    %v2401 = vunpack.c.l.b16 %v672
    %v2402 = vunpack.c.h.b16 %v672
    %v2403 = vunpack.c.l.b16 %v673
    %v2404 = vunpack.c.h.b16 %v673
    %v2405 = vunpack.c.l.b16 %v674
    %v2406 = vunpack.c.h.b16 %v674
    %v2407 = vunpack.c.l.b16 %v675
    %v2408 = vunpack.c.h.b16 %v675
    %v2409 = vunpack.c.l.b16 %v676
    %v2410 = vunpack.c.h.b16 %v676
    %v2411 = vunpack.c.l.b16 %v677
    %v2412 = vunpack.c.h.b16 %v677
    %v2413 = vunpack.c.l.b16 %v678
    %v2414 = vunpack.c.h.b16 %v678
    %v2415 = vunpack.c.l.b16 %v679
    %v2416 = vunpack.c.h.b16 %v679
    %v2417 = vunpack.c.l.b16 %v680
    %v2418 = vunpack.c.h.b16 %v680
    %v2419 = vunpack.c.l.b16 %v681
    %v2420 = vunpack.c.h.b16 %v681
    %v2421 = vunpack.c.l.b16 %v682
    %v2422 = vunpack.c.h.b16 %v682
    %v2423 = vunpack.c.l.b16 %v683
    %v2424 = vunpack.c.h.b16 %v683
    %v2425 = vunpack.c.l.b16 %v684
    %v2426 = vunpack.c.h.b16 %v684
    %v2427 = vunpack.c.l.b16 %v685
    %v2428 = vunpack.c.h.b16 %v685
    %v2429 = vunpack.c.l.b16 %v686
    %v2430 = vunpack.c.h.b16 %v686
    %v2431 = vunpack.c.l.b16 %v687
    %v2432 = vunpack.c.h.b16 %v687
    %v2433 = vunpack.c.l.b16 %v688
    %v2434 = vunpack.c.h.b16 %v688
    %v2435 = vunpack.c.l.b16 %v689
    %v2436 = vunpack.c.h.b16 %v689
    %v2437 = vunpack.c.l.b16 %v690
    %v2438 = vunpack.c.h.b16 %v690
    %v2439 = vunpack.c.l.b16 %v691
    %v2440 = vunpack.c.h.b16 %v691
    %v2441 = vunpack.c.l.b16 %v692
    %v2442 = vunpack.c.h.b16 %v692
    %v2443 = vunpack.c.l.b16 %v693
    %v2444 = vunpack.c.h.b16 %v693
    %v2445 = vunpack.c.l.b16 %v694
    %v2446 = vunpack.c.h.b16 %v694
    %v2447 = vunpack.c.l.b16 %v695
    %v2448 = vunpack.c.h.b16 %v695
    %v2449 = vunpack.c.l.b16 %v696
    %v2450 = vunpack.c.h.b16 %v696
    %v2451 = vunpack.c.l.b16 %v697
    %v2452 = vunpack.c.h.b16 %v697
    %v2453 = vunpack.c.l.b16 %v698
    %v2454 = vunpack.c.h.b16 %v698
    %v2455 = vunpack.c.l.b16 %v699
    %v2456 = vunpack.c.h.b16 %v699
    %v2457 = vunpack.c.l.b16 %v700
    %v2458 = vunpack.c.h.b16 %v700
    %v2459 = vunpack.c.l.b16 %v701
    %v2460 = vunpack.c.h.b16 %v701
    %v2461 = vunpack.c.l.b16 %v702
    %v2462 = vunpack.c.h.b16 %v702
    %v2463 = vunpack.c.l.b16 %v703
    %v2464 = vunpack.c.h.b16 %v703
    %v2465 = vunpack.c.l.b16 %v704
    %v2466 = vunpack.c.h.b16 %v704
    %v2467 = vunpack.c.l.b16 %v705
    %v2468 = vunpack.c.h.b16 %v705
    %v2469 = vunpack.c.l.b16 %v706
    %v2470 = vunpack.c.h.b16 %v706
    %v2471 = vunpack.c.l.b16 %v707
    %v2472 = vunpack.c.h.b16 %v707
    %v2473 = vunpack.c.l.b16 %v708
    %v2474 = vunpack.c.h.b16 %v708
    %v2475 = vunpack.c.l.b16 %v709
    %v2476 = vunpack.c.h.b16 %v709
    %v2477 = vunpack.c.l.b16 %v710
    %v2478 = vunpack.c.h.b16 %v710
    %v2479 = vunpack.c.l.b16 %v711
    %v2480 = vunpack.c.h.b16 %v711
    %v2481 = vunpack.c.l.b16 %v712
    %v2482 = vunpack.c.h.b16 %v712
    %v2483 = vunpack.c.l.b16 %v713
    %v2484 = vunpack.c.h.b16 %v713
    %v2485 = vunpack.c.l.b16 %v714
    %v2486 = vunpack.c.h.b16 %v714
    %v2487 = vunpack.c.l.b16 %v715
    %v2488 = vunpack.c.h.b16 %v715
    %v2489 = vunpack.c.l.b16 %v716
    %v2490 = vunpack.c.h.b16 %v716
    %v2491 = vunpack.c.l.b16 %v717
    %v2492 = vunpack.c.h.b16 %v717
    %v2493 = vunpack.c.l.b16 %v718
    %v2494 = vunpack.c.h.b16 %v718
    %v2495 = vunpack.c.l.b16 %v719
    %v2496 = vunpack.c.h.b16 %v719
    %v2497 = vunpack.c.l.b16 %v720
    %v2498 = vunpack.c.h.b16 %v720
    %v2499 = vunpack.c.l.b16 %v721
    %v2500 = vunpack.c.h.b16 %v721
    %v2501 = vunpack.c.l.b16 %v722
    %v2502 = vunpack.c.h.b16 %v722
    %v2503 = vunpack.c.l.b16 %v723
    %v2504 = vunpack.c.h.b16 %v723
    %v2505 = vunpack.c.l.b16 %v724
    %v2506 = vunpack.c.h.b16 %v724
    %v2507 = vunpack.c.l.b16 %v725
    %v2508 = vunpack.c.h.b16 %v725
    %v2509 = vunpack.c.l.b16 %v726
    %v2510 = vunpack.c.h.b16 %v726
    %v2511 = vunpack.c.l.b16 %v727
    %v2512 = vunpack.c.h.b16 %v727
    %v2513 = vunpack.c.l.b16 %v728
    %v2514 = vunpack.c.h.b16 %v728
    %v2515 = vpack.c.b16 %v1343, %v1339
    %v2516 = vpack.c.b16 %v1344, %v1340
    %v2517 = vpack.c.b16 %v1345, %v1341
    %v2518 = vpack.c.b16 %v1346, %v1342
    %v2519 = vpack.c.b16 %v1351, %v1347
    %v2520 = vpack.c.b16 %v1352, %v1348
    %v2521 = vpack.c.b16 %v1353, %v1349
    %v2522 = vpack.c.b16 %v1354, %v1350
    %v2523 = vpack.c.b16 %v1359, %v1355
    %v2524 = vpack.c.b16 %v1360, %v1356
    %v2525 = vpack.c.b16 %v1361, %v1357
    %v2526 = vpack.c.b16 %v1362, %v1358
    %v2527 = vpack.c.b16 %v1367, %v1363
    %v2528 = vpack.c.b16 %v1368, %v1364
    %v2529 = vpack.c.b16 %v1369, %v1365
    %v2530 = vpack.c.b16 %v1370, %v1366
    %v2531 = vpack.c.b16 %v1375, %v1371
    %v2532 = vpack.c.b16 %v1376, %v1372
    %v2533 = vpack.c.b16 %v1377, %v1373
    %v2534 = vpack.c.b16 %v1378, %v1374
    %v2535 = vpack.c.b16 %v1383, %v1379
    %v2536 = vpack.c.b16 %v1384, %v1380
    %v2537 = vpack.c.b16 %v1385, %v1381
    %v2538 = vpack.c.b16 %v1386, %v1382
    %v2539 = vpack.c.b16 %v1391, %v1387
    %v2540 = vpack.c.b16 %v1392, %v1388
    %v2541 = vpack.c.b16 %v1393, %v1389
    %v2542 = vpack.c.b16 %v1394, %v1390
    %v2543 = vpack.c.b16 %v1399, %v1395
    %v2544 = vpack.c.b16 %v1400, %v1396
    %v2545 = vpack.c.b16 %v1401, %v1397
    %v2546 = vpack.c.b16 %v1402, %v1398
    %v2547 = vpack.c.b16 %v1407, %v1403
    %v2548 = vpack.c.b16 %v1408, %v1404
    %v2549 = vpack.c.b16 %v1409, %v1405
    %v2550 = vpack.c.b16 %v1410, %v1406
    %v2551 = vpack.c.b16 %v1415, %v1411
    %v2552 = vpack.c.b16 %v1416, %v1412
    %v2553 = vpack.c.b16 %v1417, %v1413
    %v2554 = vpack.c.b16 %v1418, %v1414
    %v2555 = vpack.c.b16 %v1423, %v1419
    %v2556 = vpack.c.b16 %v1424, %v1420
    %v2557 = vpack.c.b16 %v1425, %v1421
    %v2558 = vpack.c.b16 %v1426, %v1422
    %v2559 = vpack.c.b16 %v1431, %v1427
    %v2560 = vpack.c.b16 %v1432, %v1428
    %v2561 = vpack.c.b16 %v1433, %v1429
    %v2562 = vpack.c.b16 %v1434, %v1430
    %v2563 = vpack.c.b16 %v1439, %v1435
    %v2564 = vpack.c.b16 %v1440, %v1436
    %v2565 = vpack.c.b16 %v1441, %v1437
    %v2566 = vpack.c.b16 %v1442, %v1438
    %v2567 = vpack.c.b16 %v1447, %v1443
    %v2568 = vpack.c.b16 %v1448, %v1444
    %v2569 = vpack.c.b16 %v1449, %v1445
    %v2570 = vpack.c.b16 %v1450, %v1446
    %v2571 = vpack.c.b16 %v1455, %v1451
    %v2572 = vpack.c.b16 %v1456, %v1452
    %v2573 = vpack.c.b16 %v1457, %v1453
    %v2574 = vpack.c.b16 %v1458, %v1454
    %v2575 = vpack.c.b16 %v1463, %v1459
    %v2576 = vpack.c.b16 %v1464, %v1460
    %v2577 = vpack.c.b16 %v1465, %v1461
    %v2578 = vpack.c.b16 %v1466, %v1462
    %v2579 = vpack.c.b16 %v1471, %v1467
    %v2580 = vpack.c.b16 %v1472, %v1468
    %v2581 = vpack.c.b16 %v1473, %v1469
    %v2582 = vpack.c.b16 %v1474, %v1470
    %v2583 = vpack.c.b16 %v1479, %v1475
    %v2584 = vpack.c.b16 %v1480, %v1476
    %v2585 = vpack.c.b16 %v1481, %v1477
    %v2586 = vpack.c.b16 %v1482, %v1478
    %v2587 = vpack.c.b16 %v1487, %v1483
    %v2588 = vpack.c.b16 %v1488, %v1484
    %v2589 = vpack.c.b16 %v1489, %v1485
    %v2590 = vpack.c.b16 %v1490, %v1486
    %v2591 = vpack.c.b16 %v1495, %v1491
    %v2592 = vpack.c.b16 %v1496, %v1492
    %v2593 = vpack.c.b16 %v1497, %v1493
    %v2594 = vpack.c.b16 %v1498, %v1494
    %v2595 = vpack.c.b16 %v1503, %v1499
    %v2596 = vpack.c.b16 %v1504, %v1500
    %v2597 = vpack.c.b16 %v1505, %v1501
    %v2598 = vpack.c.b16 %v1506, %v1502
    %v2599 = vpack.c.b16 %v1511, %v1507
    %v2600 = vpack.c.b16 %v1512, %v1508
    %v2601 = vpack.c.b16 %v1513, %v1509
    %v2602 = vpack.c.b16 %v1514, %v1510
    %v2603 = vpack.c.b16 %v1519, %v1515
    %v2604 = vpack.c.b16 %v1520, %v1516
    %v2605 = vpack.c.b16 %v1521, %v1517
    %v2606 = vpack.c.b16 %v1522, %v1518
    %v2607 = vpack.c.b16 %v1527, %v1523
    %v2608 = vpack.c.b16 %v1528, %v1524
    %v2609 = vpack.c.b16 %v1529, %v1525
    %v2610 = vpack.c.b16 %v1530, %v1526
    %v2611 = vpack.c.b16 %v1535, %v1531
    %v2612 = vpack.c.b16 %v1536, %v1532
    %v2613 = vpack.c.b16 %v1537, %v1533
    %v2614 = vpack.c.b16 %v1538, %v1534
    %v2615 = vpack.c.b16 %v1543, %v1539
    %v2616 = vpack.c.b16 %v1544, %v1540
    %v2617 = vpack.c.b16 %v1545, %v1541
    %v2618 = vpack.c.b16 %v1546, %v1542
    %v2619 = vpack.c.b16 %v1551, %v1547
    %v2620 = vpack.c.b16 %v1552, %v1548
    %v2621 = vpack.c.b16 %v1553, %v1549
    %v2622 = vpack.c.b16 %v1554, %v1550
    %v2623 = vpack.c.b16 %v1559, %v1555
    %v2624 = vpack.c.b16 %v1560, %v1556
    %v2625 = vpack.c.b16 %v1561, %v1557
    %v2626 = vpack.c.b16 %v1562, %v1558
    %v2627 = vpack.c.b16 %v1567, %v1563
    %v2628 = vpack.c.b16 %v1568, %v1564
    %v2629 = vpack.c.b16 %v1569, %v1565
    %v2630 = vpack.c.b16 %v1570, %v1566
    %v2631 = vpack.c.b16 %v1575, %v1571
    %v2632 = vpack.c.b16 %v1576, %v1572
    %v2633 = vpack.c.b16 %v1577, %v1573
    %v2634 = vpack.c.b16 %v1578, %v1574
    %v2635 = vpack.c.b16 %v1583, %v1579
    %v2636 = vpack.c.b16 %v1584, %v1580
    %v2637 = vpack.c.b16 %v1585, %v1581
    %v2638 = vpack.c.b16 %v1586, %v1582
    %v2639 = vpack.c.b16 %v1591, %v1587
    %v2640 = vpack.c.b16 %v1592, %v1588
    %v2641 = vpack.c.b16 %v1593, %v1589
    %v2642 = vpack.c.b16 %v1594, %v1590
    %v2643 = vpack.c.b16 %v1599, %v1595
    %v2644 = vpack.c.b16 %v1600, %v1596
    %v2645 = vpack.c.b16 %v1601, %v1597
    %v2646 = vpack.c.b16 %v1602, %v1598
    %v2647 = vpack.c.b16 %v1607, %v1603
    %v2648 = vpack.c.b16 %v1608, %v1604
    %v2649 = vpack.c.b16 %v1609, %v1605
    %v2650 = vpack.c.b16 %v1610, %v1606
    %v2651 = vpack.c.b16 %v1615, %v1611
    %v2652 = vpack.c.b16 %v1616, %v1612
    %v2653 = vpack.c.b16 %v1617, %v1613
    %v2654 = vpack.c.b16 %v1618, %v1614
    %v2655 = vpack.c.b16 %v1623, %v1619
    %v2656 = vpack.c.b16 %v1624, %v1620
    %v2657 = vpack.c.b16 %v1625, %v1621
    %v2658 = vpack.c.b16 %v1626, %v1622
    %v2659 = vpack.c.b16 %v1631, %v1627
    %v2660 = vpack.c.b16 %v1632, %v1628
    %v2661 = vpack.c.b16 %v1633, %v1629
    %v2662 = vpack.c.b16 %v1634, %v1630
    %v2663 = vpack.c.b16 %v1639, %v1635
    %v2664 = vpack.c.b16 %v1640, %v1636
    %v2665 = vpack.c.b16 %v1641, %v1637
    %v2666 = vpack.c.b16 %v1642, %v1638
    %v2667 = vpack.c.b16 %v1647, %v1643
    %v2668 = vpack.c.b16 %v1648, %v1644
    %v2669 = vpack.c.b16 %v1649, %v1645
    %v2670 = vpack.c.b16 %v1650, %v1646
    %v2671 = vpack.c.b16 %v1655, %v1651
    %v2672 = vpack.c.b16 %v1656, %v1652
    %v2673 = vpack.c.b16 %v1657, %v1653
    %v2674 = vpack.c.b16 %v1658, %v1654
    %v2675 = vpack.c.b16 %v1663, %v1659
    %v2676 = vpack.c.b16 %v1664, %v1660
    %v2677 = vpack.c.b16 %v1665, %v1661
    %v2678 = vpack.c.b16 %v1666, %v1662
    %v2679 = vpack.c.b16 %v1671, %v1667
    %v2680 = vpack.c.b16 %v1672, %v1668
    %v2681 = vpack.c.b16 %v1673, %v1669
    %v2682 = vpack.c.b16 %v1674, %v1670
    %v2683 = vpack.c.b16 %v1679, %v1675
    %v2684 = vpack.c.b16 %v1680, %v1676
    %v2685 = vpack.c.b16 %v1681, %v1677
    %v2686 = vpack.c.b16 %v1682, %v1678
    %v2687 = vpack.c.b16 %v1687, %v1683
    %v2688 = vpack.c.b16 %v1688, %v1684
    %v2689 = vpack.c.b16 %v1689, %v1685
    %v2690 = vpack.c.b16 %v1690, %v1686
    %v2691 = vpack.c.b16 %v1695, %v1691
    %v2692 = vpack.c.b16 %v1696, %v1692
    %v2693 = vpack.c.b16 %v1697, %v1693
    %v2694 = vpack.c.b16 %v1698, %v1694
    %v2695 = vpack.c.b16 %v1703, %v1699
    %v2696 = vpack.c.b16 %v1704, %v1700
    %v2697 = vpack.c.b16 %v1705, %v1701
    %v2698 = vpack.c.b16 %v1706, %v1702
    %v2699 = vpack.c.b16 %v1711, %v1707
    %v2700 = vpack.c.b16 %v1712, %v1708
    %v2701 = vpack.c.b16 %v1713, %v1709
    %v2702 = vpack.c.b16 %v1714, %v1710
    %v2703 = vpack.c.b16 %v1719, %v1715
    %v2704 = vpack.c.b16 %v1720, %v1716
    %v2705 = vpack.c.b16 %v1721, %v1717
    %v2706 = vpack.c.b16 %v1722, %v1718
    %v2707 = vpack.c.b16 %v1727, %v1723
    %v2708 = vpack.c.b16 %v1728, %v1724
    %v2709 = vpack.c.b16 %v1729, %v1725
    %v2710 = vpack.c.b16 %v1730, %v1726
    %v2711 = vpack.c.b16 %v1735, %v1731
    %v2712 = vpack.c.b16 %v1736, %v1732
    %v2713 = vpack.c.b16 %v1737, %v1733
    %v2714 = vpack.c.b16 %v1738, %v1734
    %v2715 = vpack.c.b16 %v1743, %v1739
    %v2716 = vpack.c.b16 %v1744, %v1740
    %v2717 = vpack.c.b16 %v1745, %v1741
    %v2718 = vpack.c.b16 %v1746, %v1742
    %v2719 = vpack.c.b16 %v1751, %v1747
    %v2720 = vpack.c.b16 %v1752, %v1748
    %v2721 = vpack.c.b16 %v1753, %v1749
    %v2722 = vpack.c.b16 %v1754, %v1750
    %v2723 = vpack.c.b16 %v1759, %v1755
    %v2724 = vpack.c.b16 %v1760, %v1756
    %v2725 = vpack.c.b16 %v1761, %v1757
    %v2726 = vpack.c.b16 %v1762, %v1758
    %v2727 = vpack.c.b16 %v1767, %v1763
    %v2728 = vpack.c.b16 %v1768, %v1764
    %v2729 = vpack.c.b16 %v1769, %v1765
    %v2730 = vpack.c.b16 %v1770, %v1766
    %v2731 = vpack.c.b16 %v1775, %v1771
    %v2732 = vpack.c.b16 %v1776, %v1772
    %v2733 = vpack.c.b16 %v1777, %v1773
    %v2734 = vpack.c.b16 %v1778, %v1774
    %v2735 = vpack.c.b16 %v1783, %v1779
    %v2736 = vpack.c.b16 %v1784, %v1780
    %v2737 = vpack.c.b16 %v1785, %v1781
    %v2738 = vpack.c.b16 %v1786, %v1782
    %v2739 = vpack.c.b16 %v1791, %v1787
    %v2740 = vpack.c.b16 %v1792, %v1788
    %v2741 = vpack.c.b16 %v1793, %v1789
    %v2742 = vpack.c.b16 %v1794, %v1790
    %v2743 = vpack.c.b16 %v1799, %v1795
    %v2744 = vpack.c.b16 %v1800, %v1796
    %v2745 = vpack.c.b16 %v1801, %v1797
    %v2746 = vpack.c.b16 %v1802, %v1798
    %v2747 = vpack.c.b16 %v1807, %v1803
    %v2748 = vpack.c.b16 %v1808, %v1804
    %v2749 = vpack.c.b16 %v1809, %v1805
    %v2750 = vpack.c.b16 %v1810, %v1806
    %v2751 = vpack.c.b16 %v1815, %v1811
    %v2752 = vpack.c.b16 %v1816, %v1812
    %v2753 = vpack.c.b16 %v1817, %v1813
    %v2754 = vpack.c.b16 %v1818, %v1814
    %v2755 = vpack.c.b16 %v1823, %v1819
    %v2756 = vpack.c.b16 %v1824, %v1820
    %v2757 = vpack.c.b16 %v1825, %v1821
    %v2758 = vpack.c.b16 %v1826, %v1822
    %v2759 = vpack.c.b16 %v1831, %v1827
    %v2760 = vpack.c.b16 %v1832, %v1828
    %v2761 = vpack.c.b16 %v1833, %v1829
    %v2762 = vpack.c.b16 %v1834, %v1830
    %v2763 = vpack.c.b16 %v1839, %v1835
    %v2764 = vpack.c.b16 %v1840, %v1836
    %v2765 = vpack.c.b16 %v1841, %v1837
    %v2766 = vpack.c.b16 %v1842, %v1838
    %v2767 = vpack.c.b16 %v1847, %v1843
    %v2768 = vpack.c.b16 %v1848, %v1844
    %v2769 = vpack.c.b16 %v1849, %v1845
    %v2770 = vpack.c.b16 %v1850, %v1846
    %v2771 = vpack.c.b16 %v1855, %v1851
    %v2772 = vpack.c.b16 %v1856, %v1852
    %v2773 = vpack.c.b16 %v1857, %v1853
    %v2774 = vpack.c.b16 %v1858, %v1854
    %v2775 = vpack.c.b16 %v1863, %v1859
    %v2776 = vpack.c.b16 %v1864, %v1860
    %v2777 = vpack.c.b16 %v1865, %v1861
    %v2778 = vpack.c.b16 %v1866, %v1862
    %v2779 = vpack.c.b16 %v1871, %v1867
    %v2780 = vpack.c.b16 %v1872, %v1868
    %v2781 = vpack.c.b16 %v1873, %v1869
    %v2782 = vpack.c.b16 %v1874, %v1870
    %v2783 = vpack.c.b16 %v1879, %v1875
    %v2784 = vpack.c.b16 %v1880, %v1876
    %v2785 = vpack.c.b16 %v1881, %v1877
    %v2786 = vpack.c.b16 %v1882, %v1878
    %v2787 = vpack.c.b16 %v1887, %v1883
    %v2788 = vpack.c.b16 %v1888, %v1884
    %v2789 = vpack.c.b16 %v1889, %v1885
    %v2790 = vpack.c.b16 %v1890, %v1886
    %v2791 = vpack.c.b16 %v1895, %v1891
    %v2792 = vpack.c.b16 %v1896, %v1892
    %v2793 = vpack.c.b16 %v1897, %v1893
    %v2794 = vpack.c.b16 %v1898, %v1894
    %v2795 = vpack.c.b16 %v1903, %v1899
    %v2796 = vpack.c.b16 %v1904, %v1900
    %v2797 = vpack.c.b16 %v1905, %v1901
    %v2798 = vpack.c.b16 %v1906, %v1902
    %v2799 = vpack.c.b16 %v1911, %v1907
    %v2800 = vpack.c.b16 %v1912, %v1908
    %v2801 = vpack.c.b16 %v1913, %v1909
    %v2802 = vpack.c.b16 %v1914, %v1910
    %v2803 = vpack.c.b16 %v1919, %v1915
    %v2804 = vpack.c.b16 %v1920, %v1916
    %v2805 = vpack.c.b16 %v1921, %v1917
    %v2806 = vpack.c.b16 %v1922, %v1918
    %v2807 = vpack.c.b16 %v1927, %v1923
    %v2808 = vpack.c.b16 %v1928, %v1924
    %v2809 = vpack.c.b16 %v1929, %v1925
    %v2810 = vpack.c.b16 %v1930, %v1926
    %v2811 = vpack.c.b16 %v1935, %v1931
    %v2812 = vpack.c.b16 %v1936, %v1932
    %v2813 = vpack.c.b16 %v1937, %v1933
    %v2814 = vpack.c.b16 %v1938, %v1934
    %v2815 = vpack.c.b16 %v1943, %v1939
    %v2816 = vpack.c.b16 %v1944, %v1940
    %v2817 = vpack.c.b16 %v1945, %v1941
    %v2818 = vpack.c.b16 %v1946, %v1942
    %v2819 = vpack.c.b16 %v1951, %v1947
    %v2820 = vpack.c.b16 %v1952, %v1948
    %v2821 = vpack.c.b16 %v1953, %v1949
    %v2822 = vpack.c.b16 %v1954, %v1950
    %v2823 = vpack.c.b16 %v1959, %v1955
    %v2824 = vpack.c.b16 %v1960, %v1956
    %v2825 = vpack.c.b16 %v1961, %v1957
    %v2826 = vpack.c.b16 %v1962, %v1958
    %v2827 = vpack.c.b16 %v1967, %v1963
    %v2828 = vpack.c.b16 %v1968, %v1964
    %v2829 = vpack.c.b16 %v1969, %v1965
    %v2830 = vpack.c.b16 %v1970, %v1966
    %v2831 = vpack.c.b16 %v1975, %v1971
    %v2832 = vpack.c.b16 %v1976, %v1972
    %v2833 = vpack.c.b16 %v1977, %v1973
    %v2834 = vpack.c.b16 %v1978, %v1974
    %v2835 = vpack.c.b16 %v1983, %v1979
    %v2836 = vpack.c.b16 %v1984, %v1980
    %v2837 = vpack.c.b16 %v1985, %v1981
    %v2838 = vpack.c.b16 %v1986, %v1982
    %v2839 = vpack.c.b16 %v1991, %v1987
    %v2840 = vpack.c.b16 %v1992, %v1988
    %v2841 = vpack.c.b16 %v1993, %v1989
    %v2842 = vpack.c.b16 %v1994, %v1990
    %v2843 = vpack.c.b16 %v1999, %v1995
    %v2844 = vpack.c.b16 %v2000, %v1996
    %v2845 = vpack.c.b16 %v2001, %v1997
    %v2846 = vpack.c.b16 %v2002, %v1998
    %v2847 = vpack.c.b16 %v2007, %v2003
    %v2848 = vpack.c.b16 %v2008, %v2004
    %v2849 = vpack.c.b16 %v2009, %v2005
    %v2850 = vpack.c.b16 %v2010, %v2006
    %v2851 = vpack.c.b16 %v2015, %v2011
    %v2852 = vpack.c.b16 %v2016, %v2012
    %v2853 = vpack.c.b16 %v2017, %v2013
    %v2854 = vpack.c.b16 %v2018, %v2014
    %v2855 = vpack.c.b16 %v2023, %v2019
    %v2856 = vpack.c.b16 %v2024, %v2020
    %v2857 = vpack.c.b16 %v2025, %v2021
    %v2858 = vpack.c.b16 %v2026, %v2022
    %v2859 = vpack.c.b16 %v2031, %v2027
    %v2860 = vpack.c.b16 %v2032, %v2028
    %v2861 = vpack.c.b16 %v2033, %v2029
    %v2862 = vpack.c.b16 %v2034, %v2030
    %v2863 = vpack.c.b16 %v2039, %v2035
    %v2864 = vpack.c.b16 %v2040, %v2036
    %v2865 = vpack.c.b16 %v2041, %v2037
    %v2866 = vpack.c.b16 %v2042, %v2038
    %v2867 = vpack.c.b16 %v2047, %v2043
    %v2868 = vpack.c.b16 %v2048, %v2044
    %v2869 = vpack.c.b16 %v2049, %v2045
    %v2870 = vpack.c.b16 %v2050, %v2046
    %v2871 = vpack.c.b16 %v2055, %v2051
    %v2872 = vpack.c.b16 %v2056, %v2052
    %v2873 = vpack.c.b16 %v2057, %v2053
    %v2874 = vpack.c.b16 %v2058, %v2054
    %v2875 = vpack.c.b16 %v2063, %v2059
    %v2876 = vpack.c.b16 %v2064, %v2060
    %v2877 = vpack.c.b16 %v2065, %v2061
    %v2878 = vpack.c.b16 %v2066, %v2062
    %v2879 = vpack.c.b16 %v2071, %v2067
    %v2880 = vpack.c.b16 %v2072, %v2068
    %v2881 = vpack.c.b16 %v2073, %v2069
    %v2882 = vpack.c.b16 %v2074, %v2070
    %v2883 = vpack.c.b16 %v2079, %v2075
    %v2884 = vpack.c.b16 %v2080, %v2076
    %v2885 = vpack.c.b16 %v2081, %v2077
    %v2886 = vpack.c.b16 %v2082, %v2078
    %v2887 = vpack.c.b16 %v2087, %v2083
    %v2888 = vpack.c.b16 %v2088, %v2084
    %v2889 = vpack.c.b16 %v2089, %v2085
    %v2890 = vpack.c.b16 %v2090, %v2086
    %v2891 = vpack.c.b16 %v2095, %v2091
    %v2892 = vpack.c.b16 %v2096, %v2092
    %v2893 = vpack.c.b16 %v2097, %v2093
    %v2894 = vpack.c.b16 %v2098, %v2094
    %v2895 = vpack.c.b16 %v2103, %v2099
    %v2896 = vpack.c.b16 %v2104, %v2100
    %v2897 = vpack.c.b16 %v2105, %v2101
    %v2898 = vpack.c.b16 %v2106, %v2102
    %v2899 = vpack.c.b16 %v2111, %v2107
    %v2900 = vpack.c.b16 %v2112, %v2108
    %v2901 = vpack.c.b16 %v2113, %v2109
    %v2902 = vpack.c.b16 %v2114, %v2110
    %v2903 = vpack.c.b16 %v2119, %v2115
    %v2904 = vpack.c.b16 %v2120, %v2116
    %v2905 = vpack.c.b16 %v2121, %v2117
    %v2906 = vpack.c.b16 %v2122, %v2118
    %v2907 = vpack.c.b16 %v2127, %v2123
    %v2908 = vpack.c.b16 %v2128, %v2124
    %v2909 = vpack.c.b16 %v2129, %v2125
    %v2910 = vpack.c.b16 %v2130, %v2126
    %v2911 = vpack.c.b16 %v2135, %v2131
    %v2912 = vpack.c.b16 %v2136, %v2132
    %v2913 = vpack.c.b16 %v2137, %v2133
    %v2914 = vpack.c.b16 %v2138, %v2134
    %v2915 = vpack.c.b16 %v2143, %v2139
    %v2916 = vpack.c.b16 %v2144, %v2140
    %v2917 = vpack.c.b16 %v2145, %v2141
    %v2918 = vpack.c.b16 %v2146, %v2142
    %v2919 = vpack.c.b16 %v2151, %v2147
    %v2920 = vpack.c.b16 %v2152, %v2148
    %v2921 = vpack.c.b16 %v2153, %v2149
    %v2922 = vpack.c.b16 %v2154, %v2150
    %v2923 = vpack.c.b16 %v2159, %v2155
    %v2924 = vpack.c.b16 %v2160, %v2156
    %v2925 = vpack.c.b16 %v2161, %v2157
    %v2926 = vpack.c.b16 %v2162, %v2158
    %v2927 = vpack.c.b16 %v2167, %v2163
    %v2928 = vpack.c.b16 %v2168, %v2164
    %v2929 = vpack.c.b16 %v2169, %v2165
    %v2930 = vpack.c.b16 %v2170, %v2166
    %v2931 = vpack.c.b16 %v2175, %v2171
    %v2932 = vpack.c.b16 %v2176, %v2172
    %v2933 = vpack.c.b16 %v2177, %v2173
    %v2934 = vpack.c.b16 %v2178, %v2174
    %v2935 = vpack.c.b16 %v2183, %v2179
    %v2936 = vpack.c.b16 %v2184, %v2180
    %v2937 = vpack.c.b16 %v2185, %v2181
    %v2938 = vpack.c.b16 %v2186, %v2182
    %v2939 = vpack.c.b16 %v2191, %v2187
    %v2940 = vpack.c.b16 %v2192, %v2188
    %v2941 = vpack.c.b16 %v2193, %v2189
    %v2942 = vpack.c.b16 %v2194, %v2190
    %v2943 = vpack.c.b16 %v2199, %v2195
    %v2944 = vpack.c.b16 %v2200, %v2196
    %v2945 = vpack.c.b16 %v2201, %v2197
    %v2946 = vpack.c.b16 %v2202, %v2198
    %v2947 = vpack.c.b16 %v2207, %v2203
    %v2948 = vpack.c.b16 %v2208, %v2204
    %v2949 = vpack.c.b16 %v2209, %v2205
    %v2950 = vpack.c.b16 %v2210, %v2206
    %v2951 = vpack.c.b16 %v2215, %v2211
    %v2952 = vpack.c.b16 %v2216, %v2212
    %v2953 = vpack.c.b16 %v2217, %v2213
    %v2954 = vpack.c.b16 %v2218, %v2214
    %v2955 = vpack.c.b16 %v2223, %v2219
    %v2956 = vpack.c.b16 %v2224, %v2220
    %v2957 = vpack.c.b16 %v2225, %v2221
    %v2958 = vpack.c.b16 %v2226, %v2222
    %v2959 = vpack.c.b16 %v2231, %v2227
    %v2960 = vpack.c.b16 %v2232, %v2228
    %v2961 = vpack.c.b16 %v2233, %v2229
    %v2962 = vpack.c.b16 %v2234, %v2230
    %v2963 = vpack.c.b16 %v2239, %v2235
    %v2964 = vpack.c.b16 %v2240, %v2236
    %v2965 = vpack.c.b16 %v2241, %v2237
    %v2966 = vpack.c.b16 %v2242, %v2238
    %v2967 = vpack.c.b16 %v2247, %v2243
    %v2968 = vpack.c.b16 %v2248, %v2244
    %v2969 = vpack.c.b16 %v2249, %v2245
    %v2970 = vpack.c.b16 %v2250, %v2246
    %v2971 = vpack.c.b16 %v2255, %v2251
    %v2972 = vpack.c.b16 %v2256, %v2252
    %v2973 = vpack.c.b16 %v2257, %v2253
    %v2974 = vpack.c.b16 %v2258, %v2254
    %v2975 = vpack.c.b16 %v2263, %v2259
    %v2976 = vpack.c.b16 %v2264, %v2260
    %v2977 = vpack.c.b16 %v2265, %v2261
    %v2978 = vpack.c.b16 %v2266, %v2262
    %v2979 = vpack.c.b16 %v2271, %v2267
    %v2980 = vpack.c.b16 %v2272, %v2268
    %v2981 = vpack.c.b16 %v2273, %v2269
    %v2982 = vpack.c.b16 %v2274, %v2270
    %v2983 = vpack.c.b16 %v2279, %v2275
    %v2984 = vpack.c.b16 %v2280, %v2276
    %v2985 = vpack.c.b16 %v2281, %v2277
    %v2986 = vpack.c.b16 %v2282, %v2278
    %v2987 = vpack.c.b16 %v2287, %v2283
    %v2988 = vpack.c.b16 %v2288, %v2284
    %v2989 = vpack.c.b16 %v2289, %v2285
    %v2990 = vpack.c.b16 %v2290, %v2286
    %v2991 = vpack.c.b16 %v2295, %v2291
    %v2992 = vpack.c.b16 %v2296, %v2292
    %v2993 = vpack.c.b16 %v2297, %v2293
    %v2994 = vpack.c.b16 %v2298, %v2294
    %v2995 = vpack.c.b16 %v2303, %v2299
    %v2996 = vpack.c.b16 %v2304, %v2300
    %v2997 = vpack.c.b16 %v2305, %v2301
    %v2998 = vpack.c.b16 %v2306, %v2302
    %v2999 = vpack.c.b16 %v2311, %v2307
    %v3000 = vpack.c.b16 %v2312, %v2308
    %v3001 = vpack.c.b16 %v2313, %v2309
    %v3002 = vpack.c.b16 %v2314, %v2310
    %v3003 = vpack.c.b16 %v2319, %v2315
    %v3004 = vpack.c.b16 %v2320, %v2316
    %v3005 = vpack.c.b16 %v2321, %v2317
    %v3006 = vpack.c.b16 %v2322, %v2318
    %v3007 = vpack.c.b16 %v2327, %v2323
    %v3008 = vpack.c.b16 %v2328, %v2324
    %v3009 = vpack.c.b16 %v2329, %v2325
    %v3010 = vpack.c.b16 %v2330, %v2326
    %v3011 = vpack.c.b16 %v2335, %v2331
    %v3012 = vpack.c.b16 %v2336, %v2332
    %v3013 = vpack.c.b16 %v2337, %v2333
    %v3014 = vpack.c.b16 %v2338, %v2334
    %v3015 = vpack.c.b16 %v2343, %v2339
    %v3016 = vpack.c.b16 %v2344, %v2340
    %v3017 = vpack.c.b16 %v2345, %v2341
    %v3018 = vpack.c.b16 %v2346, %v2342
    %v3019 = vpack.c.b16 %v2351, %v2347
    %v3020 = vpack.c.b16 %v2352, %v2348
    %v3021 = vpack.c.b16 %v2353, %v2349
    %v3022 = vpack.c.b16 %v2354, %v2350
    %v3023 = vpack.c.b16 %v2359, %v2355
    %v3024 = vpack.c.b16 %v2360, %v2356
    %v3025 = vpack.c.b16 %v2361, %v2357
    %v3026 = vpack.c.b16 %v2362, %v2358
    %v3027 = vpack.c.b16 %v2367, %v2363
    %v3028 = vpack.c.b16 %v2368, %v2364
    %v3029 = vpack.c.b16 %v2369, %v2365
    %v3030 = vpack.c.b16 %v2370, %v2366
    %v3031 = vpack.c.b16 %v2375, %v2371
    %v3032 = vpack.c.b16 %v2376, %v2372
    %v3033 = vpack.c.b16 %v2377, %v2373
    %v3034 = vpack.c.b16 %v2378, %v2374
    %v3035 = vpack.c.b16 %v2383, %v2379
    %v3036 = vpack.c.b16 %v2384, %v2380
    %v3037 = vpack.c.b16 %v2385, %v2381
    %v3038 = vpack.c.b16 %v2386, %v2382
    %v3039 = vpack.c.b16 %v2391, %v2387
    %v3040 = vpack.c.b16 %v2392, %v2388
    %v3041 = vpack.c.b16 %v2393, %v2389
    %v3042 = vpack.c.b16 %v2394, %v2390
    %v3043 = vpack.c.b16 %v2399, %v2395
    %v3044 = vpack.c.b16 %v2400, %v2396
    %v3045 = vpack.c.b16 %v2401, %v2397
    %v3046 = vpack.c.b16 %v2402, %v2398
    %v3047 = vpack.c.b16 %v2407, %v2403
    %v3048 = vpack.c.b16 %v2408, %v2404
    %v3049 = vpack.c.b16 %v2409, %v2405
    %v3050 = vpack.c.b16 %v2410, %v2406
    %v3051 = vpack.c.b16 %v2415, %v2411
    %v3052 = vpack.c.b16 %v2416, %v2412
    %v3053 = vpack.c.b16 %v2417, %v2413
    %v3054 = vpack.c.b16 %v2418, %v2414
    %v3055 = vpack.c.b16 %v2423, %v2419
    %v3056 = vpack.c.b16 %v2424, %v2420
    %v3057 = vpack.c.b16 %v2425, %v2421
    %v3058 = vpack.c.b16 %v2426, %v2422
    %v3059 = vpack.c.b16 %v2431, %v2427
    %v3060 = vpack.c.b16 %v2432, %v2428
    %v3061 = vpack.c.b16 %v2433, %v2429
    %v3062 = vpack.c.b16 %v2434, %v2430
    %v3063 = vpack.c.b16 %v2439, %v2435
    %v3064 = vpack.c.b16 %v2440, %v2436
    %v3065 = vpack.c.b16 %v2441, %v2437
    %v3066 = vpack.c.b16 %v2442, %v2438
    %v3067 = vpack.c.b16 %v2447, %v2443
    %v3068 = vpack.c.b16 %v2448, %v2444
    %v3069 = vpack.c.b16 %v2449, %v2445
    %v3070 = vpack.c.b16 %v2450, %v2446
    %v3071 = vpack.c.b16 %v2455, %v2451
    %v3072 = vpack.c.b16 %v2456, %v2452
    %v3073 = vpack.c.b16 %v2457, %v2453
    %v3074 = vpack.c.b16 %v2458, %v2454
    %v3075 = vpack.c.b16 %v2463, %v2459
    %v3076 = vpack.c.b16 %v2464, %v2460
    %v3077 = vpack.c.b16 %v2465, %v2461
    %v3078 = vpack.c.b16 %v2466, %v2462
    %v3079 = vpack.c.b16 %v2471, %v2467
    %v3080 = vpack.c.b16 %v2472, %v2468
    %v3081 = vpack.c.b16 %v2473, %v2469
    %v3082 = vpack.c.b16 %v2474, %v2470
    %v3083 = vpack.c.b16 %v2479, %v2475
    %v3084 = vpack.c.b16 %v2480, %v2476
    %v3085 = vpack.c.b16 %v2481, %v2477
    %v3086 = vpack.c.b16 %v2482, %v2478
    %v3087 = vpack.c.b16 %v2487, %v2483
    %v3088 = vpack.c.b16 %v2488, %v2484
    %v3089 = vpack.c.b16 %v2489, %v2485
    %v3090 = vpack.c.b16 %v2490, %v2486
    %v3091 = vpack.c.b16 %v2495, %v2491
    %v3092 = vpack.c.b16 %v2496, %v2492
    %v3093 = vpack.c.b16 %v2497, %v2493
    %v3094 = vpack.c.b16 %v2498, %v2494
    %v3095 = vpack.c.b16 %v2503, %v2499
    %v3096 = vpack.c.b16 %v2504, %v2500
    %v3097 = vpack.c.b16 %v2505, %v2501
    %v3098 = vpack.c.b16 %v2506, %v2502
    %v3099 = vpack.c.b16 %v2511, %v2507
    %v3100 = vpack.c.b16 %v2512, %v2508
    %v3101 = vpack.c.b16 %v2513, %v2509
    %v3102 = vpack.c.b16 %v2514, %v2510
    %vm3691 = vcmask 392192
    %v3693 = vsel %vm3691, %v140, 0
    %3695 = vmatprep.subr.bf16.mxu0 %v2516
    %3696 = vmatpush1.bf16.msra.mxu0 %v2515
    %3697 = vmatprep.subr.bf16.mxu0 %v2520
    %3698 = vmatpush1.bf16.msra.mxu0 %v2519
    %3699 = vmatprep.subr.bf16.mxu0 %v2524
    %3700 = vmatpush1.bf16.msra.mxu0 %v2523
    %3701 = vmatprep.subr.bf16.mxu0 %v2528
    %3702 = vmatpush1.bf16.msra.mxu0 %v2527
    %3703 = vmatprep.subr.bf16.mxu0 %v2532
    %3704 = vmatpush1.bf16.msra.mxu0 %v2531
    %3705 = vmatprep.subr.bf16.mxu0 %v2536
    %3706 = vmatpush1.bf16.msra.mxu0 %v2535
    %3707 = vmatprep.subr.bf16.mxu0 %v2540
    %3708 = vmatpush1.bf16.msra.mxu0 %v2539
    %3709 = vmatprep.subr.bf16.mxu0 %v2544
    %3710 = vmatpush1.bf16.msra.mxu0 %v2543
    %3711 = vmatprep.subr.bf16.mxu0 %v2548
    %3712 = vmatpush1.bf16.msra.mxu0 %v2547
    %3713 = vmatprep.subr.bf16.mxu0 %v2552
    %3714 = vmatpush1.bf16.msra.mxu0 %v2551
    %3715 = vmatprep.subr.bf16.mxu0 %v2556
    %3716 = vmatpush1.bf16.msra.mxu0 %v2555
    %3717 = vmatprep.subr.bf16.mxu0 %v2560
    %3718 = vmatpush1.bf16.msra.mxu0 %v2559
    %3719 = vmatprep.subr.bf16.mxu0 %v2564
    %3720 = vmatpush1.bf16.msra.mxu0 %v2563
    %3721 = vmatprep.subr.bf16.mxu0 %v2568
    %3722 = vmatpush1.bf16.msra.mxu0 %v2567
    %3723 = vmatprep.subr.bf16.mxu0 %v2572
    %3724 = vmatpush1.bf16.msra.mxu0 %v2571
    %3725 = vmatprep.subr.bf16.mxu0 %v2576
    %3726 = vmatpush1.bf16.msra.mxu0 %v2575
    %3727 = vmatprep.mubr.bf16.mxu0 %v123
    %3728 = vmatmul.mubr.bf16.gmra.mrb[0].mxu0 %v122
    %v3729 = vpop.f32.mrb[0].mxu0
    %v3730 = vadd.f32 %v734, %v3729
    %v3731 = vpop.f32.mrb[0].mxu0
    %v3732 = vadd.f32 %v738, %v3731
    %v3733 = vpop.f32.mrb[0].mxu0
    %v3734 = vpop.f32.mrb[0].mxu0
    %3735 = vdwg.mxu0
    %3736 = vmatprep.subr.bf16.mxu0 %v2580
    %3737 = vmatpush1.bf16.msra.mxu0 %v2579
    %3738 = vmatprep.subr.bf16.mxu0 %v2584
    %3739 = vmatpush1.bf16.msra.mxu0 %v2583
    %3740 = vmatprep.subr.bf16.mxu0 %v2588
    %3741 = vmatpush1.bf16.msra.mxu0 %v2587
    %3742 = vmatprep.subr.bf16.mxu0 %v2592
    %3743 = vmatpush1.bf16.msra.mxu0 %v2591
    %3744 = vmatprep.subr.bf16.mxu0 %v2596
    %3745 = vmatpush1.bf16.msra.mxu0 %v2595
    %3746 = vmatprep.subr.bf16.mxu0 %v2600
    %3747 = vmatpush1.bf16.msra.mxu0 %v2599
    %3748 = vmatprep.subr.bf16.mxu0 %v2604
    %3749 = vmatpush1.bf16.msra.mxu0 %v2603
    %3750 = vmatprep.subr.bf16.mxu0 %v2608
    %3751 = vmatpush1.bf16.msra.mxu0 %v2607
    %3752 = vmatprep.subr.bf16.mxu0 %v2612
    %3753 = vmatpush1.bf16.msra.mxu0 %v2611
    %3754 = vmatprep.subr.bf16.mxu0 %v2616
    %3755 = vmatpush1.bf16.msra.mxu0 %v2615
    %3756 = vmatprep.subr.bf16.mxu0 %v2620
    %3757 = vmatpush1.bf16.msra.mxu0 %v2619
    %3758 = vmatprep.subr.bf16.mxu0 %v2624
    %3759 = vmatpush1.bf16.msra.mxu0 %v2623
    %3760 = vmatprep.subr.bf16.mxu0 %v2628
    %3761 = vmatpush1.bf16.msra.mxu0 %v2627
    %3762 = vmatprep.subr.bf16.mxu0 %v2632
    %3763 = vmatpush1.bf16.msra.mxu0 %v2631
    %3764 = vmatprep.subr.bf16.mxu0 %v2636
    %3765 = vmatpush1.bf16.msra.mxu0 %v2635
    %3766 = vmatprep.subr.bf16.mxu0 %v2640
    %3767 = vmatpush1.bf16.msra.mxu0 %v2639
    %3768 = vmatprep.mubr.bf16.mxu0 %v125
    %3769 = vmatmul.mubr.bf16.gmra.mrb[0].mxu0 %v124
    %v3770 = vpop.f32.mrb[0].mxu0
    %v3771 = vadd.f32 %v3730, %v3770
    %v3772 = vpop.f32.mrb[0].mxu0
    %v3773 = vadd.f32 %v3732, %v3772
    %v3774 = vpop.f32.mrb[0].mxu0
    %v3775 = vpop.f32.mrb[0].mxu0
    %3776 = vdwg.mxu0
    %3777 = vmatprep.subr.bf16.mxu0 %v2644
    %3778 = vmatpush1.bf16.msra.mxu0 %v2643
    %3779 = vmatprep.subr.bf16.mxu0 %v2648
    %3780 = vmatpush1.bf16.msra.mxu0 %v2647
    %3781 = vmatprep.subr.bf16.mxu0 %v2652
    %3782 = vmatpush1.bf16.msra.mxu0 %v2651
    %3783 = vmatprep.subr.bf16.mxu0 %v2656
    %3784 = vmatpush1.bf16.msra.mxu0 %v2655
    %3785 = vmatprep.subr.bf16.mxu0 %v2660
    %3786 = vmatpush1.bf16.msra.mxu0 %v2659
    %3787 = vmatprep.subr.bf16.mxu0 %v2664
    %3788 = vmatpush1.bf16.msra.mxu0 %v2663
    %3789 = vmatprep.subr.bf16.mxu0 %v2668
    %3790 = vmatpush1.bf16.msra.mxu0 %v2667
    %3791 = vmatprep.subr.bf16.mxu0 %v2672
    %3792 = vmatpush1.bf16.msra.mxu0 %v2671
    %3793 = vmatprep.subr.bf16.mxu0 %v2676
    %3794 = vmatpush1.bf16.msra.mxu0 %v2675
    %3795 = vmatprep.subr.bf16.mxu0 %v2680
    %3796 = vmatpush1.bf16.msra.mxu0 %v2679
    %3797 = vmatprep.subr.bf16.mxu0 %v2684
    %3798 = vmatpush1.bf16.msra.mxu0 %v2683
    %3799 = vmatprep.subr.bf16.mxu0 %v2688
    %3800 = vmatpush1.bf16.msra.mxu0 %v2687
    %3801 = vmatprep.subr.bf16.mxu0 %v2692
    %3802 = vmatpush1.bf16.msra.mxu0 %v2691
    %3803 = vmatprep.subr.bf16.mxu0 %v2696
    %3804 = vmatpush1.bf16.msra.mxu0 %v2695
    %3805 = vmatprep.subr.bf16.mxu0 %v2700
    %3806 = vmatpush1.bf16.msra.mxu0 %v2699
    %3807 = vmatprep.subr.bf16.mxu0 %v2704
    %3808 = vmatpush1.bf16.msra.mxu0 %v2703
    %3809 = vmatprep.mubr.bf16.mxu0 %v127
    %3810 = vmatmul.mubr.bf16.gmra.mrb[0].mxu0 %v126
    %v3811 = vpop.f32.mrb[0].mxu0
    %v3812 = vadd.f32 %v3771, %v3811
    %v3813 = vpop.f32.mrb[0].mxu0
    %v3814 = vadd.f32 %v3773, %v3813
    %v3815 = vpop.f32.mrb[0].mxu0
    %v3816 = vpop.f32.mrb[0].mxu0
    %3817 = vdwg.mxu0
    %3818 = vmatprep.subr.bf16.mxu0 %v2708
    %3819 = vmatpush1.bf16.msra.mxu0 %v2707
    %3820 = vmatprep.subr.bf16.mxu0 %v2712
    %3821 = vmatpush1.bf16.msra.mxu0 %v2711
    %3822 = vmatprep.subr.bf16.mxu0 %v2716
    %3823 = vmatpush1.bf16.msra.mxu0 %v2715
    %3824 = vmatprep.subr.bf16.mxu0 %v2720
    %3825 = vmatpush1.bf16.msra.mxu0 %v2719
    %3826 = vmatprep.subr.bf16.mxu0 %v2724
    %3827 = vmatpush1.bf16.msra.mxu0 %v2723
    %3828 = vmatprep.subr.bf16.mxu0 %v2728
    %3829 = vmatpush1.bf16.msra.mxu0 %v2727
    %3830 = vmatprep.subr.bf16.mxu0 %v2732
    %3831 = vmatpush1.bf16.msra.mxu0 %v2731
    %3832 = vmatprep.subr.bf16.mxu0 %v2736
    %3833 = vmatpush1.bf16.msra.mxu0 %v2735
    %3834 = vmatprep.subr.bf16.mxu0 %v2740
    %3835 = vmatpush1.bf16.msra.mxu0 %v2739
    %3836 = vmatprep.subr.bf16.mxu0 %v2744
    %3837 = vmatpush1.bf16.msra.mxu0 %v2743
    %3838 = vmatprep.subr.bf16.mxu0 %v2748
    %3839 = vmatpush1.bf16.msra.mxu0 %v2747
    %3840 = vmatprep.subr.bf16.mxu0 %v2752
    %3841 = vmatpush1.bf16.msra.mxu0 %v2751
    %3842 = vmatprep.subr.bf16.mxu0 %v2756
    %3843 = vmatpush1.bf16.msra.mxu0 %v2755
    %3844 = vmatprep.subr.bf16.mxu0 %v2760
    %3845 = vmatpush1.bf16.msra.mxu0 %v2759
    %3846 = vmatprep.subr.bf16.mxu0 %v2764
    %3847 = vmatpush1.bf16.msra.mxu0 %v2763
    %3848 = vmatprep.subr.bf16.mxu0 %v2768
    %3849 = vmatpush1.bf16.msra.mxu0 %v2767
    %3850 = vmatprep.mubr.bf16.mxu0 %v129
    %3851 = vmatmul.mubr.bf16.gmra.mrb[0].mxu0 %v128
    %v3852 = vpop.f32.mrb[0].mxu0
    %v3853 = vadd.f32 %v3812, %v3852
    %v3854 = vpop.f32.mrb[0].mxu0
    %v3855 = vadd.f32 %v3814, %v3854
    %v3856 = vpop.f32.mrb[0].mxu0
    %v3857 = vpop.f32.mrb[0].mxu0
    %3858 = vdwg.mxu0
    %3859 = vmatprep.subr.bf16.mxu0 %v2772
    %3860 = vmatpush1.bf16.msra.mxu0 %v2771
    %3861 = vmatprep.subr.bf16.mxu0 %v2776
    %3862 = vmatpush1.bf16.msra.mxu0 %v2775
    %3863 = vmatprep.subr.bf16.mxu0 %v2780
    %3864 = vmatpush1.bf16.msra.mxu0 %v2779
    %3865 = vmatprep.subr.bf16.mxu0 %v2784
    %3866 = vmatpush1.bf16.msra.mxu0 %v2783
    %3867 = vmatprep.subr.bf16.mxu0 %v2788
    %3868 = vmatpush1.bf16.msra.mxu0 %v2787
    %3869 = vmatprep.subr.bf16.mxu0 %v2792
    %3870 = vmatpush1.bf16.msra.mxu0 %v2791
    %3871 = vmatprep.subr.bf16.mxu0 %v2796
    %3872 = vmatpush1.bf16.msra.mxu0 %v2795
    %3873 = vmatprep.subr.bf16.mxu0 %v2800
    %3874 = vmatpush1.bf16.msra.mxu0 %v2799
    %3875 = vmatprep.subr.bf16.mxu0 %v2804
    %3876 = vmatpush1.bf16.msra.mxu0 %v2803
    %3877 = vmatprep.subr.bf16.mxu0 %v2808
    %3878 = vmatpush1.bf16.msra.mxu0 %v2807
    %3879 = vmatprep.subr.bf16.mxu0 %v2812
    %3880 = vmatpush1.bf16.msra.mxu0 %v2811
    %3881 = vmatprep.subr.bf16.mxu0 %v2816
    %3882 = vmatpush1.bf16.msra.mxu0 %v2815
    %3883 = vmatprep.subr.bf16.mxu0 %v2820
    %3884 = vmatpush1.bf16.msra.mxu0 %v2819
    %3885 = vmatprep.subr.bf16.mxu0 %v2824
    %3886 = vmatpush1.bf16.msra.mxu0 %v2823
    %3887 = vmatprep.subr.bf16.mxu0 %v2828
    %3888 = vmatpush1.bf16.msra.mxu0 %v2827
    %3889 = vmatprep.subr.bf16.mxu0 %v2832
    %3890 = vmatpush1.bf16.msra.mxu0 %v2831
    %3891 = vmatprep.mubr.bf16.mxu0 %v131
    %3892 = vmatmul.mubr.bf16.gmra.mrb[0].mxu0 %v130
    %v3893 = vpop.f32.mrb[0].mxu0
    %v3894 = vadd.f32 %v3853, %v3893
    %v3895 = vpop.f32.mrb[0].mxu0
    %v3896 = vadd.f32 %v3855, %v3895
    %v3897 = vpop.f32.mrb[0].mxu0
    %v3898 = vpop.f32.mrb[0].mxu0
    %3899 = vdwg.mxu0
    %3900 = vmatprep.subr.bf16.mxu0 %v2836
    %3901 = vmatpush1.bf16.msra.mxu0 %v2835
    %3902 = vmatprep.subr.bf16.mxu0 %v2840
    %3903 = vmatpush1.bf16.msra.mxu0 %v2839
    %3904 = vmatprep.subr.bf16.mxu0 %v2844
    %3905 = vmatpush1.bf16.msra.mxu0 %v2843
    %3906 = vmatprep.subr.bf16.mxu0 %v2848
    %3907 = vmatpush1.bf16.msra.mxu0 %v2847
    %3908 = vmatprep.subr.bf16.mxu0 %v2852
    %3909 = vmatpush1.bf16.msra.mxu0 %v2851
    %3910 = vmatprep.subr.bf16.mxu0 %v2856
    %3911 = vmatpush1.bf16.msra.mxu0 %v2855
    %3912 = vmatprep.subr.bf16.mxu0 %v2860
    %3913 = vmatpush1.bf16.msra.mxu0 %v2859
    %3914 = vmatprep.subr.bf16.mxu0 %v2864
    %3915 = vmatpush1.bf16.msra.mxu0 %v2863
    %3916 = vmatprep.subr.bf16.mxu0 %v2868
    %3917 = vmatpush1.bf16.msra.mxu0 %v2867
    %3918 = vmatprep.subr.bf16.mxu0 %v2872
    %3919 = vmatpush1.bf16.msra.mxu0 %v2871
    %3920 = vmatprep.subr.bf16.mxu0 %v2876
    %3921 = vmatpush1.bf16.msra.mxu0 %v2875
    %3922 = vmatprep.subr.bf16.mxu0 %v2880
    %3923 = vmatpush1.bf16.msra.mxu0 %v2879
    %3924 = vmatprep.subr.bf16.mxu0 %v2884
    %3925 = vmatpush1.bf16.msra.mxu0 %v2883
    %3926 = vmatprep.subr.bf16.mxu0 %v2888
    %3927 = vmatpush1.bf16.msra.mxu0 %v2887
    %3928 = vmatprep.subr.bf16.mxu0 %v2892
    %3929 = vmatpush1.bf16.msra.mxu0 %v2891
    %3930 = vmatprep.subr.bf16.mxu0 %v2896
    %3931 = vmatpush1.bf16.msra.mxu0 %v2895
    %3932 = vmatprep.mubr.bf16.mxu0 %v133
    %3933 = vmatmul.mubr.bf16.gmra.mrb[0].mxu0 %v132
    %v3934 = vpop.f32.mrb[0].mxu0
    %v3935 = vadd.f32 %v3894, %v3934
    %v3936 = vpop.f32.mrb[0].mxu0
    %v3937 = vadd.f32 %v3896, %v3936
    %v3938 = vpop.f32.mrb[0].mxu0
    %v3939 = vpop.f32.mrb[0].mxu0
    %3940 = vdwg.mxu0
    %3941 = vmatprep.subr.bf16.mxu0 %v2900
    %3942 = vmatpush1.bf16.msra.mxu0 %v2899
    %3943 = vmatprep.subr.bf16.mxu0 %v2904
    %3944 = vmatpush1.bf16.msra.mxu0 %v2903
    %3945 = vmatprep.subr.bf16.mxu0 %v2908
    %3946 = vmatpush1.bf16.msra.mxu0 %v2907
    %3947 = vmatprep.subr.bf16.mxu0 %v2912
    %3948 = vmatpush1.bf16.msra.mxu0 %v2911
    %3949 = vmatprep.subr.bf16.mxu0 %v2916
    %3950 = vmatpush1.bf16.msra.mxu0 %v2915
    %3951 = vmatprep.subr.bf16.mxu0 %v2920
    %3952 = vmatpush1.bf16.msra.mxu0 %v2919
    %3953 = vmatprep.subr.bf16.mxu0 %v2924
    %3954 = vmatpush1.bf16.msra.mxu0 %v2923
    %3955 = vmatprep.subr.bf16.mxu0 %v2928
    %3956 = vmatpush1.bf16.msra.mxu0 %v2927
    %3957 = vmatprep.subr.bf16.mxu0 %v2932
    %3958 = vmatpush1.bf16.msra.mxu0 %v2931
    %3959 = vmatprep.subr.bf16.mxu0 %v2936
    %3960 = vmatpush1.bf16.msra.mxu0 %v2935
    %3961 = vmatprep.subr.bf16.mxu0 %v2940
    %3962 = vmatpush1.bf16.msra.mxu0 %v2939
    %3963 = vmatprep.subr.bf16.mxu0 %v2944
    %3964 = vmatpush1.bf16.msra.mxu0 %v2943
    %3965 = vmatprep.subr.bf16.mxu0 %v2948
    %3966 = vmatpush1.bf16.msra.mxu0 %v2947
    %3967 = vmatprep.subr.bf16.mxu0 %v2952
    %3968 = vmatpush1.bf16.msra.mxu0 %v2951
    %3969 = vmatprep.subr.bf16.mxu0 %v2956
    %3970 = vmatpush1.bf16.msra.mxu0 %v2955
    %3971 = vmatprep.subr.bf16.mxu0 %v2960
    %3972 = vmatpush1.bf16.msra.mxu0 %v2959
    %3973 = vmatprep.mubr.bf16.mxu0 %v135
    %3974 = vmatmul.mubr.bf16.gmra.mrb[0].mxu0 %v134
    %v3975 = vpop.f32.mrb[0].mxu0
    %v3976 = vadd.f32 %v3935, %v3975
    %v3977 = vpop.f32.mrb[0].mxu0
    %v3978 = vadd.f32 %v3937, %v3977
    %v3979 = vpop.f32.mrb[0].mxu0
    %v3980 = vpop.f32.mrb[0].mxu0
    %3981 = vdwg.mxu0
    %3982 = vmatprep.subr.bf16.mxu0 %v2964
    %3983 = vmatpush1.bf16.msra.mxu0 %v2963
    %3984 = vmatprep.subr.bf16.mxu0 %v2968
    %3985 = vmatpush1.bf16.msra.mxu0 %v2967
    %3986 = vmatprep.subr.bf16.mxu0 %v2972
    %3987 = vmatpush1.bf16.msra.mxu0 %v2971
    %3988 = vmatprep.subr.bf16.mxu0 %v2976
    %3989 = vmatpush1.bf16.msra.mxu0 %v2975
    %3990 = vmatprep.subr.bf16.mxu0 %v2980
    %3991 = vmatpush1.bf16.msra.mxu0 %v2979
    %3992 = vmatprep.subr.bf16.mxu0 %v2984
    %3993 = vmatpush1.bf16.msra.mxu0 %v2983
    %3994 = vmatprep.subr.bf16.mxu0 %v2988
    %3995 = vmatpush1.bf16.msra.mxu0 %v2987
    %3996 = vmatprep.subr.bf16.mxu0 %v2992
    %3997 = vmatpush1.bf16.msra.mxu0 %v2991
    %3998 = vmatprep.subr.bf16.mxu0 %v2996
    %3999 = vmatpush1.bf16.msra.mxu0 %v2995
    %4000 = vmatprep.subr.bf16.mxu0 %v3000
    %4001 = vmatpush1.bf16.msra.mxu0 %v2999
    %4002 = vmatprep.subr.bf16.mxu0 %v3004
    %4003 = vmatpush1.bf16.msra.mxu0 %v3003
    %4004 = vmatprep.subr.bf16.mxu0 %v3008
    %4005 = vmatpush1.bf16.msra.mxu0 %v3007
    %4006 = vmatprep.subr.bf16.mxu0 %v3012
    %4007 = vmatpush1.bf16.msra.mxu0 %v3011
    %4008 = vmatprep.subr.bf16.mxu0 %v3016
    %4009 = vmatpush1.bf16.msra.mxu0 %v3015
    %4010 = vmatprep.subr.bf16.mxu0 %v3020
    %4011 = vmatpush1.bf16.msra.mxu0 %v3019
    %4012 = vmatprep.subr.bf16.mxu0 %v3024
    %4013 = vmatpush1.bf16.msra.mxu0 %v3023
    %4014 = vmatprep.mubr.bf16.mxu0 %v137
    %4015 = vmatmul.mubr.bf16.gmra.mrb[0].mxu0 %v136
    %v4016 = vpop.f32.mrb[0].mxu0
    %v4017 = vadd.f32 %v3976, %v4016
    %v4018 = vpop.f32.mrb[0].mxu0
    %v4019 = vadd.f32 %v3978, %v4018
    %v4020 = vpop.f32.mrb[0].mxu0
    %v4021 = vpop.f32.mrb[0].mxu0
    %4022 = vdwg.mxu0
    %4023 = vmatprep.subr.bf16.mxu0 %v3028
    %4024 = vmatpush1.bf16.msra.mxu0 %v3027
    %4025 = vmatprep.subr.bf16.mxu0 %v3032
    %4026 = vmatpush1.bf16.msra.mxu0 %v3031
    %4027 = vmatprep.subr.bf16.mxu0 %v3036
    %4028 = vmatpush1.bf16.msra.mxu0 %v3035
    %4029 = vmatprep.subr.bf16.mxu0 %v3040
    %4030 = vmatpush1.bf16.msra.mxu0 %v3039
    %4031 = vmatprep.subr.bf16.mxu0 %v3044
    %4032 = vmatpush1.bf16.msra.mxu0 %v3043
    %4033 = vmatprep.subr.bf16.mxu0 %v3048
    %4034 = vmatpush1.bf16.msra.mxu0 %v3047
    %4035 = vmatprep.subr.bf16.mxu0 %v3052
    %4036 = vmatpush1.bf16.msra.mxu0 %v3051
    %4037 = vmatprep.subr.bf16.mxu0 %v3056
    %4038 = vmatpush1.bf16.msra.mxu0 %v3055
    %4039 = vmatprep.subr.bf16.mxu0 %v3060
    %4040 = vmatpush1.bf16.msra.mxu0 %v3059
    %4041 = vmatprep.subr.bf16.mxu0 %v3064
    %4042 = vmatpush1.bf16.msra.mxu0 %v3063
    %4043 = vmatprep.subr.bf16.mxu0 %v3068
    %4044 = vmatpush1.bf16.msra.mxu0 %v3067
    %4045 = vmatprep.subr.bf16.mxu0 %v3072
    %4046 = vmatpush1.bf16.msra.mxu0 %v3071
    %4047 = vmatprep.subr.bf16.mxu0 %v3076
    %4048 = vmatpush1.bf16.msra.mxu0 %v3075
    %4049 = vmatprep.subr.bf16.mxu0 %v3080
    %4050 = vmatpush1.bf16.msra.mxu0 %v3079
    %4051 = vmatprep.subr.bf16.mxu0 %v3084
    %4052 = vmatpush1.bf16.msra.mxu0 %v3083
    %4053 = vmatprep.subr.bf16.mxu0 %v3088
    %4054 = vmatpush1.bf16.msra.mxu0 %v3087
    %4055 = vmatprep.mubr.bf16.mxu0 %v139
    %4056 = vmatmul.mubr.bf16.gmra.mrb[0].mxu0 %v138
    %v4057 = vpop.f32.mrb[0].mxu0
    %v4058 = vadd.f32 %v4017, %v4057
    %v4059 = vpop.f32.mrb[0].mxu0
    %v4060 = vadd.f32 %v4019, %v4059
    %v4061 = vpop.f32.mrb[0].mxu0
    %v4062 = vpop.f32.mrb[0].mxu0
    %4063 = vdwg.mxu0
    %4064 = vmatprep.subr.bf16.mxu0 %v3092
    %4065 = vmatpush1.bf16.msra.mxu0 %v3091
    %4066 = vmatprep.subr.bf16.mxu0 %v3096
    %4067 = vmatpush1.bf16.msra.mxu0 %v3095
    %4068 = vmatprep.subr.bf16.mxu0 %v3100
    %4069 = vmatpush1.bf16.msra.mxu0 %v3099
    %4070 = vmatprep.subr.bf16.mxu0 0
    %4071 = vmatpush1.bf16.msra.mxu0 0
    %4072 = vmatprep.subr.bf16.mxu0 0
    %4073 = vmatpush1.bf16.msra.mxu0 0
    %4074 = vmatprep.subr.bf16.mxu0 0
    %4075 = vmatpush1.bf16.msra.mxu0 0
    %4076 = vmatprep.subr.bf16.mxu0 0
    %4077 = vmatpush1.bf16.msra.mxu0 0
    %4078 = vmatprep.subr.bf16.mxu0 0
    %4079 = vmatpush1.bf16.msra.mxu0 0
    %4080 = vmatprep.subr.bf16.mxu0 0
    %4081 = vmatpush1.bf16.msra.mxu0 0
    %4082 = vmatprep.subr.bf16.mxu0 0
    %4083 = vmatpush1.bf16.msra.mxu0 0
    %4084 = vmatprep.subr.bf16.mxu0 0
    %4085 = vmatpush1.bf16.msra.mxu0 0
    %4086 = vmatprep.subr.bf16.mxu0 0
    %4087 = vmatpush1.bf16.msra.mxu0 0
    %4088 = vmatprep.subr.bf16.mxu0 0
    %4089 = vmatpush1.bf16.msra.mxu0 0
    %4090 = vmatprep.subr.bf16.mxu0 0
    %4091 = vmatpush1.bf16.msra.mxu0 0
    %4092 = vmatprep.subr.bf16.mxu0 0
    %4093 = vmatpush1.bf16.msra.mxu0 0
    %4094 = vmatprep.subr.bf16.mxu0 0
    %4095 = vmatpush1.bf16.msra.mxu0 0
    %4096 = vmatprep.mubr.bf16.mxu0 0
    %4097 = vmatmul.mubr.bf16.gmra.mrb[0].mxu0 %v3693
    %v4098 = vpop.f32.mrb[0].mxu0
    %v4099 = vadd.f32 %v4058, %v4098
    %v4100 = vpop.f32.mrb[0].mxu0
    %v4101 = vadd.f32 %v4060, %v4100
    %v4102 = vpop.f32.mrb[0].mxu0
    %v4103 = vpop.f32.mrb[0].mxu0
    %4104 = vdwg.mxu0
    %4105 = vmatprep.subr.bf16.mxu0 %v2518
    %4106 = vmatpush1.bf16.msra.mxu0 %v2517
    %4107 = vmatprep.subr.bf16.mxu0 %v2522
    %4108 = vmatpush1.bf16.msra.mxu0 %v2521
    %4109 = vmatprep.subr.bf16.mxu0 %v2526
    %4110 = vmatpush1.bf16.msra.mxu0 %v2525
    %4111 = vmatprep.subr.bf16.mxu0 %v2530
    %4112 = vmatpush1.bf16.msra.mxu0 %v2529
    %4113 = vmatprep.subr.bf16.mxu0 %v2534
    %4114 = vmatpush1.bf16.msra.mxu0 %v2533
    %4115 = vmatprep.subr.bf16.mxu0 %v2538
    %4116 = vmatpush1.bf16.msra.mxu0 %v2537
    %4117 = vmatprep.subr.bf16.mxu0 %v2542
    %4118 = vmatpush1.bf16.msra.mxu0 %v2541
    %4119 = vmatprep.subr.bf16.mxu0 %v2546
    %4120 = vmatpush1.bf16.msra.mxu0 %v2545
    %4121 = vmatprep.subr.bf16.mxu0 %v2550
    %4122 = vmatpush1.bf16.msra.mxu0 %v2549
    %4123 = vmatprep.subr.bf16.mxu0 %v2554
    %4124 = vmatpush1.bf16.msra.mxu0 %v2553
    %4125 = vmatprep.subr.bf16.mxu0 %v2558
    %4126 = vmatpush1.bf16.msra.mxu0 %v2557
    %4127 = vmatprep.subr.bf16.mxu0 %v2562
    %4128 = vmatpush1.bf16.msra.mxu0 %v2561
    %4129 = vmatprep.subr.bf16.mxu0 %v2566
    %4130 = vmatpush1.bf16.msra.mxu0 %v2565
    %4131 = vmatprep.subr.bf16.mxu0 %v2570
    %4132 = vmatpush1.bf16.msra.mxu0 %v2569
    %4133 = vmatprep.subr.bf16.mxu0 %v2574
    %4134 = vmatpush1.bf16.msra.mxu0 %v2573
    %4135 = vmatprep.subr.bf16.mxu0 %v2578
    %4136 = vmatpush1.bf16.msra.mxu0 %v2577
    %4137 = vmatprep.mubr.bf16.mxu0 %v123
    %4138 = vmatmul.mubr.bf16.gmra.mrb[0].mxu0 %v122
    %v4139 = vpop.f32.mrb[0].mxu0
    %v4140 = vadd.f32 %v742, %v4139
    %v4141 = vpop.f32.mrb[0].mxu0
    %v4142 = vadd.f32 %v746, %v4141
    %v4143 = vpop.f32.mrb[0].mxu0
    %v4144 = vpop.f32.mrb[0].mxu0
    %4145 = vdwg.mxu0
    %4146 = vmatprep.subr.bf16.mxu0 %v2582
    %4147 = vmatpush1.bf16.msra.mxu0 %v2581
    %4148 = vmatprep.subr.bf16.mxu0 %v2586
    %4149 = vmatpush1.bf16.msra.mxu0 %v2585
    %4150 = vmatprep.subr.bf16.mxu0 %v2590
    %4151 = vmatpush1.bf16.msra.mxu0 %v2589
    %4152 = vmatprep.subr.bf16.mxu0 %v2594
    %4153 = vmatpush1.bf16.msra.mxu0 %v2593
    %4154 = vmatprep.subr.bf16.mxu0 %v2598
    %4155 = vmatpush1.bf16.msra.mxu0 %v2597
    %4156 = vmatprep.subr.bf16.mxu0 %v2602
    %4157 = vmatpush1.bf16.msra.mxu0 %v2601
    %4158 = vmatprep.subr.bf16.mxu0 %v2606
    %4159 = vmatpush1.bf16.msra.mxu0 %v2605
    %4160 = vmatprep.subr.bf16.mxu0 %v2610
    %4161 = vmatpush1.bf16.msra.mxu0 %v2609
    %4162 = vmatprep.subr.bf16.mxu0 %v2614
    %4163 = vmatpush1.bf16.msra.mxu0 %v2613
    %4164 = vmatprep.subr.bf16.mxu0 %v2618
    %4165 = vmatpush1.bf16.msra.mxu0 %v2617
    %4166 = vmatprep.subr.bf16.mxu0 %v2622
    %4167 = vmatpush1.bf16.msra.mxu0 %v2621
    %4168 = vmatprep.subr.bf16.mxu0 %v2626
    %4169 = vmatpush1.bf16.msra.mxu0 %v2625
    %4170 = vmatprep.subr.bf16.mxu0 %v2630
    %4171 = vmatpush1.bf16.msra.mxu0 %v2629
    %4172 = vmatprep.subr.bf16.mxu0 %v2634
    %4173 = vmatpush1.bf16.msra.mxu0 %v2633
    %4174 = vmatprep.subr.bf16.mxu0 %v2638
    %4175 = vmatpush1.bf16.msra.mxu0 %v2637
    %4176 = vmatprep.subr.bf16.mxu0 %v2642
    %4177 = vmatpush1.bf16.msra.mxu0 %v2641
    %4178 = vmatprep.mubr.bf16.mxu0 %v125
    %4179 = vmatmul.mubr.bf16.gmra.mrb[0].mxu0 %v124
    %v4180 = vpop.f32.mrb[0].mxu0
    %v4181 = vadd.f32 %v4140, %v4180
    %v4182 = vpop.f32.mrb[0].mxu0
    %v4183 = vadd.f32 %v4142, %v4182
    %v4184 = vpop.f32.mrb[0].mxu0
    %v4185 = vpop.f32.mrb[0].mxu0
    %4186 = vdwg.mxu0
    %4187 = vmatprep.subr.bf16.mxu0 %v2646
    %4188 = vmatpush1.bf16.msra.mxu0 %v2645
    %4189 = vmatprep.subr.bf16.mxu0 %v2650
    %4190 = vmatpush1.bf16.msra.mxu0 %v2649
    %4191 = vmatprep.subr.bf16.mxu0 %v2654
    %4192 = vmatpush1.bf16.msra.mxu0 %v2653
    %4193 = vmatprep.subr.bf16.mxu0 %v2658
    %4194 = vmatpush1.bf16.msra.mxu0 %v2657
    %4195 = vmatprep.subr.bf16.mxu0 %v2662
    %4196 = vmatpush1.bf16.msra.mxu0 %v2661
    %4197 = vmatprep.subr.bf16.mxu0 %v2666
    %4198 = vmatpush1.bf16.msra.mxu0 %v2665
    %4199 = vmatprep.subr.bf16.mxu0 %v2670
    %4200 = vmatpush1.bf16.msra.mxu0 %v2669
    %4201 = vmatprep.subr.bf16.mxu0 %v2674
    %4202 = vmatpush1.bf16.msra.mxu0 %v2673
    %4203 = vmatprep.subr.bf16.mxu0 %v2678
    %4204 = vmatpush1.bf16.msra.mxu0 %v2677
    %4205 = vmatprep.subr.bf16.mxu0 %v2682
    %4206 = vmatpush1.bf16.msra.mxu0 %v2681
    %4207 = vmatprep.subr.bf16.mxu0 %v2686
    %4208 = vmatpush1.bf16.msra.mxu0 %v2685
    %4209 = vmatprep.subr.bf16.mxu0 %v2690
    %4210 = vmatpush1.bf16.msra.mxu0 %v2689
    %4211 = vmatprep.subr.bf16.mxu0 %v2694
    %4212 = vmatpush1.bf16.msra.mxu0 %v2693
    %4213 = vmatprep.subr.bf16.mxu0 %v2698
    %4214 = vmatpush1.bf16.msra.mxu0 %v2697
    %4215 = vmatprep.subr.bf16.mxu0 %v2702
    %4216 = vmatpush1.bf16.msra.mxu0 %v2701
    %4217 = vmatprep.subr.bf16.mxu0 %v2706
    %4218 = vmatpush1.bf16.msra.mxu0 %v2705
    %4219 = vmatprep.mubr.bf16.mxu0 %v127
    %4220 = vmatmul.mubr.bf16.gmra.mrb[0].mxu0 %v126
    %v4221 = vpop.f32.mrb[0].mxu0
    %v4222 = vadd.f32 %v4181, %v4221
    %v4223 = vpop.f32.mrb[0].mxu0
    %v4224 = vadd.f32 %v4183, %v4223
    %v4225 = vpop.f32.mrb[0].mxu0
    %v4226 = vpop.f32.mrb[0].mxu0
    %4227 = vdwg.mxu0
    %4228 = vmatprep.subr.bf16.mxu0 %v2710
    %4229 = vmatpush1.bf16.msra.mxu0 %v2709
    %4230 = vmatprep.subr.bf16.mxu0 %v2714
    %4231 = vmatpush1.bf16.msra.mxu0 %v2713
    %4232 = vmatprep.subr.bf16.mxu0 %v2718
    %4233 = vmatpush1.bf16.msra.mxu0 %v2717
    %4234 = vmatprep.subr.bf16.mxu0 %v2722
    %4235 = vmatpush1.bf16.msra.mxu0 %v2721
    %4236 = vmatprep.subr.bf16.mxu0 %v2726
    %4237 = vmatpush1.bf16.msra.mxu0 %v2725
    %4238 = vmatprep.subr.bf16.mxu0 %v2730
    %4239 = vmatpush1.bf16.msra.mxu0 %v2729
    %4240 = vmatprep.subr.bf16.mxu0 %v2734
    %4241 = vmatpush1.bf16.msra.mxu0 %v2733
    %4242 = vmatprep.subr.bf16.mxu0 %v2738
    %4243 = vmatpush1.bf16.msra.mxu0 %v2737
    %4244 = vmatprep.subr.bf16.mxu0 %v2742
    %4245 = vmatpush1.bf16.msra.mxu0 %v2741
    %4246 = vmatprep.subr.bf16.mxu0 %v2746
    %4247 = vmatpush1.bf16.msra.mxu0 %v2745
    %4248 = vmatprep.subr.bf16.mxu0 %v2750
    %4249 = vmatpush1.bf16.msra.mxu0 %v2749
    %4250 = vmatprep.subr.bf16.mxu0 %v2754
    %4251 = vmatpush1.bf16.msra.mxu0 %v2753
    %4252 = vmatprep.subr.bf16.mxu0 %v2758
    %4253 = vmatpush1.bf16.msra.mxu0 %v2757
    %4254 = vmatprep.subr.bf16.mxu0 %v2762
    %4255 = vmatpush1.bf16.msra.mxu0 %v2761
    %4256 = vmatprep.subr.bf16.mxu0 %v2766
    %4257 = vmatpush1.bf16.msra.mxu0 %v2765
    %4258 = vmatprep.subr.bf16.mxu0 %v2770
    %4259 = vmatpush1.bf16.msra.mxu0 %v2769
    %4260 = vmatprep.mubr.bf16.mxu0 %v129
    %4261 = vmatmul.mubr.bf16.gmra.mrb[0].mxu0 %v128
    %v4262 = vpop.f32.mrb[0].mxu0
    %v4263 = vadd.f32 %v4222, %v4262
    %v4264 = vpop.f32.mrb[0].mxu0
    %v4265 = vadd.f32 %v4224, %v4264
    %v4266 = vpop.f32.mrb[0].mxu0
    %v4267 = vpop.f32.mrb[0].mxu0
    %4268 = vdwg.mxu0
    %4269 = vmatprep.subr.bf16.mxu0 %v2774
    %4270 = vmatpush1.bf16.msra.mxu0 %v2773
    %4271 = vmatprep.subr.bf16.mxu0 %v2778
    %4272 = vmatpush1.bf16.msra.mxu0 %v2777
    %4273 = vmatprep.subr.bf16.mxu0 %v2782
    %4274 = vmatpush1.bf16.msra.mxu0 %v2781
    %4275 = vmatprep.subr.bf16.mxu0 %v2786
    %4276 = vmatpush1.bf16.msra.mxu0 %v2785
    %4277 = vmatprep.subr.bf16.mxu0 %v2790
    %4278 = vmatpush1.bf16.msra.mxu0 %v2789
    %4279 = vmatprep.subr.bf16.mxu0 %v2794
    %4280 = vmatpush1.bf16.msra.mxu0 %v2793
    %4281 = vmatprep.subr.bf16.mxu0 %v2798
    %4282 = vmatpush1.bf16.msra.mxu0 %v2797
    %4283 = vmatprep.subr.bf16.mxu0 %v2802
    %4284 = vmatpush1.bf16.msra.mxu0 %v2801
    %4285 = vmatprep.subr.bf16.mxu0 %v2806
    %4286 = vmatpush1.bf16.msra.mxu0 %v2805
    %4287 = vmatprep.subr.bf16.mxu0 %v2810
    %4288 = vmatpush1.bf16.msra.mxu0 %v2809
    %4289 = vmatprep.subr.bf16.mxu0 %v2814
    %4290 = vmatpush1.bf16.msra.mxu0 %v2813
    %4291 = vmatprep.subr.bf16.mxu0 %v2818
    %4292 = vmatpush1.bf16.msra.mxu0 %v2817
    %4293 = vmatprep.subr.bf16.mxu0 %v2822
    %4294 = vmatpush1.bf16.msra.mxu0 %v2821
    %4295 = vmatprep.subr.bf16.mxu0 %v2826
    %4296 = vmatpush1.bf16.msra.mxu0 %v2825
    %4297 = vmatprep.subr.bf16.mxu0 %v2830
    %4298 = vmatpush1.bf16.msra.mxu0 %v2829
    %4299 = vmatprep.subr.bf16.mxu0 %v2834
    %4300 = vmatpush1.bf16.msra.mxu0 %v2833
    %4301 = vmatprep.mubr.bf16.mxu0 %v131
    %4302 = vmatmul.mubr.bf16.gmra.mrb[0].mxu0 %v130
    %v4303 = vpop.f32.mrb[0].mxu0
    %v4304 = vadd.f32 %v4263, %v4303
    %v4305 = vpop.f32.mrb[0].mxu0
    %v4306 = vadd.f32 %v4265, %v4305
    %v4307 = vpop.f32.mrb[0].mxu0
    %v4308 = vpop.f32.mrb[0].mxu0
    %4309 = vdwg.mxu0
    %4310 = vmatprep.subr.bf16.mxu0 %v2838
    %4311 = vmatpush1.bf16.msra.mxu0 %v2837
    %4312 = vmatprep.subr.bf16.mxu0 %v2842
    %4313 = vmatpush1.bf16.msra.mxu0 %v2841
    %4314 = vmatprep.subr.bf16.mxu0 %v2846
    %4315 = vmatpush1.bf16.msra.mxu0 %v2845
    %4316 = vmatprep.subr.bf16.mxu0 %v2850
    %4317 = vmatpush1.bf16.msra.mxu0 %v2849
    %4318 = vmatprep.subr.bf16.mxu0 %v2854
    %4319 = vmatpush1.bf16.msra.mxu0 %v2853
    %4320 = vmatprep.subr.bf16.mxu0 %v2858
    %4321 = vmatpush1.bf16.msra.mxu0 %v2857
    %4322 = vmatprep.subr.bf16.mxu0 %v2862
    %4323 = vmatpush1.bf16.msra.mxu0 %v2861
    %4324 = vmatprep.subr.bf16.mxu0 %v2866
    %4325 = vmatpush1.bf16.msra.mxu0 %v2865
    %4326 = vmatprep.subr.bf16.mxu0 %v2870
    %4327 = vmatpush1.bf16.msra.mxu0 %v2869
    %4328 = vmatprep.subr.bf16.mxu0 %v2874
    %4329 = vmatpush1.bf16.msra.mxu0 %v2873
    %4330 = vmatprep.subr.bf16.mxu0 %v2878
    %4331 = vmatpush1.bf16.msra.mxu0 %v2877
    %4332 = vmatprep.subr.bf16.mxu0 %v2882
    %4333 = vmatpush1.bf16.msra.mxu0 %v2881
    %4334 = vmatprep.subr.bf16.mxu0 %v2886
    %4335 = vmatpush1.bf16.msra.mxu0 %v2885
    %4336 = vmatprep.subr.bf16.mxu0 %v2890
    %4337 = vmatpush1.bf16.msra.mxu0 %v2889
    %4338 = vmatprep.subr.bf16.mxu0 %v2894
    %4339 = vmatpush1.bf16.msra.mxu0 %v2893
    %4340 = vmatprep.subr.bf16.mxu0 %v2898
    %4341 = vmatpush1.bf16.msra.mxu0 %v2897
    %4342 = vmatprep.mubr.bf16.mxu0 %v133
    %4343 = vmatmul.mubr.bf16.gmra.mrb[0].mxu0 %v132
    %v4344 = vpop.f32.mrb[0].mxu0
    %v4345 = vadd.f32 %v4304, %v4344
    %v4346 = vpop.f32.mrb[0].mxu0
    %v4347 = vadd.f32 %v4306, %v4346
    %v4348 = vpop.f32.mrb[0].mxu0
    %v4349 = vpop.f32.mrb[0].mxu0
    %4350 = vdwg.mxu0
    %4351 = vmatprep.subr.bf16.mxu0 %v2902
    %4352 = vmatpush1.bf16.msra.mxu0 %v2901
    %4353 = vmatprep.subr.bf16.mxu0 %v2906
    %4354 = vmatpush1.bf16.msra.mxu0 %v2905
    %4355 = vmatprep.subr.bf16.mxu0 %v2910
    %4356 = vmatpush1.bf16.msra.mxu0 %v2909
    %4357 = vmatprep.subr.bf16.mxu0 %v2914
    %4358 = vmatpush1.bf16.msra.mxu0 %v2913
    %4359 = vmatprep.subr.bf16.mxu0 %v2918
    %4360 = vmatpush1.bf16.msra.mxu0 %v2917
    %4361 = vmatprep.subr.bf16.mxu0 %v2922
    %4362 = vmatpush1.bf16.msra.mxu0 %v2921
    %4363 = vmatprep.subr.bf16.mxu0 %v2926
    %4364 = vmatpush1.bf16.msra.mxu0 %v2925
    %4365 = vmatprep.subr.bf16.mxu0 %v2930
    %4366 = vmatpush1.bf16.msra.mxu0 %v2929
    %4367 = vmatprep.subr.bf16.mxu0 %v2934
    %4368 = vmatpush1.bf16.msra.mxu0 %v2933
    %4369 = vmatprep.subr.bf16.mxu0 %v2938
    %4370 = vmatpush1.bf16.msra.mxu0 %v2937
    %4371 = vmatprep.subr.bf16.mxu0 %v2942
    %4372 = vmatpush1.bf16.msra.mxu0 %v2941
    %4373 = vmatprep.subr.bf16.mxu0 %v2946
    %4374 = vmatpush1.bf16.msra.mxu0 %v2945
    %4375 = vmatprep.subr.bf16.mxu0 %v2950
    %4376 = vmatpush1.bf16.msra.mxu0 %v2949
    %4377 = vmatprep.subr.bf16.mxu0 %v2954
    %4378 = vmatpush1.bf16.msra.mxu0 %v2953
    %4379 = vmatprep.subr.bf16.mxu0 %v2958
    %4380 = vmatpush1.bf16.msra.mxu0 %v2957
    %4381 = vmatprep.subr.bf16.mxu0 %v2962
    %4382 = vmatpush1.bf16.msra.mxu0 %v2961
    %4383 = vmatprep.mubr.bf16.mxu0 %v135
    %4384 = vmatmul.mubr.bf16.gmra.mrb[0].mxu0 %v134
    %v4385 = vpop.f32.mrb[0].mxu0
    %v4386 = vadd.f32 %v4345, %v4385
    %v4387 = vpop.f32.mrb[0].mxu0
    %v4388 = vadd.f32 %v4347, %v4387
    %v4389 = vpop.f32.mrb[0].mxu0
    %v4390 = vpop.f32.mrb[0].mxu0
    %4391 = vdwg.mxu0
    %4392 = vmatprep.subr.bf16.mxu0 %v2966
    %4393 = vmatpush1.bf16.msra.mxu0 %v2965
    %4394 = vmatprep.subr.bf16.mxu0 %v2970
    %4395 = vmatpush1.bf16.msra.mxu0 %v2969
    %4396 = vmatprep.subr.bf16.mxu0 %v2974
    %4397 = vmatpush1.bf16.msra.mxu0 %v2973
    %4398 = vmatprep.subr.bf16.mxu0 %v2978
    %4399 = vmatpush1.bf16.msra.mxu0 %v2977
    %4400 = vmatprep.subr.bf16.mxu0 %v2982
    %4401 = vmatpush1.bf16.msra.mxu0 %v2981
    %4402 = vmatprep.subr.bf16.mxu0 %v2986
    %4403 = vmatpush1.bf16.msra.mxu0 %v2985
    %4404 = vmatprep.subr.bf16.mxu0 %v2990
    %4405 = vmatpush1.bf16.msra.mxu0 %v2989
    %4406 = vmatprep.subr.bf16.mxu0 %v2994
    %4407 = vmatpush1.bf16.msra.mxu0 %v2993
    %4408 = vmatprep.subr.bf16.mxu0 %v2998
    %4409 = vmatpush1.bf16.msra.mxu0 %v2997
    %4410 = vmatprep.subr.bf16.mxu0 %v3002
    %4411 = vmatpush1.bf16.msra.mxu0 %v3001
    %4412 = vmatprep.subr.bf16.mxu0 %v3006
    %4413 = vmatpush1.bf16.msra.mxu0 %v3005
    %4414 = vmatprep.subr.bf16.mxu0 %v3010
    %4415 = vmatpush1.bf16.msra.mxu0 %v3009
    %4416 = vmatprep.subr.bf16.mxu0 %v3014
    %4417 = vmatpush1.bf16.msra.mxu0 %v3013
    %4418 = vmatprep.subr.bf16.mxu0 %v3018
    %4419 = vmatpush1.bf16.msra.mxu0 %v3017
    %4420 = vmatprep.subr.bf16.mxu0 %v3022
    %4421 = vmatpush1.bf16.msra.mxu0 %v3021
    %4422 = vmatprep.subr.bf16.mxu0 %v3026
    %4423 = vmatpush1.bf16.msra.mxu0 %v3025
    %4424 = vmatprep.mubr.bf16.mxu0 %v137
    %4425 = vmatmul.mubr.bf16.gmra.mrb[0].mxu0 %v136
    %v4426 = vpop.f32.mrb[0].mxu0
    %v4427 = vadd.f32 %v4386, %v4426
    %v4428 = vpop.f32.mrb[0].mxu0
    %v4429 = vadd.f32 %v4388, %v4428
    %v4430 = vpop.f32.mrb[0].mxu0
    %v4431 = vpop.f32.mrb[0].mxu0
    %4432 = vdwg.mxu0
    %4433 = vmatprep.subr.bf16.mxu0 %v3030
    %4434 = vmatpush1.bf16.msra.mxu0 %v3029
    %4435 = vmatprep.subr.bf16.mxu0 %v3034
    %4436 = vmatpush1.bf16.msra.mxu0 %v3033
    %4437 = vmatprep.subr.bf16.mxu0 %v3038
    %4438 = vmatpush1.bf16.msra.mxu0 %v3037
    %4439 = vmatprep.subr.bf16.mxu0 %v3042
    %4440 = vmatpush1.bf16.msra.mxu0 %v3041
    %4441 = vmatprep.subr.bf16.mxu0 %v3046
    %4442 = vmatpush1.bf16.msra.mxu0 %v3045
    %4443 = vmatprep.subr.bf16.mxu0 %v3050
    %4444 = vmatpush1.bf16.msra.mxu0 %v3049
    %4445 = vmatprep.subr.bf16.mxu0 %v3054
    %4446 = vmatpush1.bf16.msra.mxu0 %v3053
    %4447 = vmatprep.subr.bf16.mxu0 %v3058
    %4448 = vmatpush1.bf16.msra.mxu0 %v3057
    %4449 = vmatprep.subr.bf16.mxu0 %v3062
    %4450 = vmatpush1.bf16.msra.mxu0 %v3061
    %4451 = vmatprep.subr.bf16.mxu0 %v3066
    %4452 = vmatpush1.bf16.msra.mxu0 %v3065
    %4453 = vmatprep.subr.bf16.mxu0 %v3070
    %4454 = vmatpush1.bf16.msra.mxu0 %v3069
    %4455 = vmatprep.subr.bf16.mxu0 %v3074
    %4456 = vmatpush1.bf16.msra.mxu0 %v3073
    %4457 = vmatprep.subr.bf16.mxu0 %v3078
    %4458 = vmatpush1.bf16.msra.mxu0 %v3077
    %4459 = vmatprep.subr.bf16.mxu0 %v3082
    %4460 = vmatpush1.bf16.msra.mxu0 %v3081
    %4461 = vmatprep.subr.bf16.mxu0 %v3086
    %4462 = vmatpush1.bf16.msra.mxu0 %v3085
    %4463 = vmatprep.subr.bf16.mxu0 %v3090
    %4464 = vmatpush1.bf16.msra.mxu0 %v3089
    %4465 = vmatprep.mubr.bf16.mxu0 %v139
    %4466 = vmatmul.mubr.bf16.gmra.mrb[0].mxu0 %v138
    %v4467 = vpop.f32.mrb[0].mxu0
    %v4468 = vadd.f32 %v4427, %v4467
    %v4469 = vpop.f32.mrb[0].mxu0
    %v4470 = vadd.f32 %v4429, %v4469
    %v4471 = vpop.f32.mrb[0].mxu0
    %v4472 = vpop.f32.mrb[0].mxu0
    %4473 = vdwg.mxu0
    %4474 = vmatprep.subr.bf16.mxu0 %v3094
    %4475 = vmatpush1.bf16.msra.mxu0 %v3093
    %4476 = vmatprep.subr.bf16.mxu0 %v3098
    %4477 = vmatpush1.bf16.msra.mxu0 %v3097
    %4478 = vmatprep.subr.bf16.mxu0 %v3102
    %4479 = vmatpush1.bf16.msra.mxu0 %v3101
    %4480 = vmatprep.subr.bf16.mxu0 0
    %4481 = vmatpush1.bf16.msra.mxu0 0
    %4482 = vmatprep.subr.bf16.mxu0 0
    %4483 = vmatpush1.bf16.msra.mxu0 0
    %4484 = vmatprep.subr.bf16.mxu0 0
    %4485 = vmatpush1.bf16.msra.mxu0 0
    %4486 = vmatprep.subr.bf16.mxu0 0
    %4487 = vmatpush1.bf16.msra.mxu0 0
    %4488 = vmatprep.subr.bf16.mxu0 0
    %4489 = vmatpush1.bf16.msra.mxu0 0
    %4490 = vmatprep.subr.bf16.mxu0 0
    %4491 = vmatpush1.bf16.msra.mxu0 0
    %4492 = vmatprep.subr.bf16.mxu0 0
    %4493 = vmatpush1.bf16.msra.mxu0 0
    %4494 = vmatprep.subr.bf16.mxu0 0
    %4495 = vmatpush1.bf16.msra.mxu0 0
    %4496 = vmatprep.subr.bf16.mxu0 0
    %4497 = vmatpush1.bf16.msra.mxu0 0
    %4498 = vmatprep.subr.bf16.mxu0 0
    %4499 = vmatpush1.bf16.msra.mxu0 0
    %4500 = vmatprep.subr.bf16.mxu0 0
    %4501 = vmatpush1.bf16.msra.mxu0 0
    %4502 = vmatprep.subr.bf16.mxu0 0
    %4503 = vmatpush1.bf16.msra.mxu0 0
    %4504 = vmatprep.subr.bf16.mxu0 0
    %4505 = vmatpush1.bf16.msra.mxu0 0
    %4506 = vmatprep.mubr.bf16.mxu0 0
    %4507 = vmatmul.mubr.bf16.gmra.mrb[0].mxu0 %v3693
    %v4508 = vpop.f32.mrb[0].mxu0
    %v4509 = vadd.f32 %v4468, %v4508
    %v4510 = vpop.f32.mrb[0].mxu0
    %v4511 = vadd.f32 %v4470, %v4510
    %v4512 = vpop.f32.mrb[0].mxu0
    %v4513 = vpop.f32.mrb[0].mxu0
    %4514 = vdwg.mxu0
    %v4515 = vmax.f32 %v4099, 0.0
    %v4516 = vmax.f32 %v4101, 0.0
    %v4517 = vmax.f32 %v4509, 0.0
    %v4518 = vmax.f32 %v4511, 0.0
    %v4519 = vpack.c.bf16 %v4515, %v4515
    %v4520 = vpack.c.bf16 %v4516, %v4516
    %v4521 = vpack.c.bf16 %v4517, %v4517
    %v4522 = vpack.c.bf16 %v4518, %v4518
    %v4523 = vld [vmem:[#allocation8] sm:$0xff]
    %v4524 = vld [vmem:[#allocation8 + $0x8] sm:$0xff]
    %v4525 = vld [vmem:[#allocation8 + $0x10] sm:$0xff]
    %v4526 = vld [vmem:[#allocation8 + $0x18] sm:$0xff]
    %v4527 = vld [vmem:[#allocation8 + $0x20] sm:$0xff]
    %v4528 = vld [vmem:[#allocation8 + $0x28] sm:$0xff]
    %v4529 = vld [vmem:[#allocation8 + $0x30] sm:$0xff]
    %v4530 = vld [vmem:[#allocation8 + $0x38] sm:$0xff]
    %v4531 = vld [vmem:[#allocation8 + $0x40] sm:$0xff]
    %v4532 = vld [vmem:[#allocation8 + $0x48] sm:$0xff]
    %v4533 = vld [vmem:[#allocation8 + $0x50] sm:$0xff]
    %v4534 = vld [vmem:[#allocation8 + $0x58] sm:$0xff]
    %v4535 = vld [vmem:[#allocation8 + $0x60] sm:$0xff]
    %v4536 = vld [vmem:[#allocation8 + $0x68] sm:$0xff]
    %v4537 = vld [vmem:[#allocation8 + $0x70] sm:$0xff]
    %v4538 = vld [vmem:[#allocation8 + $0x78] sm:$0xff]
    %v4539 = vld [vmem:[#allocation8 + $0x80] sm:$0xff]
    %v4540 = vld [vmem:[#allocation8 + $0x88] sm:$0xff]
    %v4541 = vld [vmem:[#allocation8 + $0x90] sm:$0xff]
    %v4542 = vld [vmem:[#allocation8 + $0x98] sm:$0xff]
    %v4543 = vld [vmem:[#allocation8 + $0xa0] sm:$0xff]
    %v4544 = vld [vmem:[#allocation8 + $0xa8] sm:$0xff]
    %v4545 = vld [vmem:[#allocation8 + $0xb0] sm:$0xff]
    %v4546 = vld [vmem:[#allocation8 + $0xb8] sm:$0xff]
    %v4547 = vld [vmem:[#allocation8 + $0xc0] sm:$0xff]
    %v4548 = vld [vmem:[#allocation8 + $0xc8] sm:$0xff]
    %v4549 = vld [vmem:[#allocation8 + $0xd0] sm:$0xff]
    %v4550 = vld [vmem:[#allocation8 + $0xd8] sm:$0xff]
    %v4551 = vld [vmem:[#allocation8 + $0xe0] sm:$0xff]
    %v4552 = vld [vmem:[#allocation8 + $0xe8] sm:$0xff]
    %v4553 = vld [vmem:[#allocation8 + $0xf0] sm:$0xff]
    %v4554 = vld [vmem:[#allocation8 + $0xf8] sm:$0xff]
    %v4555 = vld [vmem:[#allocation8 + $0x100] sm:$0xff]
    %v4556 = vld [vmem:[#allocation8 + $0x108] sm:$0xff]
    %v4557 = vld [vmem:[#allocation8 + $0x110] sm:$0xff]
    %v4558 = vld [vmem:[#allocation8 + $0x118] sm:$0xff]
    %v4559 = vld [vmem:[#allocation8 + $0x120] sm:$0xff]
    %v4560 = vld [vmem:[#allocation8 + $0x128] sm:$0xff]
    %v4561 = vld [vmem:[#allocation8 + $0x130] sm:$0xff]
    %v4562 = vld [vmem:[#allocation8 + $0x138] sm:$0xff]
    %v4563 = vld [vmem:[#allocation8 + $0x140] sm:$0xff]
    %v4564 = vld [vmem:[#allocation8 + $0x148] sm:$0xff]
    %v4565 = vld [vmem:[#allocation8 + $0x150] sm:$0xff]
    %v4566 = vld [vmem:[#allocation8 + $0x158] sm:$0xff]
    %v4567 = vld [vmem:[#allocation8 + $0x160] sm:$0xff]
    %v4568 = vld [vmem:[#allocation8 + $0x168] sm:$0xff]
    %v4569 = vld [vmem:[#allocation8 + $0x170] sm:$0xff]
    %v4570 = vld [vmem:[#allocation8 + $0x178] sm:$0xff]
    %v4571 = vld [vmem:[#allocation8 + $0x180] sm:$0xff]
    %v4572 = vld [vmem:[#allocation8 + $0x188] sm:$0xff]
    %v4573 = vld [vmem:[#allocation8 + $0x190] sm:$0xff]
    %v4574 = vld [vmem:[#allocation8 + $0x198] sm:$0xff]
    %v4575 = vld [vmem:[#allocation8 + $0x1a0] sm:$0xff]
    %v4576 = vld [vmem:[#allocation8 + $0x1a8] sm:$0xff]
    %v4577 = vld [vmem:[#allocation8 + $0x1b0] sm:$0xff]
    %v4578 = vld [vmem:[#allocation8 + $0x1b8] sm:$0xff]
    %v4579 = vld [vmem:[#allocation8 + $0x1c0] sm:$0xff]
    %v4580 = vld [vmem:[#allocation8 + $0x1c8] sm:$0xff]
    %v4581 = vld [vmem:[#allocation8 + $0x1d0] sm:$0xff]
    %v4582 = vld [vmem:[#allocation8 + $0x1d8] sm:$0xff]
    %v4583 = vld [vmem:[#allocation8 + $0x1e0] sm:$0xff]
    %v4584 = vld [vmem:[#allocation8 + $0x1e8] sm:$0xff]
    %v4585 = vld [vmem:[#allocation8 + $0x1f0] sm:$0xff]
    %v4586 = vld [vmem:[#allocation8 + $0x1f8] sm:$0xff]
    %v4587 = vld [vmem:[#allocation8 + $0x200] sm:$0xff]
    %v4588 = vld [vmem:[#allocation8 + $0x208] sm:$0xff]
    %v4589 = vld [vmem:[#allocation8 + $0x210] sm:$0xff]
    %v4590 = vld [vmem:[#allocation8 + $0x218] sm:$0xff]
    %v4591 = vld [vmem:[#allocation8 + $0x220] sm:$0xff]
    %v4592 = vld [vmem:[#allocation8 + $0x228] sm:$0xff]
    %v4593 = vld [vmem:[#allocation8 + $0x230] sm:$0xff]
    %v4594 = vld [vmem:[#allocation8 + $0x238] sm:$0xff]
    %v4595 = vld [vmem:[#allocation8 + $0x240] sm:$0xff]
    %v4596 = vld [vmem:[#allocation8 + $0x248] sm:$0xff]
    %v4597 = vld [vmem:[#allocation8 + $0x250] sm:$0xff]
    %v4598 = vld [vmem:[#allocation8 + $0x258] sm:$0xff]
    %v4599 = vld [vmem:[#allocation8 + $0x260] sm:$0xff]
    %v4600 = vld [vmem:[#allocation8 + $0x268] sm:$0xff]
    %v4601 = vld [vmem:[#allocation8 + $0x270] sm:$0xff]
    %v4602 = vld [vmem:[#allocation8 + $0x278] sm:$0xff]
    %v4603 = vld [vmem:[#allocation8 + $0x280] sm:$0xff]
    %v4604 = vld [vmem:[#allocation8 + $0x288] sm:$0xff]
    %v4605 = vld [vmem:[#allocation8 + $0x290] sm:$0xff]
    %v4606 = vld [vmem:[#allocation8 + $0x298] sm:$0xff]
    %v4607 = vld [vmem:[#allocation8 + $0x2a0] sm:$0xff]
    %v4608 = vld [vmem:[#allocation8 + $0x2a8] sm:$0xff]
    %v4609 = vld [vmem:[#allocation8 + $0x2b0] sm:$0xff]
    %v4610 = vld [vmem:[#allocation8 + $0x2b8] sm:$0xff]
    %v4611 = vld [vmem:[#allocation8 + $0x2c0] sm:$0xff]
    %v4612 = vld [vmem:[#allocation8 + $0x2c8] sm:$0xff]
    %v4613 = vld [vmem:[#allocation8 + $0x2d0] sm:$0xff]
    %v4614 = vld [vmem:[#allocation8 + $0x2d8] sm:$0xff]
    %v4615 = vld [vmem:[#allocation8 + $0x2e0] sm:$0xff]
    %v4616 = vld [vmem:[#allocation8 + $0x2e8] sm:$0xff]
    %v4617 = vld [vmem:[#allocation8 + $0x2f0] sm:$0xff]
    %v4618 = vld [vmem:[#allocation8 + $0x2f8] sm:$0xff]
    %v4619 = vld [vmem:[#allocation8 + $0x300] sm:$0xff]
    %v4620 = vld [vmem:[#allocation8 + $0x308] sm:$0xff]
    %v4621 = vld [vmem:[#allocation8 + $0x310] sm:$0xff]
    %v4622 = vld [vmem:[#allocation8 + $0x318] sm:$0xff]
    %v4623 = vld [vmem:[#allocation8 + $0x320] sm:$0xff]
    %v4624 = vld [vmem:[#allocation8 + $0x328] sm:$0xff]
    %v4625 = vld [vmem:[#allocation8 + $0x330] sm:$0xff]
    %v4626 = vld [vmem:[#allocation8 + $0x338] sm:$0xff]
    %v4627 = vld [vmem:[#allocation8 + $0x340] sm:$0xff]
    %v4628 = vld [vmem:[#allocation8 + $0x348] sm:$0xff]
    %v4629 = vld [vmem:[#allocation8 + $0x350] sm:$0xff]
    %v4630 = vld [vmem:[#allocation8 + $0x358] sm:$0xff]
    %v4631 = vld [vmem:[#allocation8 + $0x360] sm:$0xff]
    %v4632 = vld [vmem:[#allocation8 + $0x368] sm:$0xff]
    %v4633 = vld [vmem:[#allocation8 + $0x370] sm:$0xff]
    %v4634 = vld [vmem:[#allocation8 + $0x378] sm:$0xff]
    %v4635 = vld [vmem:[#allocation8 + $0x380] sm:$0xff]
    %v4636 = vld [vmem:[#allocation8 + $0x388] sm:$0xff]
    %v4637 = vld [vmem:[#allocation8 + $0x390] sm:$0xff]
    %v4638 = vld [vmem:[#allocation8 + $0x398] sm:$0xff]
    %v4639 = vld [vmem:[#allocation8 + $0x3a0] sm:$0xff]
    %v4640 = vld [vmem:[#allocation8 + $0x3a8] sm:$0xff]
    %v4641 = vld [vmem:[#allocation8 + $0x3b0] sm:$0xff]
    %v4642 = vld [vmem:[#allocation8 + $0x3b8] sm:$0xff]
    %v4643 = vld [vmem:[#allocation8 + $0x3c0] sm:$0xff]
    %v4644 = vld [vmem:[#allocation8 + $0x3c8] sm:$0xff]
    %v4645 = vld [vmem:[#allocation8 + $0x3d0] sm:$0xff]
    %v4646 = vld [vmem:[#allocation8 + $0x3d8] sm:$0xff]
    %v4647 = vld [vmem:[#allocation8 + $0x3e0] sm:$0xff]
    %v4648 = vld [vmem:[#allocation8 + $0x3e8] sm:$0xff]
    %v4649 = vld [vmem:[#allocation8 + $0x3f0] sm:$0xff]
    %v4650 = vld [vmem:[#allocation8 + $0x3f8] sm:$0xff]
    %v4651 = vld [vmem:[#allocation10] sm:$0xf]
    %v4653 = vlaneseq
    %v4654 = vshrl.u32 %v4653, 7
    %v4655 = vsub.s32 0, %v4654
    %v4656 = vrot.slane %v4651, %v4655
    %v4657 = vlaneseq
    %v4658 = vshrl.u32 %v4657, 7
    %v4659 = vsub.s32 1, %v4658
    %v4660 = vrot.slane %v4651, %v4659
    %v4661 = vlaneseq
    %v4662 = vshrl.u32 %v4661, 7
    %v4663 = vsub.s32 2, %v4662
    %v4664 = vrot.slane %v4651, %v4663
    %v4665 = vlaneseq
    %v4666 = vshrl.u32 %v4665, 7
    %v4667 = vsub.s32 3, %v4666
    %v4668 = vrot.slane %v4651, %v4667
    %v4801 = vunpack.c.l.b16 %v4523
    %v4802 = vunpack.c.h.b16 %v4523
    %v4803 = vunpack.c.l.b16 %v4524
    %v4804 = vunpack.c.h.b16 %v4524
    %v4805 = vunpack.c.l.b16 %v4525
    %v4806 = vunpack.c.h.b16 %v4525
    %v4807 = vunpack.c.l.b16 %v4526
    %v4808 = vunpack.c.h.b16 %v4526
    %v4809 = vunpack.c.l.b16 %v4527
    %v4810 = vunpack.c.h.b16 %v4527
    %v4811 = vunpack.c.l.b16 %v4528
    %v4812 = vunpack.c.h.b16 %v4528
    %v4813 = vunpack.c.l.b16 %v4529
    %v4814 = vunpack.c.h.b16 %v4529
    %v4815 = vunpack.c.l.b16 %v4530
    %v4816 = vunpack.c.h.b16 %v4530
    %v4817 = vunpack.c.l.b16 %v4531
    %v4818 = vunpack.c.h.b16 %v4531
    %v4819 = vunpack.c.l.b16 %v4532
    %v4820 = vunpack.c.h.b16 %v4532
    %v4821 = vunpack.c.l.b16 %v4533
    %v4822 = vunpack.c.h.b16 %v4533
    %v4823 = vunpack.c.l.b16 %v4534
    %v4824 = vunpack.c.h.b16 %v4534
    %v4825 = vunpack.c.l.b16 %v4535
    %v4826 = vunpack.c.h.b16 %v4535
    %v4827 = vunpack.c.l.b16 %v4536
    %v4828 = vunpack.c.h.b16 %v4536
    %v4829 = vunpack.c.l.b16 %v4537
    %v4830 = vunpack.c.h.b16 %v4537
    %v4831 = vunpack.c.l.b16 %v4538
    %v4832 = vunpack.c.h.b16 %v4538
    %v4833 = vunpack.c.l.b16 %v4539
    %v4834 = vunpack.c.h.b16 %v4539
    %v4835 = vunpack.c.l.b16 %v4540
    %v4836 = vunpack.c.h.b16 %v4540
    %v4837 = vunpack.c.l.b16 %v4541
    %v4838 = vunpack.c.h.b16 %v4541
    %v4839 = vunpack.c.l.b16 %v4542
    %v4840 = vunpack.c.h.b16 %v4542
    %v4841 = vunpack.c.l.b16 %v4543
    %v4842 = vunpack.c.h.b16 %v4543
    %v4843 = vunpack.c.l.b16 %v4544
    %v4844 = vunpack.c.h.b16 %v4544
    %v4845 = vunpack.c.l.b16 %v4545
    %v4846 = vunpack.c.h.b16 %v4545
    %v4847 = vunpack.c.l.b16 %v4546
    %v4848 = vunpack.c.h.b16 %v4546
    %v4849 = vunpack.c.l.b16 %v4547
    %v4850 = vunpack.c.h.b16 %v4547
    %v4851 = vunpack.c.l.b16 %v4548
    %v4852 = vunpack.c.h.b16 %v4548
    %v4853 = vunpack.c.l.b16 %v4549
    %v4854 = vunpack.c.h.b16 %v4549
    %v4855 = vunpack.c.l.b16 %v4550
    %v4856 = vunpack.c.h.b16 %v4550
    %v4857 = vunpack.c.l.b16 %v4551
    %v4858 = vunpack.c.h.b16 %v4551
    %v4859 = vunpack.c.l.b16 %v4552
    %v4860 = vunpack.c.h.b16 %v4552
    %v4861 = vunpack.c.l.b16 %v4553
    %v4862 = vunpack.c.h.b16 %v4553
    %v4863 = vunpack.c.l.b16 %v4554
    %v4864 = vunpack.c.h.b16 %v4554
    %v4865 = vunpack.c.l.b16 %v4555
    %v4866 = vunpack.c.h.b16 %v4555
    %v4867 = vunpack.c.l.b16 %v4556
    %v4868 = vunpack.c.h.b16 %v4556
    %v4869 = vunpack.c.l.b16 %v4557
    %v4870 = vunpack.c.h.b16 %v4557
    %v4871 = vunpack.c.l.b16 %v4558
    %v4872 = vunpack.c.h.b16 %v4558
    %v4873 = vunpack.c.l.b16 %v4559
    %v4874 = vunpack.c.h.b16 %v4559
    %v4875 = vunpack.c.l.b16 %v4560
    %v4876 = vunpack.c.h.b16 %v4560
    %v4877 = vunpack.c.l.b16 %v4561
    %v4878 = vunpack.c.h.b16 %v4561
    %v4879 = vunpack.c.l.b16 %v4562
    %v4880 = vunpack.c.h.b16 %v4562
    %v4881 = vunpack.c.l.b16 %v4563
    %v4882 = vunpack.c.h.b16 %v4563
    %v4883 = vunpack.c.l.b16 %v4564
    %v4884 = vunpack.c.h.b16 %v4564
    %v4885 = vunpack.c.l.b16 %v4565
    %v4886 = vunpack.c.h.b16 %v4565
    %v4887 = vunpack.c.l.b16 %v4566
    %v4888 = vunpack.c.h.b16 %v4566
    %v4889 = vunpack.c.l.b16 %v4567
    %v4890 = vunpack.c.h.b16 %v4567
    %v4891 = vunpack.c.l.b16 %v4568
    %v4892 = vunpack.c.h.b16 %v4568
    %v4893 = vunpack.c.l.b16 %v4569
    %v4894 = vunpack.c.h.b16 %v4569
    %v4895 = vunpack.c.l.b16 %v4570
    %v4896 = vunpack.c.h.b16 %v4570
    %v4897 = vunpack.c.l.b16 %v4571
    %v4898 = vunpack.c.h.b16 %v4571
    %v4899 = vunpack.c.l.b16 %v4572
    %v4900 = vunpack.c.h.b16 %v4572
    %v4901 = vunpack.c.l.b16 %v4573
    %v4902 = vunpack.c.h.b16 %v4573
    %v4903 = vunpack.c.l.b16 %v4574
    %v4904 = vunpack.c.h.b16 %v4574
    %v4905 = vunpack.c.l.b16 %v4575
    %v4906 = vunpack.c.h.b16 %v4575
    %v4907 = vunpack.c.l.b16 %v4576
    %v4908 = vunpack.c.h.b16 %v4576
    %v4909 = vunpack.c.l.b16 %v4577
    %v4910 = vunpack.c.h.b16 %v4577
    %v4911 = vunpack.c.l.b16 %v4578
    %v4912 = vunpack.c.h.b16 %v4578
    %v4913 = vunpack.c.l.b16 %v4579
    %v4914 = vunpack.c.h.b16 %v4579
    %v4915 = vunpack.c.l.b16 %v4580
    %v4916 = vunpack.c.h.b16 %v4580
    %v4917 = vunpack.c.l.b16 %v4581
    %v4918 = vunpack.c.h.b16 %v4581
    %v4919 = vunpack.c.l.b16 %v4582
    %v4920 = vunpack.c.h.b16 %v4582
    %v4921 = vunpack.c.l.b16 %v4583
    %v4922 = vunpack.c.h.b16 %v4583
    %v4923 = vunpack.c.l.b16 %v4584
    %v4924 = vunpack.c.h.b16 %v4584
    %v4925 = vunpack.c.l.b16 %v4585
    %v4926 = vunpack.c.h.b16 %v4585
    %v4927 = vunpack.c.l.b16 %v4586
    %v4928 = vunpack.c.h.b16 %v4586
    %v4929 = vunpack.c.l.b16 %v4587
    %v4930 = vunpack.c.h.b16 %v4587
    %v4931 = vunpack.c.l.b16 %v4588
    %v4932 = vunpack.c.h.b16 %v4588
    %v4933 = vunpack.c.l.b16 %v4589
    %v4934 = vunpack.c.h.b16 %v4589
    %v4935 = vunpack.c.l.b16 %v4590
    %v4936 = vunpack.c.h.b16 %v4590
    %v4937 = vunpack.c.l.b16 %v4591
    %v4938 = vunpack.c.h.b16 %v4591
    %v4939 = vunpack.c.l.b16 %v4592
    %v4940 = vunpack.c.h.b16 %v4592
    %v4941 = vunpack.c.l.b16 %v4593
    %v4942 = vunpack.c.h.b16 %v4593
    %v4943 = vunpack.c.l.b16 %v4594
    %v4944 = vunpack.c.h.b16 %v4594
    %v4945 = vunpack.c.l.b16 %v4595
    %v4946 = vunpack.c.h.b16 %v4595
    %v4947 = vunpack.c.l.b16 %v4596
    %v4948 = vunpack.c.h.b16 %v4596
    %v4949 = vunpack.c.l.b16 %v4597
    %v4950 = vunpack.c.h.b16 %v4597
    %v4951 = vunpack.c.l.b16 %v4598
    %v4952 = vunpack.c.h.b16 %v4598
    %v4953 = vunpack.c.l.b16 %v4599
    %v4954 = vunpack.c.h.b16 %v4599
    %v4955 = vunpack.c.l.b16 %v4600
    %v4956 = vunpack.c.h.b16 %v4600
    %v4957 = vunpack.c.l.b16 %v4601
    %v4958 = vunpack.c.h.b16 %v4601
    %v4959 = vunpack.c.l.b16 %v4602
    %v4960 = vunpack.c.h.b16 %v4602
    %v4961 = vunpack.c.l.b16 %v4603
    %v4962 = vunpack.c.h.b16 %v4603
    %v4963 = vunpack.c.l.b16 %v4604
    %v4964 = vunpack.c.h.b16 %v4604
    %v4965 = vunpack.c.l.b16 %v4605
    %v4966 = vunpack.c.h.b16 %v4605
    %v4967 = vunpack.c.l.b16 %v4606
    %v4968 = vunpack.c.h.b16 %v4606
    %v4969 = vunpack.c.l.b16 %v4607
    %v4970 = vunpack.c.h.b16 %v4607
    %v4971 = vunpack.c.l.b16 %v4608
    %v4972 = vunpack.c.h.b16 %v4608
    %v4973 = vunpack.c.l.b16 %v4609
    %v4974 = vunpack.c.h.b16 %v4609
    %v4975 = vunpack.c.l.b16 %v4610
    %v4976 = vunpack.c.h.b16 %v4610
    %v4977 = vunpack.c.l.b16 %v4611
    %v4978 = vunpack.c.h.b16 %v4611
    %v4979 = vunpack.c.l.b16 %v4612
    %v4980 = vunpack.c.h.b16 %v4612
    %v4981 = vunpack.c.l.b16 %v4613
    %v4982 = vunpack.c.h.b16 %v4613
    %v4983 = vunpack.c.l.b16 %v4614
    %v4984 = vunpack.c.h.b16 %v4614
    %v4985 = vunpack.c.l.b16 %v4615
    %v4986 = vunpack.c.h.b16 %v4615
    %v4987 = vunpack.c.l.b16 %v4616
    %v4988 = vunpack.c.h.b16 %v4616
    %v4989 = vunpack.c.l.b16 %v4617
    %v4990 = vunpack.c.h.b16 %v4617
    %v4991 = vunpack.c.l.b16 %v4618
    %v4992 = vunpack.c.h.b16 %v4618
    %v4993 = vunpack.c.l.b16 %v4619
    %v4994 = vunpack.c.h.b16 %v4619
    %v4995 = vunpack.c.l.b16 %v4620
    %v4996 = vunpack.c.h.b16 %v4620
    %v4997 = vunpack.c.l.b16 %v4621
    %v4998 = vunpack.c.h.b16 %v4621
    %v4999 = vunpack.c.l.b16 %v4622
    %v5000 = vunpack.c.h.b16 %v4622
    %v5001 = vunpack.c.l.b16 %v4623
    %v5002 = vunpack.c.h.b16 %v4623
    %v5003 = vunpack.c.l.b16 %v4624
    %v5004 = vunpack.c.h.b16 %v4624
    %v5005 = vunpack.c.l.b16 %v4625
    %v5006 = vunpack.c.h.b16 %v4625
    %v5007 = vunpack.c.l.b16 %v4626
    %v5008 = vunpack.c.h.b16 %v4626
    %v5009 = vunpack.c.l.b16 %v4627
    %v5010 = vunpack.c.h.b16 %v4627
    %v5011 = vunpack.c.l.b16 %v4628
    %v5012 = vunpack.c.h.b16 %v4628
    %v5013 = vunpack.c.l.b16 %v4629
    %v5014 = vunpack.c.h.b16 %v4629
    %v5015 = vunpack.c.l.b16 %v4630
    %v5016 = vunpack.c.h.b16 %v4630
    %v5017 = vunpack.c.l.b16 %v4631
    %v5018 = vunpack.c.h.b16 %v4631
    %v5019 = vunpack.c.l.b16 %v4632
    %v5020 = vunpack.c.h.b16 %v4632
    %v5021 = vunpack.c.l.b16 %v4633
    %v5022 = vunpack.c.h.b16 %v4633
    %v5023 = vunpack.c.l.b16 %v4634
    %v5024 = vunpack.c.h.b16 %v4634
    %v5025 = vunpack.c.l.b16 %v4635
    %v5026 = vunpack.c.h.b16 %v4635
    %v5027 = vunpack.c.l.b16 %v4636
    %v5028 = vunpack.c.h.b16 %v4636
    %v5029 = vunpack.c.l.b16 %v4637
    %v5030 = vunpack.c.h.b16 %v4637
    %v5031 = vunpack.c.l.b16 %v4638
    %v5032 = vunpack.c.h.b16 %v4638
    %v5033 = vunpack.c.l.b16 %v4639
    %v5034 = vunpack.c.h.b16 %v4639
    %v5035 = vunpack.c.l.b16 %v4640
    %v5036 = vunpack.c.h.b16 %v4640
    %v5037 = vunpack.c.l.b16 %v4641
    %v5038 = vunpack.c.h.b16 %v4641
    %v5039 = vunpack.c.l.b16 %v4642
    %v5040 = vunpack.c.h.b16 %v4642
    %v5041 = vunpack.c.l.b16 %v4643
    %v5042 = vunpack.c.h.b16 %v4643
    %v5043 = vunpack.c.l.b16 %v4644
    %v5044 = vunpack.c.h.b16 %v4644
    %v5045 = vunpack.c.l.b16 %v4645
    %v5046 = vunpack.c.h.b16 %v4645
    %v5047 = vunpack.c.l.b16 %v4646
    %v5048 = vunpack.c.h.b16 %v4646
    %v5049 = vunpack.c.l.b16 %v4647
    %v5050 = vunpack.c.h.b16 %v4647
    %v5051 = vunpack.c.l.b16 %v4648
    %v5052 = vunpack.c.h.b16 %v4648
    %v5053 = vunpack.c.l.b16 %v4649
    %v5054 = vunpack.c.h.b16 %v4649
    %v5055 = vunpack.c.l.b16 %v4650
    %v5056 = vunpack.c.h.b16 %v4650
    %v5057 = vpack.c.b16 %v4805, %v4801
    %v5058 = vpack.c.b16 %v4806, %v4802
    %v5059 = vpack.c.b16 %v4807, %v4803
    %v5060 = vpack.c.b16 %v4808, %v4804
    %v5061 = vpack.c.b16 %v4813, %v4809
    %v5062 = vpack.c.b16 %v4814, %v4810
    %v5063 = vpack.c.b16 %v4815, %v4811
    %v5064 = vpack.c.b16 %v4816, %v4812
    %v5065 = vpack.c.b16 %v4821, %v4817
    %v5066 = vpack.c.b16 %v4822, %v4818
    %v5067 = vpack.c.b16 %v4823, %v4819
    %v5068 = vpack.c.b16 %v4824, %v4820
    %v5069 = vpack.c.b16 %v4829, %v4825
    %v5070 = vpack.c.b16 %v4830, %v4826
    %v5071 = vpack.c.b16 %v4831, %v4827
    %v5072 = vpack.c.b16 %v4832, %v4828
    %v5073 = vpack.c.b16 %v4837, %v4833
    %v5074 = vpack.c.b16 %v4838, %v4834
    %v5075 = vpack.c.b16 %v4839, %v4835
    %v5076 = vpack.c.b16 %v4840, %v4836
    %v5077 = vpack.c.b16 %v4845, %v4841
    %v5078 = vpack.c.b16 %v4846, %v4842
    %v5079 = vpack.c.b16 %v4847, %v4843
    %v5080 = vpack.c.b16 %v4848, %v4844
    %v5081 = vpack.c.b16 %v4853, %v4849
    %v5082 = vpack.c.b16 %v4854, %v4850
    %v5083 = vpack.c.b16 %v4855, %v4851
    %v5084 = vpack.c.b16 %v4856, %v4852
    %v5085 = vpack.c.b16 %v4861, %v4857
    %v5086 = vpack.c.b16 %v4862, %v4858
    %v5087 = vpack.c.b16 %v4863, %v4859
    %v5088 = vpack.c.b16 %v4864, %v4860
    %v5089 = vpack.c.b16 %v4869, %v4865
    %v5090 = vpack.c.b16 %v4870, %v4866
    %v5091 = vpack.c.b16 %v4871, %v4867
    %v5092 = vpack.c.b16 %v4872, %v4868
    %v5093 = vpack.c.b16 %v4877, %v4873
    %v5094 = vpack.c.b16 %v4878, %v4874
    %v5095 = vpack.c.b16 %v4879, %v4875
    %v5096 = vpack.c.b16 %v4880, %v4876
    %v5097 = vpack.c.b16 %v4885, %v4881
    %v5098 = vpack.c.b16 %v4886, %v4882
    %v5099 = vpack.c.b16 %v4887, %v4883
    %v5100 = vpack.c.b16 %v4888, %v4884
    %v5101 = vpack.c.b16 %v4893, %v4889
    %v5102 = vpack.c.b16 %v4894, %v4890
    %v5103 = vpack.c.b16 %v4895, %v4891
    %v5104 = vpack.c.b16 %v4896, %v4892
    %v5105 = vpack.c.b16 %v4901, %v4897
    %v5106 = vpack.c.b16 %v4902, %v4898
    %v5107 = vpack.c.b16 %v4903, %v4899
    %v5108 = vpack.c.b16 %v4904, %v4900
    %v5109 = vpack.c.b16 %v4909, %v4905
    %v5110 = vpack.c.b16 %v4910, %v4906
    %v5111 = vpack.c.b16 %v4911, %v4907
    %v5112 = vpack.c.b16 %v4912, %v4908
    %v5113 = vpack.c.b16 %v4917, %v4913
    %v5114 = vpack.c.b16 %v4918, %v4914
    %v5115 = vpack.c.b16 %v4919, %v4915
    %v5116 = vpack.c.b16 %v4920, %v4916
    %v5117 = vpack.c.b16 %v4925, %v4921
    %v5118 = vpack.c.b16 %v4926, %v4922
    %v5119 = vpack.c.b16 %v4927, %v4923
    %v5120 = vpack.c.b16 %v4928, %v4924
    %v5121 = vpack.c.b16 %v4933, %v4929
    %v5122 = vpack.c.b16 %v4934, %v4930
    %v5123 = vpack.c.b16 %v4935, %v4931
    %v5124 = vpack.c.b16 %v4936, %v4932
    %v5125 = vpack.c.b16 %v4941, %v4937
    %v5126 = vpack.c.b16 %v4942, %v4938
    %v5127 = vpack.c.b16 %v4943, %v4939
    %v5128 = vpack.c.b16 %v4944, %v4940
    %v5129 = vpack.c.b16 %v4949, %v4945
    %v5130 = vpack.c.b16 %v4950, %v4946
    %v5131 = vpack.c.b16 %v4951, %v4947
    %v5132 = vpack.c.b16 %v4952, %v4948
    %v5133 = vpack.c.b16 %v4957, %v4953
    %v5134 = vpack.c.b16 %v4958, %v4954
    %v5135 = vpack.c.b16 %v4959, %v4955
    %v5136 = vpack.c.b16 %v4960, %v4956
    %v5137 = vpack.c.b16 %v4965, %v4961
    %v5138 = vpack.c.b16 %v4966, %v4962
    %v5139 = vpack.c.b16 %v4967, %v4963
    %v5140 = vpack.c.b16 %v4968, %v4964
    %v5141 = vpack.c.b16 %v4973, %v4969
    %v5142 = vpack.c.b16 %v4974, %v4970
    %v5143 = vpack.c.b16 %v4975, %v4971
    %v5144 = vpack.c.b16 %v4976, %v4972
    %v5145 = vpack.c.b16 %v4981, %v4977
    %v5146 = vpack.c.b16 %v4982, %v4978
    %v5147 = vpack.c.b16 %v4983, %v4979
    %v5148 = vpack.c.b16 %v4984, %v4980
    %v5149 = vpack.c.b16 %v4989, %v4985
    %v5150 = vpack.c.b16 %v4990, %v4986
    %v5151 = vpack.c.b16 %v4991, %v4987
    %v5152 = vpack.c.b16 %v4992, %v4988
    %v5153 = vpack.c.b16 %v4997, %v4993
    %v5154 = vpack.c.b16 %v4998, %v4994
    %v5155 = vpack.c.b16 %v4999, %v4995
    %v5156 = vpack.c.b16 %v5000, %v4996
    %v5157 = vpack.c.b16 %v5005, %v5001
    %v5158 = vpack.c.b16 %v5006, %v5002
    %v5159 = vpack.c.b16 %v5007, %v5003
    %v5160 = vpack.c.b16 %v5008, %v5004
    %v5161 = vpack.c.b16 %v5013, %v5009
    %v5162 = vpack.c.b16 %v5014, %v5010
    %v5163 = vpack.c.b16 %v5015, %v5011
    %v5164 = vpack.c.b16 %v5016, %v5012
    %v5165 = vpack.c.b16 %v5021, %v5017
    %v5166 = vpack.c.b16 %v5022, %v5018
    %v5167 = vpack.c.b16 %v5023, %v5019
    %v5168 = vpack.c.b16 %v5024, %v5020
    %v5169 = vpack.c.b16 %v5029, %v5025
    %v5170 = vpack.c.b16 %v5030, %v5026
    %v5171 = vpack.c.b16 %v5031, %v5027
    %v5172 = vpack.c.b16 %v5032, %v5028
    %v5173 = vpack.c.b16 %v5037, %v5033
    %v5174 = vpack.c.b16 %v5038, %v5034
    %v5175 = vpack.c.b16 %v5039, %v5035
    %v5176 = vpack.c.b16 %v5040, %v5036
    %v5177 = vpack.c.b16 %v5045, %v5041
    %v5178 = vpack.c.b16 %v5046, %v5042
    %v5179 = vpack.c.b16 %v5047, %v5043
    %v5180 = vpack.c.b16 %v5048, %v5044
    %v5181 = vpack.c.b16 %v5053, %v5049
    %v5182 = vpack.c.b16 %v5054, %v5050
    %v5183 = vpack.c.b16 %v5055, %v5051
    %v5184 = vpack.c.b16 %v5056, %v5052
    %5313 = vmatprep.subr.bf16.mxu0 %v5058
    %5314 = vmatpush1.bf16.msra.mxu0 %v5057
    %5315 = vmatprep.subr.bf16.mxu0 %v5062
    %5316 = vmatpush1.bf16.msra.mxu0 %v5061
    %5317 = vmatprep.subr.bf16.mxu0 %v5066
    %5318 = vmatpush1.bf16.msra.mxu0 %v5065
    %5319 = vmatprep.subr.bf16.mxu0 %v5070
    %5320 = vmatpush1.bf16.msra.mxu0 %v5069
    %5321 = vmatprep.subr.bf16.mxu0 %v5074
    %5322 = vmatpush1.bf16.msra.mxu0 %v5073
    %5323 = vmatprep.subr.bf16.mxu0 %v5078
    %5324 = vmatpush1.bf16.msra.mxu0 %v5077
    %5325 = vmatprep.subr.bf16.mxu0 %v5082
    %5326 = vmatpush1.bf16.msra.mxu0 %v5081
    %5327 = vmatprep.subr.bf16.mxu0 %v5086
    %5328 = vmatpush1.bf16.msra.mxu0 %v5085
    %5329 = vmatprep.subr.bf16.mxu0 %v5090
    %5330 = vmatpush1.bf16.msra.mxu0 %v5089
    %5331 = vmatprep.subr.bf16.mxu0 %v5094
    %5332 = vmatpush1.bf16.msra.mxu0 %v5093
    %5333 = vmatprep.subr.bf16.mxu0 %v5098
    %5334 = vmatpush1.bf16.msra.mxu0 %v5097
    %5335 = vmatprep.subr.bf16.mxu0 %v5102
    %5336 = vmatpush1.bf16.msra.mxu0 %v5101
    %5337 = vmatprep.subr.bf16.mxu0 %v5106
    %5338 = vmatpush1.bf16.msra.mxu0 %v5105
    %5339 = vmatprep.subr.bf16.mxu0 %v5110
    %5340 = vmatpush1.bf16.msra.mxu0 %v5109
    %5341 = vmatprep.subr.bf16.mxu0 %v5114
    %5342 = vmatpush1.bf16.msra.mxu0 %v5113
    %5343 = vmatprep.subr.bf16.mxu0 %v5118
    %5344 = vmatpush1.bf16.msra.mxu0 %v5117
    %5345 = vmatprep.mubr.bf16.mxu0 %v4520
    %5346 = vmatmul.mubr.bf16.gmra.mrb[0].mxu0 %v4519
    %v5347 = vpop.f32.mrb[0].mxu0
    %v5348 = vadd.f32 %v4656, %v5347
    %v5349 = vpop.f32.mrb[0].mxu0
    %v5350 = vadd.f32 %v4660, %v5349
    %v5351 = vpop.f32.mrb[0].mxu0
    %v5352 = vpop.f32.mrb[0].mxu0
    %5353 = vdwg.mxu0
    %5354 = vmatprep.subr.bf16.mxu0 %v5122
    %5355 = vmatpush1.bf16.msra.mxu0 %v5121
    %5356 = vmatprep.subr.bf16.mxu0 %v5126
    %5357 = vmatpush1.bf16.msra.mxu0 %v5125
    %5358 = vmatprep.subr.bf16.mxu0 %v5130
    %5359 = vmatpush1.bf16.msra.mxu0 %v5129
    %5360 = vmatprep.subr.bf16.mxu0 %v5134
    %5361 = vmatpush1.bf16.msra.mxu0 %v5133
    %5362 = vmatprep.subr.bf16.mxu0 %v5138
    %5363 = vmatpush1.bf16.msra.mxu0 %v5137
    %5364 = vmatprep.subr.bf16.mxu0 %v5142
    %5365 = vmatpush1.bf16.msra.mxu0 %v5141
    %5366 = vmatprep.subr.bf16.mxu0 %v5146
    %5367 = vmatpush1.bf16.msra.mxu0 %v5145
    %5368 = vmatprep.subr.bf16.mxu0 %v5150
    %5369 = vmatpush1.bf16.msra.mxu0 %v5149
    %5370 = vmatprep.subr.bf16.mxu0 %v5154
    %5371 = vmatpush1.bf16.msra.mxu0 %v5153
    %5372 = vmatprep.subr.bf16.mxu0 %v5158
    %5373 = vmatpush1.bf16.msra.mxu0 %v5157
    %5374 = vmatprep.subr.bf16.mxu0 %v5162
    %5375 = vmatpush1.bf16.msra.mxu0 %v5161
    %5376 = vmatprep.subr.bf16.mxu0 %v5166
    %5377 = vmatpush1.bf16.msra.mxu0 %v5165
    %5378 = vmatprep.subr.bf16.mxu0 %v5170
    %5379 = vmatpush1.bf16.msra.mxu0 %v5169
    %5380 = vmatprep.subr.bf16.mxu0 %v5174
    %5381 = vmatpush1.bf16.msra.mxu0 %v5173
    %5382 = vmatprep.subr.bf16.mxu0 %v5178
    %5383 = vmatpush1.bf16.msra.mxu0 %v5177
    %5384 = vmatprep.subr.bf16.mxu0 %v5182
    %5385 = vmatpush1.bf16.msra.mxu0 %v5181
    %5386 = vmatprep.mubr.bf16.mxu0 %v4522
    %5387 = vmatmul.mubr.bf16.gmra.mrb[0].mxu0 %v4521
    %v5388 = vpop.f32.mrb[0].mxu0
    %v5389 = vadd.f32 %v5348, %v5388
    %v5390 = vpop.f32.mrb[0].mxu0
    %v5391 = vadd.f32 %v5350, %v5390
    %v5392 = vpop.f32.mrb[0].mxu0
    %v5393 = vpop.f32.mrb[0].mxu0
    %5394 = vdwg.mxu0
    %5395 = vmatprep.subr.bf16.mxu0 %v5060
    %5396 = vmatpush1.bf16.msra.mxu0 %v5059
    %5397 = vmatprep.subr.bf16.mxu0 %v5064
    %5398 = vmatpush1.bf16.msra.mxu0 %v5063
    %5399 = vmatprep.subr.bf16.mxu0 %v5068
    %5400 = vmatpush1.bf16.msra.mxu0 %v5067
    %5401 = vmatprep.subr.bf16.mxu0 %v5072
    %5402 = vmatpush1.bf16.msra.mxu0 %v5071
    %5403 = vmatprep.subr.bf16.mxu0 %v5076
    %5404 = vmatpush1.bf16.msra.mxu0 %v5075
    %5405 = vmatprep.subr.bf16.mxu0 %v5080
    %5406 = vmatpush1.bf16.msra.mxu0 %v5079
    %5407 = vmatprep.subr.bf16.mxu0 %v5084
    %5408 = vmatpush1.bf16.msra.mxu0 %v5083
    %5409 = vmatprep.subr.bf16.mxu0 %v5088
    %5410 = vmatpush1.bf16.msra.mxu0 %v5087
    %5411 = vmatprep.subr.bf16.mxu0 %v5092
    %5412 = vmatpush1.bf16.msra.mxu0 %v5091
    %5413 = vmatprep.subr.bf16.mxu0 %v5096
    %5414 = vmatpush1.bf16.msra.mxu0 %v5095
    %5415 = vmatprep.subr.bf16.mxu0 %v5100
    %5416 = vmatpush1.bf16.msra.mxu0 %v5099
    %5417 = vmatprep.subr.bf16.mxu0 %v5104
    %5418 = vmatpush1.bf16.msra.mxu0 %v5103
    %5419 = vmatprep.subr.bf16.mxu0 %v5108
    %5420 = vmatpush1.bf16.msra.mxu0 %v5107
    %5421 = vmatprep.subr.bf16.mxu0 %v5112
    %5422 = vmatpush1.bf16.msra.mxu0 %v5111
    %5423 = vmatprep.subr.bf16.mxu0 %v5116
    %5424 = vmatpush1.bf16.msra.mxu0 %v5115
    %5425 = vmatprep.subr.bf16.mxu0 %v5120
    %5426 = vmatpush1.bf16.msra.mxu0 %v5119
    %5427 = vmatprep.mubr.bf16.mxu0 %v4520
    %5428 = vmatmul.mubr.bf16.gmra.mrb[0].mxu0 %v4519
    %v5429 = vpop.f32.mrb[0].mxu0
    %v5430 = vadd.f32 %v4664, %v5429
    %v5431 = vpop.f32.mrb[0].mxu0
    %v5432 = vadd.f32 %v4668, %v5431
    %v5433 = vpop.f32.mrb[0].mxu0
    %v5434 = vpop.f32.mrb[0].mxu0
    %5435 = vdwg.mxu0
    %5436 = vmatprep.subr.bf16.mxu0 %v5124
    %5437 = vmatpush1.bf16.msra.mxu0 %v5123
    %5438 = vmatprep.subr.bf16.mxu0 %v5128
    %5439 = vmatpush1.bf16.msra.mxu0 %v5127
    %5440 = vmatprep.subr.bf16.mxu0 %v5132
    %5441 = vmatpush1.bf16.msra.mxu0 %v5131
    %5442 = vmatprep.subr.bf16.mxu0 %v5136
    %5443 = vmatpush1.bf16.msra.mxu0 %v5135
    %5444 = vmatprep.subr.bf16.mxu0 %v5140
    %5445 = vmatpush1.bf16.msra.mxu0 %v5139
    %5446 = vmatprep.subr.bf16.mxu0 %v5144
    %5447 = vmatpush1.bf16.msra.mxu0 %v5143
    %5448 = vmatprep.subr.bf16.mxu0 %v5148
    %5449 = vmatpush1.bf16.msra.mxu0 %v5147
    %5450 = vmatprep.subr.bf16.mxu0 %v5152
    %5451 = vmatpush1.bf16.msra.mxu0 %v5151
    %5452 = vmatprep.subr.bf16.mxu0 %v5156
    %5453 = vmatpush1.bf16.msra.mxu0 %v5155
    %5454 = vmatprep.subr.bf16.mxu0 %v5160
    %5455 = vmatpush1.bf16.msra.mxu0 %v5159
    %5456 = vmatprep.subr.bf16.mxu0 %v5164
    %5457 = vmatpush1.bf16.msra.mxu0 %v5163
    %5458 = vmatprep.subr.bf16.mxu0 %v5168
    %5459 = vmatpush1.bf16.msra.mxu0 %v5167
    %5460 = vmatprep.subr.bf16.mxu0 %v5172
    %5461 = vmatpush1.bf16.msra.mxu0 %v5171
    %5462 = vmatprep.subr.bf16.mxu0 %v5176
    %5463 = vmatpush1.bf16.msra.mxu0 %v5175
    %5464 = vmatprep.subr.bf16.mxu0 %v5180
    %5465 = vmatpush1.bf16.msra.mxu0 %v5179
    %5466 = vmatprep.subr.bf16.mxu0 %v5184
    %5467 = vmatpush1.bf16.msra.mxu0 %v5183
    %5468 = vmatprep.mubr.bf16.mxu0 %v4522
    %5469 = vmatmul.mubr.bf16.gmra.mrb[0].mxu0 %v4521
    %v5470 = vpop.f32.mrb[0].mxu0
    %v5471 = vadd.f32 %v5430, %v5470
    %v5472 = vpop.f32.mrb[0].mxu0
    %v5473 = vadd.f32 %v5432, %v5472
    %v5474 = vpop.f32.mrb[0].mxu0
    %v5475 = vpop.f32.mrb[0].mxu0
    %5476 = vdwg.mxu0
    %v5477 = vmax.f32 %v5389, 0.0
    %v5478 = vmax.f32 %v5391, 0.0
    %v5479 = vmax.f32 %v5471, 0.0
    %v5480 = vmax.f32 %v5473, 0.0
    %v5481 = vld [vmem:[#allocation11] sm:$0xf]
    %v5483 = vlaneseq
    %v5484 = vshrl.u32 %v5483, 7
    %v5485 = vsub.s32 0, %v5484
    %v5486 = vrot.slane %v5481, %v5485
    %v5487 = vlaneseq
    %v5488 = vshrl.u32 %v5487, 7
    %v5489 = vsub.s32 1, %v5488
    %v5490 = vrot.slane %v5481, %v5489
    %v5491 = vlaneseq
    %v5492 = vshrl.u32 %v5491, 7
    %v5493 = vsub.s32 2, %v5492
    %v5494 = vrot.slane %v5481, %v5493
    %v5495 = vlaneseq
    %v5496 = vshrl.u32 %v5495, 7
    %v5497 = vsub.s32 3, %v5496
    %v5498 = vrot.slane %v5481, %v5497
    %v5503 = vmul.f32 %v5477, %v5486
    %v5504 = vmul.f32 %v5478, %v5490
    %v5505 = vmul.f32 %v5479, %v5494
    %v5506 = vmul.f32 %v5480, %v5498
    %v5507 = vadd.f32 %v5503, %v5504
    %v5508 = vadd.f32 %v5507, %v5505
    %v5509 = vadd.f32 %v5508, %v5506
    %5510 = vadd.xlane.f32.xlu0 %v5509
    %v5511 = vpop.xlane.xlu0 %5510
    %v5512 = vld [vmem:[#allocation2] sm:$0x1]
    %v5514 = vlaneseq
    %v5515 = vshrl.u32 %v5514, 7
    %v5516 = vsub.s32 0, %v5515
    %v5517 = vrot.slane %v5512, %v5516
    %v5519 = vadd.f32 %v5511, %v5517
    %vm5520 = vcmask 7168
    %5521 = vst.msk [vmem:[%s7] sm:$0xff] %vm5520, %v5519
    // Predicated region
    $region54: #{tpu_custom_call.1} parent=1 // pred_check
      _
    $region55: #{tpu_custom_call.1} parent=1 // pred_check_branch
      %5523 = sbr.rel (0) target = $region57
    $region56: #{tpu_custom_call.1} parent=1 // pred_region
      _
    $region57: #{tpu_custom_call.1} parent=1 // pred_fallthru
      _
    // Predicated region
    $region58: #{tpu_custom_call.1} parent=1 // pred_check
      _
    $region59: #{tpu_custom_call.1} parent=1 // pred_check_branch
      %5525 = sbr.rel (0) target = $region61
    $region60: #{tpu_custom_call.1} parent=1 // pred_region
      _
    $region61: #{tpu_custom_call.1} parent=1 // pred_fallthru
      _
    %5526 = vsyncpa [#allocation4], 1
    %5527 = vsyncpa [#allocation6], 1
    %5528 = vsyncpa [#allocation9], 1
    %5529 = vsyncpa [#allocation12], 1

</llo_original>
